<compile_context>
chip_gen: v7x
topology: tpu7x:2x2x1
jax: 0.10.0
libtpu: 0.0.40
codegen_flags: <defaults>
</compile_context>

<pallas_src>
import functools

import numpy as np
import jax
import jax.numpy as jnp
from jax.experimental import pallas as pl
from jax.experimental.pallas import tpu as pltpu


# ---------------------------------------------------------------------------
# Fused per-step kernel: density mixing + Coulomb build + Fock + energy
# ---------------------------------------------------------------------------
def _scf_step_kernel(alpha_ref, e_nuc_ref,               # SMEM scalars
                     dm_flat_ref, dm_old_flat_ref,       # (1, TK) contraction tiles
                     dm_ref, dm_old_ref, hc_ref,         # (N, N), resident
                     s_oh_ref, s_inv_oh_ref,             # (N, N), resident
                     eri_ref,                            # (TK, N*N) contraction tile
                     dm_mix_ref, fprime_ref, e_ref,      # outputs
                     j_flat_sc, j_mat_sc,                # VMEM scratch
                     *, n):
    t = pl.program_id(0)
    nt = pl.num_programs(0)
    a = alpha_ref[0, 0]

    # --- every tile: this tile's slice of the mixed density and its partial J.
    #     (linear mixing; the DIIS branch of the reference is dead code here)
    dmm_t = a * dm_flat_ref[...] + (1.0 - a) * dm_old_flat_ref[...]      # (1, TK)
    part = jnp.dot(dmm_t.astype(eri_ref.dtype), eri_ref[...],
                   preferred_element_type=jnp.float32)                   # (1, N*N)

    @pl.when(t == 0)
    def _():
        j_flat_sc[...] = jnp.zeros_like(j_flat_sc)

    j_flat_sc[...] += part

    # --- last tile: unflatten J, Fock build, similarity transform, energy.
    @pl.when(t == nt - 1)
    def _():
        # Static per-row copy (1, N*N) -> (N, N); all offsets are compile-time,
        # avoiding an unsupported in-kernel cross-lane reshape.
        for r in range(n):
            j_mat_sc[r:r + 1, :] = j_flat_sc[:, r * n:(r + 1) * n]

        dmm = a * dm_ref[...] + (1.0 - a) * dm_old_ref[...]              # (N, N)
        dm_mix_ref[...] = dmm

        jm = j_mat_sc[...]                                               # veff = J
        hc = hc_ref[...]
        f = hc + jm                                                      # fock
        # NOTE: mirrors the reference literally (s_oh @ F @ s_inv_oh); eigh
        # symmetrizes its input, matching torch.symeig's one-triangle read.
        fprime_ref[...] = jnp.dot(
            s_oh_ref[...],
            jnp.dot(f, s_inv_oh_ref[...], preferred_element_type=jnp.float32),
            preferred_element_type=jnp.float32)

        e = jnp.sum(dmm * hc) + 0.5 * jnp.sum(dmm * jm)
        e_ref[0, 0] = e + e_nuc_ref[0, 0]


def _smem_spec():
    return pl.BlockSpec(memory_space=pltpu.MemorySpace.SMEM)


def _scf_step_call(dm, dm_old, hc, s_oh, s_inv_oh, eri2, alpha_11, e_nuc_11, tk):
    n = dm.shape[-1]
    n2 = n * n
    nt = n2 // tk
    dm_flat = dm.reshape(1, n2)           # free: same HBM bytes, flat view
    dm_old_flat = dm_old.reshape(1, n2)

    def resident(shape):
        return pl.BlockSpec(shape, lambda t: (0, 0))

    eri_bytes = int(eri2.size) * eri2.dtype.itemsize
    cost = pl.CostEstimate(flops=2 * n2 * n2 + 4 * n ** 3,
                           bytes_accessed=eri_bytes + 12 * 4 * n2,
                           transcendentals=0)

    dm_mix, fprime, e_step = pl.pallas_call(
        functools.partial(_scf_step_kernel, n=n),
        out_shape=(jax.ShapeDtypeStruct((n, n), jnp.float32),
                   jax.ShapeDtypeStruct((n, n), jnp.float32),
                   jax.ShapeDtypeStruct((1, 1), jnp.float32)),
        grid=(nt,),
        in_specs=[_smem_spec(), _smem_spec(),
                  pl.BlockSpec((1, tk), lambda t: (0, t)),
                  pl.BlockSpec((1, tk), lambda t: (0, t)),
                  resident((n, n)), resident((n, n)), resident((n, n)),
                  resident((n, n)), resident((n, n)),
                  pl.BlockSpec((tk, n2), lambda t: (t, 0))],
        out_specs=(resident((n, n)), resident((n, n)), _smem_spec()),
        scratch_shapes=[pltpu.VMEM((1, n2), jnp.float32),
                        pltpu.VMEM((n, n), jnp.float32)],
        # Reduction over ERI tiles + finalize needs the full J -> "arbitrary".
        compiler_params=pltpu.CompilerParams(
            dimension_semantics=("arbitrary",)),
        cost_estimate=cost,
    )(alpha_11, e_nuc_11, dm_flat, dm_old_flat, dm, dm_old, hc, s_oh,
      s_inv_oh, eri2)
    return dm_mix, fprime, e_step


# ---------------------------------------------------------------------------
# rdm1 kernel: back-transform of eigenvectors + density build
# ---------------------------------------------------------------------------
def _rdm1_kernel(s_inv_oh_ref, c_ref, occ_ref, dm_ref):
    c = jnp.dot(s_inv_oh_ref[...], c_ref[...], preferred_element_type=jnp.float32)
    cw = c * occ_ref[...]                       # (N, K) * (1, K) column weights
    # dm = (C*occ) @ C^T ; zero-occupation (padded) columns drop out exactly.
    dm_ref[...] = jax.lax.dot_general(
        cw, c, (((1,), (1,)), ((), ())), preferred_element_type=jnp.float32)


def _rdm1_call(s_inv_oh, c_occ, occ_row):
    n = s_inv_oh.shape[-1]
    k = c_occ.shape[-1]
    return pl.pallas_call(
        _rdm1_kernel,
        out_shape=jax.ShapeDtypeStruct((n, n), jnp.float32),
        grid=(1,),
        in_specs=[pl.BlockSpec((n, n), lambda i: (0, 0)),
                  pl.BlockSpec((n, k), lambda i: (0, 0)),
                  pl.BlockSpec((1, k), lambda i: (0, 0))],
        out_specs=pl.BlockSpec((n, n), lambda i: (0, 0)),
        compiler_params=pltpu.CompilerParams(dimension_semantics=("arbitrary",)),
    )(s_inv_oh, c_occ, occ_row)


# ---------------------------------------------------------------------------
# Static configuration helpers (run on concrete inputs, outside jit)
# ---------------------------------------------------------------------------
def _choose_contraction_tile(n2, requested=None):
    """Rows of the flattened (N^2, N^2) ERI streamed per grid step."""
    if requested is not None:
        tk = int(requested)
        if n2 % tk != 0 or not (tk == n2 or tk % 128 == 0):
            raise ValueError("eri_contraction_tile must divide N^2 and be a "
                             "multiple of 128 (or equal N^2)")
        return tk
    if n2 % 128 != 0:
        return n2                       # single tile; block == full array dims
    # Keep one ERI tile under ~12 MiB so two double-buffered tiles fit well
    # inside the 32 MiB default scoped-VMEM limit (and v7x's 64 MiB VMEM).
    max_rows = max(128, ((12 << 20) // (4 * n2)) // 128 * 128)
    tk = min(n2, max_rows)
    while n2 % tk != 0:
        tk -= 128
    return max(tk, 128)


def _occupied_width(mo_occ, n):
    """Static width of the occupied block fed to the rdm1 kernel.

    If the occupations are a leading prefix (standard aufbau filling, matching
    eigh's ascending eigenvalue order) only ceil(nocc/8)*8 columns are needed;
    the padded columns carry zero occupation so the result is exact.  Otherwise
    fall back to the full width (always exact).
    """
    occ = np.asarray(jax.device_get(mo_occ))
    pos = occ > 0
    nocc = int(pos.sum())
    if nocc == 0 or nocc >= n:
        return n
    prefix = bool(pos[:nocc].all()) and not bool(pos[nocc:].any())
    if not prefix:
        return n
    return min(n, max(8, ((nocc + 7) // 8) * 8))


# ---------------------------------------------------------------------------
# Jitted SCF loop (mirrors SCF.forward for xc=None, exx=False, ncore=0, no DF)
# ---------------------------------------------------------------------------
@functools.partial(jax.jit,
                   static_argnames=("alpha", "nsteps", "sc", "tk", "k_occ",
                                    "eri_bf16"))
def _scf_loop(dm0, v, t, mo_occ, s_oh, s_inv_oh, e_nuc, eri, *,
              alpha, nsteps, sc, tk, k_occ, eri_bf16):
    n = dm0.shape[-1]
    n2 = n * n
    f32 = jnp.float32

    dm = dm0.astype(f32)
    v = v.astype(f32)
    t = t.astype(f32)
    s_oh = s_oh.astype(f32)
    s_inv_oh = s_inv_oh.astype(f32)
    hc = v + t                                    # loop invariant -> hoisted
    eri2 = eri.reshape(n2, n2).astype(jnp.bfloat16 if eri_bf16 else f32)
    e_nuc_11 = jnp.reshape(e_nuc, (1, 1)).astype(f32)
    occ_row = mo_occ[:k_occ].reshape(1, k_occ).astype(f32)

    dm_old = dm
    energies = []
    for step in range(nsteps):
        # DIIS branch of the reference is unreachable for this configuration
        # (deltadm never grows) -> linear mixing always runs.
        alpha_11 = jnp.full((1, 1), alpha ** step + 0.3, dtype=f32)
        dm_mix, fprime, e_step = _scf_step_call(
            dm, dm_old, hc, s_oh, s_inv_oh, eri2, alpha_11, e_nuc_11, tk)
        dm_old = dm_mix

        if sc:
            # TODO(synk): torch.symeig (generalized symmetric eigensolver) has
            # no Pallas primitive; solved with jnp.linalg.eigh in plain JAX.
            _, c_raw = jnp.linalg.eigh(fprime)
            dm = _rdm1_call(s_inv_oh, c_raw[:, :k_occ], occ_row)
        else:
            dm = dm_mix

        energies.append(e_step.reshape(1))
        if not sc:
            break

    return jnp.concatenate(energies, axis=0), dm


def scf_forward(dm, matrices, alpha=0.8, nsteps=10, ncore=0, sc=True,
                eri_contraction_tile=None, eri_bf16=False):
    dm0 = dm[0]
    v = matrices['v'][0]
    t = matrices['t'][0]
    mo_occ = matrices['mo_occ'][0]
    s_oh = matrices['s_oh'][0]
    s_inv_oh = matrices['s_inv_oh'][0]
    e_nuc = matrices['e_nuc'][0]
    eri = matrices['eri'][0]
    _ = matrices['s'][0]           # fetched (unused) exactly like the reference

    n = dm0.shape[-1]
    n2 = n * n
    tk = _choose_contraction_tile(n2, eri_contraction_tile)
    k_occ = _occupied_width(mo_occ, n)
    _ = int(ncore / 2)             # mo_occ[:ncore] = 0 is a no-op for ncore == 0

    E, dm_out = _scf_loop(dm0, v, t, mo_occ, s_oh, s_inv_oh, e_nuc, eri,
                          alpha=float(alpha), nsteps=int(nsteps),
                          sc=bool(sc), tk=int(tk), k_occ=int(k_occ),
                          eri_bf16=bool(eri_bf16))
    return {'E': E, 'dm': dm_out, 'mo_energy': 0, 'e_ip': 0}


# ---------------------------------------------------------------------------
# Deterministic synthetic inputs + run + pure-JAX reference check
# ---------------------------------------------------------------------------
if __name__ == "__main__":
    key = jax.random.PRNGKey(0)
    N = 16          # number of AO basis functions
    NOCC = 3        # doubly-occupied orbitals
    NSTEPS = 10

    k1, k2, k3, k4, k5 = jax.random.split(key, 5)

    def sym(a):
        return 0.5 * (a + a.T)

    v = (sym(jax.random.normal(k1, (N, N))) * 0.1).astype(jnp.float32)
    t = (sym(jax.random.normal(k2, (N, N))) * 0.1).astype(jnp.float32)
    eri = (jax.random.normal(k3, (N, N, N, N)) * 0.01).astype(jnp.float32)

    s_oh = (jnp.eye(N) + sym(jax.random.normal(k4, (N, N))) * 0.01).astype(jnp.float32)
    s_inv_oh = jnp.linalg.inv(s_oh).astype(jnp.float32)
    s = (s_oh @ s_oh).astype(jnp.float32)

    mo_occ = jnp.concatenate(
        [2.0 * jnp.ones((NOCC,)), jnp.zeros((N - NOCC,))]).astype(jnp.float32)

    c0 = (jnp.eye(N) + 0.1 * jax.random.normal(k5, (N, N))).astype(jnp.float32)
    dm0 = ((c0 * mo_occ[None, :]) @ c0.T).astype(jnp.float32)

    e_nuc = jnp.array([1.5], dtype=jnp.float32)

    dm_batched = dm0[None]                        # (1, N, N), SCF strips dm[0]
    matrices = {'v': v[None], 't': t[None], 'mo_occ': mo_occ[None],
                's_oh': s_oh[None], 's_inv_oh': s_inv_oh[None],
                'e_nuc': e_nuc, 's': s[None], 'eri': eri[None]}

    # tile = 128 -> two ERI contraction tiles, exercising the pipelined grid.
    results = scf_forward(dm_batched, matrices, alpha=0.8, nsteps=NSTEPS,
                          eri_contraction_tile=128)
    jax.block_until_ready(results['E'])
    jax.block_until_ready(results['dm'])

    assert results['E'].shape == (NSTEPS,)
    assert results['dm'].shape == (N, N)
    assert bool(jnp.all(jnp.isfinite(results['E'])))
    assert bool(jnp.all(jnp.isfinite(results['dm'])))

    # Pure-JAX reference of the same forward pass.
    def reference(dm_in):
        hc = v + t
        dm_c, dm_old = dm_in, dm_in
        E = []
        for step in range(NSTEPS):
            a = 0.8 ** step + 0.3
            dm_c = a * dm_c + (1.0 - a) * dm_old
            dm_old = dm_c
            J = jnp.einsum('ij,ijkl->kl', dm_c, eri)
            f = hc + J
            fprime = s_oh @ f @ s_inv_oh
            _, c = jnp.linalg.eigh(fprime)
            c = s_inv_oh @ c
            E.append(jnp.sum(dm_c * hc) + 0.5 * jnp.sum(dm_c * J) + e_nuc[0])
            dm_c = (c * mo_occ[None, :]) @ c.T
        return jnp.stack(E), dm_c

    e_ref, dm_ref = reference(dm0)
    # Step-0 energy involves no eigensolver output -> tight agreement expected.
    assert bool(jnp.allclose(results['E'][0], e_ref[0], rtol=1e-4, atol=1e-4))
    # Full trajectory: loose tolerance absorbs f32 eigh jitter over 10 steps.
    assert bool(jnp.allclose(results['E'], e_ref, rtol=1e-1, atol=1e-1))
    assert bool(jnp.allclose(results['dm'], dm_ref, rtol=1e-1, atol=1e-1))

    print("KERNEL_OK")
</pallas_src>

<mosaic_0001>
module attributes {stable_mosaic.version = 11 : i64} {
  func.func @_scf_step_kernel(%arg0: i32, %arg1: memref<1x1xf32, #tpu.memory_space<smem>>, %arg2: memref<1x1xf32, #tpu.memory_space<smem>>, %arg3: memref<1x128xf32, #tpu.memory_space<vmem>>, %arg4: memref<1x128xf32, #tpu.memory_space<vmem>>, %arg5: memref<16x16xf32, #tpu.memory_space<vmem>>, %arg6: memref<16x16xf32, #tpu.memory_space<vmem>>, %arg7: memref<16x16xf32, #tpu.memory_space<vmem>>, %arg8: memref<16x16xf32, #tpu.memory_space<vmem>>, %arg9: memref<16x16xf32, #tpu.memory_space<vmem>>, %arg10: memref<128x256xf32, #tpu.memory_space<vmem>>, %arg11: memref<16x16xf32, #tpu.memory_space<vmem>>, %arg12: memref<16x16xf32, #tpu.memory_space<vmem>>, %arg13: memref<1x1xf32, #tpu.memory_space<smem>>, %arg14: memref<1x256xf32, #tpu.memory_space<vmem>>, %arg15: memref<16x16xf32, #tpu.memory_space<vmem>>) attributes {dimension_semantics = [#tpu.dimension_semantics<arbitrary>], iteration_bounds = array<i64: 2>, scalar_prefetch = 0 : i64, scratch_operands = 2 : i64, tpu.core_type = #tpu.core_type<tc>, window_params = [{transform_indices = @transform_0, window_bounds = array<i64: 1, 1>}, {transform_indices = @transform_1, window_bounds = array<i64: 1, 1>}, {transform_indices = @transform_2, window_bounds = array<i64: 1, 128>}, {transform_indices = @transform_3, window_bounds = array<i64: 1, 128>}, {pipeline_mode = #tpu.pipeline_mode<synchronous>, transform_indices = @transform_4, window_bounds = array<i64: 16, 16>}, {pipeline_mode = #tpu.pipeline_mode<synchronous>, transform_indices = @transform_5, window_bounds = array<i64: 16, 16>}, {pipeline_mode = #tpu.pipeline_mode<synchronous>, transform_indices = @transform_6, window_bounds = array<i64: 16, 16>}, {pipeline_mode = #tpu.pipeline_mode<synchronous>, transform_indices = @transform_7, window_bounds = array<i64: 16, 16>}, {pipeline_mode = #tpu.pipeline_mode<synchronous>, transform_indices = @transform_8, window_bounds = array<i64: 16, 16>}, {transform_indices = @transform_9, window_bounds = array<i64: 128, 256>}, {pipeline_mode = #tpu.pipeline_mode<synchronous>, transform_indices = @transform_10, window_bounds = array<i64: 16, 16>}, {pipeline_mode = #tpu.pipeline_mode<synchronous>, transform_indices = @transform_11, window_bounds = array<i64: 16, 16>}, {transform_indices = @transform_12, window_bounds = array<i64: 1, 1>}]} {
    %c0 = arith.constant 0 : index
    %c0_0 = arith.constant 0 : index
    %0 = memref.load %arg1[%c0, %c0_0] : memref<1x1xf32, #tpu.memory_space<smem>>
    %c0_1 = arith.constant 0 : index
    %c0_2 = arith.constant 0 : index
    %1 = vector.load %arg3[%c0_1, %c0_2] : memref<1x128xf32, #tpu.memory_space<vmem>>, vector<1x128xf32>
    %2 = vector.broadcast %0 : f32 to vector<1x128xf32>
    %3 = arith.mulf %2, %1 : vector<1x128xf32>
    %cst = arith.constant 1.000000e+00 : f32
    %4 = arith.subf %cst, %0 : f32
    %c0_3 = arith.constant 0 : index
    %c0_4 = arith.constant 0 : index
    %5 = vector.load %arg4[%c0_3, %c0_4] : memref<1x128xf32, #tpu.memory_space<vmem>>, vector<1x128xf32>
    %6 = vector.broadcast %4 : f32 to vector<1x128xf32>
    %7 = arith.mulf %6, %5 : vector<1x128xf32>
    %8 = arith.addf %3, %7 : vector<1x128xf32>
    %c0_5 = arith.constant 0 : index
    %c0_6 = arith.constant 0 : index
    %9 = vector.load %arg10[%c0_5, %c0_6] : memref<128x256xf32, #tpu.memory_space<vmem>>, vector<128x256xf32>
    %cst_7 = arith.constant dense<0.000000e+00> : vector<1x256xf32>
    %10 = tpu.matmul %8, %9, %cst_7 {dimension_numbers = #tpu.dot_dimension_numbers<[1], [0], [0], [1], [0, 0, 1, 1], [], []>} : vector<1x128xf32>, vector<128x256xf32>, vector<1x256xf32> -> vector<1x256xf32>
    %c0_i32 = arith.constant 0 : i32
    %11 = arith.cmpi eq, %arg0, %c0_i32 : i32
    %12 = arith.extui %11 : i1 to i32
    %c0_i32_8 = arith.constant 0 : i32
    %13 = arith.cmpi ne, %12, %c0_i32_8 : i32
    scf.if %13 {
      %cst_14 = arith.constant 0.000000e+00 : f32
      %20 = vector.broadcast %cst_14 : f32 to vector<1x256xf32>
      %c0_15 = arith.constant 0 : index
      %c0_16 = arith.constant 0 : index
      %21 = vector.load %arg14[%c0_15, %c0_16] : memref<1x256xf32, #tpu.memory_space<vmem>>, vector<1x256xf32>
      tpu.vector_store %arg14[%c0_15, %c0_16], %20 {strides = array<i32>} : memref<1x256xf32, #tpu.memory_space<vmem>>, vector<1x256xf32>,
    } else {
    }
    %c0_9 = arith.constant 0 : index
    %c0_10 = arith.constant 0 : index
    %14 = vector.load %arg14[%c0_9, %c0_10] : memref<1x256xf32, #tpu.memory_space<vmem>>, vector<1x256xf32>
    %15 = arith.addf %14, %10 : vector<1x256xf32>
    %c0_11 = arith.constant 0 : index
    %c0_12 = arith.constant 0 : index
    %16 = vector.load %arg14[%c0_11, %c0_12] : memref<1x256xf32, #tpu.memory_space<vmem>>, vector<1x256xf32>
    tpu.vector_store %arg14[%c0_11, %c0_12], %15 {strides = array<i32>} : memref<1x256xf32, #tpu.memory_space<vmem>>, vector<1x256xf32>,
    %c1_i32 = arith.constant 1 : i32
    %17 = arith.cmpi eq, %arg0, %c1_i32 : i32
    %18 = arith.extui %17 : i1 to i32
    %c0_i32_13 = arith.constant 0 : i32
    %19 = arith.cmpi ne, %18, %c0_i32_13 : i32
    scf.if %19 {
      %c0_14 = arith.constant 0 : index
      %c0_15 = arith.constant 0 : index
      %20 = vector.load %arg14[%c0_14, %c0_15] : memref<1x256xf32, #tpu.memory_space<vmem>>, vector<1x16xf32>
      %c0_16 = arith.constant 0 : index
      %c0_17 = arith.constant 0 : index
      %21 = vector.load %arg15[%c0_16, %c0_17] : memref<16x16xf32, #tpu.memory_space<vmem>>, vector<1x16xf32>
      tpu.vector_store %arg15[%c0_16, %c0_17], %20 {strides = array<i32>} : memref<16x16xf32, #tpu.memory_space<vmem>>, vector<1x16xf32>,
      %c0_18 = arith.constant 0 : index
      %c16 = arith.constant 16 : index
      %22 = vector.load %arg14[%c0_18, %c16] : memref<1x256xf32, #tpu.memory_space<vmem>>, vector<1x16xf32>
      %c1 = arith.constant 1 : index
      %c0_19 = arith.constant 0 : index
      %23 = vector.load %arg15[%c1, %c0_19] : memref<16x16xf32, #tpu.memory_space<vmem>>, vector<1x16xf32>
      tpu.vector_store %arg15[%c1, %c0_19], %22 {strides = array<i32>} : memref<16x16xf32, #tpu.memory_space<vmem>>, vector<1x16xf32>,
      %c0_20 = arith.constant 0 : index
      %c32 = arith.constant 32 : index
      %24 = vector.load %arg14[%c0_20, %c32] : memref<1x256xf32, #tpu.memory_space<vmem>>, vector<1x16xf32>
      %c2 = arith.constant 2 : index
      %c0_21 = arith.constant 0 : index
      %25 = vector.load %arg15[%c2, %c0_21] : memref<16x16xf32, #tpu.memory_space<vmem>>, vector<1x16xf32>
      tpu.vector_store %arg15[%c2, %c0_21], %24 {strides = array<i32>} : memref<16x16xf32, #tpu.memory_space<vmem>>, vector<1x16xf32>,
      %c0_22 = arith.constant 0 : index
      %c48 = arith.constant 48 : index
      %26 = vector.load %arg14[%c0_22, %c48] : memref<1x256xf32, #tpu.memory_space<vmem>>, vector<1x16xf32>
      %c3 = arith.constant 3 : index
      %c0_23 = arith.constant 0 : index
      %27 = vector.load %arg15[%c3, %c0_23] : memref<16x16xf32, #tpu.memory_space<vmem>>, vector<1x16xf32>
      tpu.vector_store %arg15[%c3, %c0_23], %26 {strides = array<i32>} : memref<16x16xf32, #tpu.memory_space<vmem>>, vector<1x16xf32>,
      %c0_24 = arith.constant 0 : index
      %c64 = arith.constant 64 : index
      %28 = vector.load %arg14[%c0_24, %c64] : memref<1x256xf32, #tpu.memory_space<vmem>>, vector<1x16xf32>
      %c4 = arith.constant 4 : index
      %c0_25 = arith.constant 0 : index
      %29 = vector.load %arg15[%c4, %c0_25] : memref<16x16xf32, #tpu.memory_space<vmem>>, vector<1x16xf32>
      tpu.vector_store %arg15[%c4, %c0_25], %28 {strides = array<i32>} : memref<16x16xf32, #tpu.memory_space<vmem>>, vector<1x16xf32>,
      %c0_26 = arith.constant 0 : index
      %c80 = arith.constant 80 : index
      %30 = vector.load %arg14[%c0_26, %c80] : memref<1x256xf32, #tpu.memory_space<vmem>>, vector<1x16xf32>
      %c5 = arith.constant 5 : index
      %c0_27 = arith.constant 0 : index
      %31 = vector.load %arg15[%c5, %c0_27] : memref<16x16xf32, #tpu.memory_space<vmem>>, vector<1x16xf32>
      tpu.vector_store %arg15[%c5, %c0_27], %30 {strides = array<i32>} : memref<16x16xf32, #tpu.memory_space<vmem>>, vector<1x16xf32>,
      %c0_28 = arith.constant 0 : index
      %c96 = arith.constant 96 : index
      %32 = vector.load %arg14[%c0_28, %c96] : memref<1x256xf32, #tpu.memory_space<vmem>>, vector<1x16xf32>
      %c6 = arith.constant 6 : index
      %c0_29 = arith.constant 0 : index
      %33 = vector.load %arg15[%c6, %c0_29] : memref<16x16xf32, #tpu.memory_space<vmem>>, vector<1x16xf32>
      tpu.vector_store %arg15[%c6, %c0_29], %32 {strides = array<i32>} : memref<16x16xf32, #tpu.memory_space<vmem>>, vector<1x16xf32>,
      %c0_30 = arith.constant 0 : index
      %c112 = arith.constant 112 : index
      %34 = vector.load %arg14[%c0_30, %c112] : memref<1x256xf32, #tpu.memory_space<vmem>>, vector<1x16xf32>
      %c7 = arith.constant 7 : index
      %c0_31 = arith.constant 0 : index
      %35 = vector.load %arg15[%c7, %c0_31] : memref<16x16xf32, #tpu.memory_space<vmem>>, vector<1x16xf32>
      tpu.vector_store %arg15[%c7, %c0_31], %34 {strides = array<i32>} : memref<16x16xf32, #tpu.memory_space<vmem>>, vector<1x16xf32>,
      %c0_32 = arith.constant 0 : index
      %c128 = arith.constant 128 : index
      %36 = vector.load %arg14[%c0_32, %c128] : memref<1x256xf32, #tpu.memory_space<vmem>>, vector<1x16xf32>
      %c8 = arith.constant 8 : index
      %c0_33 = arith.constant 0 : index
      %37 = vector.load %arg15[%c8, %c0_33] : memref<16x16xf32, #tpu.memory_space<vmem>>, vector<1x16xf32>
      tpu.vector_store %arg15[%c8, %c0_33], %36 {strides = array<i32>} : memref<16x16xf32, #tpu.memory_space<vmem>>, vector<1x16xf32>,
      %c0_34 = arith.constant 0 : index
      %c144 = arith.constant 144 : index
      %38 = vector.load %arg14[%c0_34, %c144] : memref<1x256xf32, #tpu.memory_space<vmem>>, vector<1x16xf32>
      %c9 = arith.constant 9 : index
      %c0_35 = arith.constant 0 : index
      %39 = vector.load %arg15[%c9, %c0_35] : memref<16x16xf32, #tpu.memory_space<vmem>>, vector<1x16xf32>
      tpu.vector_store %arg15[%c9, %c0_35], %38 {strides = array<i32>} : memref<16x16xf32, #tpu.memory_space<vmem>>, vector<1x16xf32>,
      %c0_36 = arith.constant 0 : index
      %c160 = arith.constant 160 : index
      %40 = vector.load %arg14[%c0_36, %c160] : memref<1x256xf32, #tpu.memory_space<vmem>>, vector<1x16xf32>
      %c10 = arith.constant 10 : index
      %c0_37 = arith.constant 0 : index
      %41 = vector.load %arg15[%c10, %c0_37] : memref<16x16xf32, #tpu.memory_space<vmem>>, vector<1x16xf32>
      tpu.vector_store %arg15[%c10, %c0_37], %40 {strides = array<i32>} : memref<16x16xf32, #tpu.memory_space<vmem>>, vector<1x16xf32>,
      %c0_38 = arith.constant 0 : index
      %c176 = arith.constant 176 : index
      %42 = vector.load %arg14[%c0_38, %c176] : memref<1x256xf32, #tpu.memory_space<vmem>>, vector<1x16xf32>
      %c11 = arith.constant 11 : index
      %c0_39 = arith.constant 0 : index
      %43 = vector.load %arg15[%c11, %c0_39] : memref<16x16xf32, #tpu.memory_space<vmem>>, vector<1x16xf32>
      tpu.vector_store %arg15[%c11, %c0_39], %42 {strides = array<i32>} : memref<16x16xf32, #tpu.memory_space<vmem>>, vector<1x16xf32>,
      %c0_40 = arith.constant 0 : index
      %c192 = arith.constant 192 : index
      %44 = vector.load %arg14[%c0_40, %c192] : memref<1x256xf32, #tpu.memory_space<vmem>>, vector<1x16xf32>
      %c12 = arith.constant 12 : index
      %c0_41 = arith.constant 0 : index
      %45 = vector.load %arg15[%c12, %c0_41] : memref<16x16xf32, #tpu.memory_space<vmem>>, vector<1x16xf32>
      tpu.vector_store %arg15[%c12, %c0_41], %44 {strides = array<i32>} : memref<16x16xf32, #tpu.memory_space<vmem>>, vector<1x16xf32>,
      %c0_42 = arith.constant 0 : index
      %c208 = arith.constant 208 : index
      %46 = vector.load %arg14[%c0_42, %c208] : memref<1x256xf32, #tpu.memory_space<vmem>>, vector<1x16xf32>
      %c13 = arith.constant 13 : index
      %c0_43 = arith.constant 0 : index
      %47 = vector.load %arg15[%c13, %c0_43] : memref<16x16xf32, #tpu.memory_space<vmem>>, vector<1x16xf32>
      tpu.vector_store %arg15[%c13, %c0_43], %46 {strides = array<i32>} : memref<16x16xf32, #tpu.memory_space<vmem>>, vector<1x16xf32>,
      %c0_44 = arith.constant 0 : index
      %c224 = arith.constant 224 : index
      %48 = vector.load %arg14[%c0_44, %c224] : memref<1x256xf32, #tpu.memory_space<vmem>>, vector<1x16xf32>
      %c14 = arith.constant 14 : index
      %c0_45 = arith.constant 0 : index
      %49 = vector.load %arg15[%c14, %c0_45] : memref<16x16xf32, #tpu.memory_space<vmem>>, vector<1x16xf32>
      tpu.vector_store %arg15[%c14, %c0_45], %48 {strides = array<i32>} : memref<16x16xf32, #tpu.memory_space<vmem>>, vector<1x16xf32>,
      %c0_46 = arith.constant 0 : index
      %c240 = arith.constant 240 : index
      %50 = vector.load %arg14[%c0_46, %c240] : memref<1x256xf32, #tpu.memory_space<vmem>>, vector<1x16xf32>
      %c15 = arith.constant 15 : index
      %c0_47 = arith.constant 0 : index
      %51 = vector.load %arg15[%c15, %c0_47] : memref<16x16xf32, #tpu.memory_space<vmem>>, vector<1x16xf32>
      tpu.vector_store %arg15[%c15, %c0_47], %50 {strides = array<i32>} : memref<16x16xf32, #tpu.memory_space<vmem>>, vector<1x16xf32>,
      %c0_48 = arith.constant 0 : index
      %c0_49 = arith.constant 0 : index
      %52 = vector.load %arg5[%c0_48, %c0_49] : memref<16x16xf32, #tpu.memory_space<vmem>>, vector<16x16xf32>
      %53 = vector.broadcast %0 : f32 to vector<16x16xf32>
      %54 = arith.mulf %53, %52 : vector<16x16xf32>
      %cst_50 = arith.constant 1.000000e+00 : f32
      %55 = arith.subf %cst_50, %0 : f32
      %c0_51 = arith.constant 0 : index
      %c0_52 = arith.constant 0 : index
      %56 = vector.load %arg6[%c0_51, %c0_52] : memref<16x16xf32, #tpu.memory_space<vmem>>, vector<16x16xf32>
      %57 = vector.broadcast %55 : f32 to vector<16x16xf32>
      %58 = arith.mulf %57, %56 : vector<16x16xf32>
      %59 = arith.addf %54, %58 : vector<16x16xf32>
      %c0_53 = arith.constant 0 : index
      %c0_54 = arith.constant 0 : index
      %60 = vector.load %arg11[%c0_53, %c0_54] : memref<16x16xf32, #tpu.memory_space<vmem>>, vector<16x16xf32>
      tpu.vector_store %arg11[%c0_53, %c0_54], %59 {strides = array<i32>} : memref<16x16xf32, #tpu.memory_space<vmem>>, vector<16x16xf32>,
      %c0_55 = arith.constant 0 : index
      %c0_56 = arith.constant 0 : index
      %61 = vector.load %arg15[%c0_55, %c0_56] : memref<16x16xf32, #tpu.memory_space<vmem>>, vector<16x16xf32>
      %c0_57 = arith.constant 0 : index
      %c0_58 = arith.constant 0 : index
      %62 = vector.load %arg7[%c0_57, %c0_58] : memref<16x16xf32, #tpu.memory_space<vmem>>, vector<16x16xf32>
      %63 = arith.addf %62, %61 : vector<16x16xf32>
      %c0_59 = arith.constant 0 : index
      %c0_60 = arith.constant 0 : index
      %64 = vector.load %arg8[%c0_59, %c0_60] : memref<16x16xf32, #tpu.memory_space<vmem>>, vector<16x16xf32>
      %c0_61 = arith.constant 0 : index
      %c0_62 = arith.constant 0 : index
      %65 = vector.load %arg9[%c0_61, %c0_62] : memref<16x16xf32, #tpu.memory_space<vmem>>, vector<16x16xf32>
      %cst_63 = arith.constant dense<0.000000e+00> : vector<16x16xf32>
      %66 = tpu.matmul %63, %65, %cst_63 {dimension_numbers = #tpu.dot_dimension_numbers<[1], [0], [0], [1], [0, 0, 1, 1], [], []>} : vector<16x16xf32>, vector<16x16xf32>, vector<16x16xf32> -> vector<16x16xf32>
      %cst_64 = arith.constant dense<0.000000e+00> : vector<16x16xf32>
      %67 = tpu.matmul %64, %66, %cst_64 {dimension_numbers = #tpu.dot_dimension_numbers<[1], [0], [0], [1], [0, 0, 1, 1], [], []>} : vector<16x16xf32>, vector<16x16xf32>, vector<16x16xf32> -> vector<16x16xf32>
      %c0_65 = arith.constant 0 : index
      %c0_66 = arith.constant 0 : index
      %68 = vector.load %arg12[%c0_65, %c0_66] : memref<16x16xf32, #tpu.memory_space<vmem>>, vector<16x16xf32>
      tpu.vector_store %arg12[%c0_65, %c0_66], %67 {strides = array<i32>} : memref<16x16xf32, #tpu.memory_space<vmem>>, vector<16x16xf32>,
      %69 = arith.mulf %59, %62 : vector<16x16xf32>
      %70 = vector.shape_cast %69 : vector<16x16xf32> to vector<1x16x16xf32>
      %cst_67 = arith.constant dense<0.000000e+00> : vector<1xf32>
      %71 = vector.multi_reduction <add>, %70, %cst_67 [1, 2] : vector<1x16x16xf32> to vector<1xf32>
      %72 = vector.shape_cast %71 : vector<1xf32> to vector<1x1x1xf32>
      %73 = vector.extract %72[0, 0, 0] : f32 from vector<1x1x1xf32>
      %74 = arith.mulf %59, %61 : vector<16x16xf32>
      %75 = vector.shape_cast %74 : vector<16x16xf32> to vector<1x16x16xf32>
      %cst_68 = arith.constant dense<0.000000e+00> : vector<1xf32>
      %76 = vector.multi_reduction <add>, %75, %cst_68 [1, 2] : vector<1x16x16xf32> to vector<1xf32>
      %77 = vector.shape_cast %76 : vector<1xf32> to vector<1x1x1xf32>
      %78 = vector.extract %77[0, 0, 0] : f32 from vector<1x1x1xf32>
      %cst_69 = arith.constant 5.000000e-01 : f32
      %79 = arith.mulf %cst_69, %78 : f32
      %80 = arith.addf %73, %79 : f32
      %c0_70 = arith.constant 0 : index
      %c0_71 = arith.constant 0 : index
      %81 = memref.load %arg2[%c0_70, %c0_71] : memref<1x1xf32, #tpu.memory_space<smem>>
      %82 = arith.addf %80, %81 : f32
      %c0_72 = arith.constant 0 : index
      %c0_73 = arith.constant 0 : index
      %83 = memref.load %arg13[%c0_72, %c0_73] : memref<1x1xf32, #tpu.memory_space<smem>>
      memref.store %82, %arg13[%c0_72, %c0_73] : memref<1x1xf32, #tpu.memory_space<smem>>
    } else {
    }
    return
  }
  func.func @transform_0(%arg0: i32) -> (i32, i32) {
    %c0_i32 = arith.constant 0 : i32
    %c0_i32_0 = arith.constant 0 : i32
    %c0_i32_1 = arith.constant 0 : i32
    return %c0_i32, %c0_i32_0 : i32, i32
  }
  func.func @transform_1(%arg0: i32) -> (i32, i32) {
    %c0_i32 = arith.constant 0 : i32
    %c0_i32_0 = arith.constant 0 : i32
    %c0_i32_1 = arith.constant 0 : i32
    return %c0_i32, %c0_i32_0 : i32, i32
  }
  func.func @transform_2(%arg0: i32) -> (i32, i32) {
    %c0_i32 = arith.constant 0 : i32
    %c0_i32_0 = arith.constant 0 : i32
    return %c0_i32, %arg0 : i32, i32
  }
  func.func @transform_3(%arg0: i32) -> (i32, i32) {
    %c0_i32 = arith.constant 0 : i32
    %c0_i32_0 = arith.constant 0 : i32
    return %c0_i32, %arg0 : i32, i32
  }
  func.func @transform_4(%arg0: i32) -> (i32, i32) {
    %c0_i32 = arith.constant 0 : i32
    %c0_i32_0 = arith.constant 0 : i32
    %c0_i32_1 = arith.constant 0 : i32
    return %c0_i32, %c0_i32_0 : i32, i32
  }
  func.func @transform_5(%arg0: i32) -> (i32, i32) {
    %c0_i32 = arith.constant 0 : i32
    %c0_i32_0 = arith.constant 0 : i32
    %c0_i32_1 = arith.constant 0 : i32
    return %c0_i32, %c0_i32_0 : i32, i32
  }
  func.func @transform_6(%arg0: i32) -> (i32, i32) {
    %c0_i32 = arith.constant 0 : i32
    %c0_i32_0 = arith.constant 0 : i32
    %c0_i32_1 = arith.constant 0 : i32
    return %c0_i32, %c0_i32_0 : i32, i32
  }
  func.func @transform_7(%arg0: i32) -> (i32, i32) {
    %c0_i32 = arith.constant 0 : i32
    %c0_i32_0 = arith.constant 0 : i32
    %c0_i32_1 = arith.constant 0 : i32
    return %c0_i32, %c0_i32_0 : i32, i32
  }
  func.func @transform_8(%arg0: i32) -> (i32, i32) {
    %c0_i32 = arith.constant 0 : i32
    %c0_i32_0 = arith.constant 0 : i32
    %c0_i32_1 = arith.constant 0 : i32
    return %c0_i32, %c0_i32_0 : i32, i32
  }
  func.func @transform_9(%arg0: i32) -> (i32, i32) {
    %c0_i32 = arith.constant 0 : i32
    %c0_i32_0 = arith.constant 0 : i32
    return %arg0, %c0_i32 : i32, i32
  }
  func.func @transform_10(%arg0: i32) -> (i32, i32) {
    %c0_i32 = arith.constant 0 : i32
    %c0_i32_0 = arith.constant 0 : i32
    %c0_i32_1 = arith.constant 0 : i32
    return %c0_i32, %c0_i32_0 : i32, i32
  }
  func.func @transform_11(%arg0: i32) -> (i32, i32) {
    %c0_i32 = arith.constant 0 : i32
    %c0_i32_0 = arith.constant 0 : i32
    %c0_i32_1 = arith.constant 0 : i32
    return %c0_i32, %c0_i32_0 : i32, i32
  }
  func.func @transform_12(%arg0: i32) -> (i32, i32) {
    %c0_i32 = arith.constant 0 : i32
    %c0_i32_0 = arith.constant 0 : i32
    %c0_i32_1 = arith.constant 0 : i32
    return %c0_i32, %c0_i32_0 : i32, i32
  }
}

module attributes {stable_mosaic.version = 11 : i64} {
  func.func @_rdm1_kernel(%arg0: i32, %arg1: memref<16x16xf32, #tpu.memory_space<vmem>>, %arg2: memref<16x8xf32, #tpu.memory_space<vmem>>, %arg3: memref<1x8xf32, #tpu.memory_space<vmem>>, %arg4: memref<16x16xf32, #tpu.memory_space<vmem>>) attributes {dimension_semantics = [#tpu.dimension_semantics<arbitrary>], iteration_bounds = array<i64: 1>, scalar_prefetch = 0 : i64, scratch_operands = 0 : i64, tpu.core_type = #tpu.core_type<tc>, window_params = [{pipeline_mode = #tpu.pipeline_mode<synchronous>, transform_indices = @transform_0, window_bounds = array<i64: 16, 16>}, {pipeline_mode = #tpu.pipeline_mode<synchronous>, transform_indices = @transform_1, window_bounds = array<i64: 16, 8>}, {pipeline_mode = #tpu.pipeline_mode<synchronous>, transform_indices = @transform_2, window_bounds = array<i64: 1, 8>}, {pipeline_mode = #tpu.pipeline_mode<synchronous>, transform_indices = @transform_3, window_bounds = array<i64: 16, 16>}]} {
    %c0 = arith.constant 0 : index
    %c0_0 = arith.constant 0 : index
    %0 = vector.load %arg1[%c0, %c0_0] : memref<16x16xf32, #tpu.memory_space<vmem>>, vector<16x16xf32>
    %c0_1 = arith.constant 0 : index
    %c0_2 = arith.constant 0 : index
    %1 = vector.load %arg2[%c0_1, %c0_2] : memref<16x8xf32, #tpu.memory_space<vmem>>, vector<16x8xf32>
    %cst = arith.constant dense<0.000000e+00> : vector<16x8xf32>
    %2 = tpu.matmul %0, %1, %cst {dimension_numbers = #tpu.dot_dimension_numbers<[1], [0], [0], [1], [0, 0, 1, 1], [], []>} : vector<16x16xf32>, vector<16x8xf32>, vector<16x8xf32> -> vector<16x8xf32>
    %c0_3 = arith.constant 0 : index
    %c0_4 = arith.constant 0 : index
    %3 = vector.load %arg3[%c0_3, %c0_4] : memref<1x8xf32, #tpu.memory_space<vmem>>, vector<1x8xf32>
    %4 = vector.broadcast %3 : vector<1x8xf32> to vector<16x8xf32>
    %5 = arith.mulf %2, %4 : vector<16x8xf32>
    %cst_5 = arith.constant dense<0.000000e+00> : vector<16x16xf32>
    %6 = tpu.matmul %5, %2, %cst_5 {dimension_numbers = #tpu.dot_dimension_numbers<[1], [1], [0], [0], [0, 0, 1, 0], [], []>} : vector<16x8xf32>, vector<16x8xf32>, vector<16x16xf32> -> vector<16x16xf32>
    %c0_6 = arith.constant 0 : index
    %c0_7 = arith.constant 0 : index
    %7 = vector.load %arg4[%c0_6, %c0_7] : memref<16x16xf32, #tpu.memory_space<vmem>>, vector<16x16xf32>
    tpu.vector_store %arg4[%c0_6, %c0_7], %6 {strides = array<i32>} : memref<16x16xf32, #tpu.memory_space<vmem>>, vector<16x16xf32>,
    return
  }
  func.func @transform_0(%arg0: i32) -> (i32, i32) {
    %c0_i32 = arith.constant 0 : i32
    %c0_i32_0 = arith.constant 0 : i32
    %c0_i32_1 = arith.constant 0 : i32
    return %c0_i32, %c0_i32_0 : i32, i32
  }
  func.func @transform_1(%arg0: i32) -> (i32, i32) {
    %c0_i32 = arith.constant 0 : i32
    %c0_i32_0 = arith.constant 0 : i32
    %c0_i32_1 = arith.constant 0 : i32
    return %c0_i32, %c0_i32_0 : i32, i32
  }
  func.func @transform_2(%arg0: i32) -> (i32, i32) {
    %c0_i32 = arith.constant 0 : i32
    %c0_i32_0 = arith.constant 0 : i32
    %c0_i32_1 = arith.constant 0 : i32
    return %c0_i32, %c0_i32_0 : i32, i32
  }
  func.func @transform_3(%arg0: i32) -> (i32, i32) {
    %c0_i32 = arith.constant 0 : i32
    %c0_i32_0 = arith.constant 0 : i32
    %c0_i32_1 = arith.constant 0 : i32
    return %c0_i32, %c0_i32_0 : i32, i32
  }
}

module attributes {stable_mosaic.version = 11 : i64} {
  func.func @_scf_step_kernel(%arg0: i32, %arg1: memref<1x1xf32, #tpu.memory_space<smem>>, %arg2: memref<1x1xf32, #tpu.memory_space<smem>>, %arg3: memref<1x128xf32, #tpu.memory_space<vmem>>, %arg4: memref<1x128xf32, #tpu.memory_space<vmem>>, %arg5: memref<16x16xf32, #tpu.memory_space<vmem>>, %arg6: memref<16x16xf32, #tpu.memory_space<vmem>>, %arg7: memref<16x16xf32, #tpu.memory_space<vmem>>, %arg8: memref<16x16xf32, #tpu.memory_space<vmem>>, %arg9: memref<16x16xf32, #tpu.memory_space<vmem>>, %arg10: memref<128x256xf32, #tpu.memory_space<vmem>>, %arg11: memref<16x16xf32, #tpu.memory_space<vmem>>, %arg12: memref<16x16xf32, #tpu.memory_space<vmem>>, %arg13: memref<1x1xf32, #tpu.memory_space<smem>>, %arg14: memref<1x256xf32, #tpu.memory_space<vmem>>, %arg15: memref<16x16xf32, #tpu.memory_space<vmem>>) attributes {dimension_semantics = [#tpu.dimension_semantics<arbitrary>], iteration_bounds = array<i64: 2>, scalar_prefetch = 0 : i64, scratch_operands = 2 : i64, tpu.core_type = #tpu.core_type<tc>, window_params = [{transform_indices = @transform_0, window_bounds = array<i64: 1, 1>}, {transform_indices = @transform_1, window_bounds = array<i64: 1, 1>}, {transform_indices = @transform_2, window_bounds = array<i64: 1, 128>}, {transform_indices = @transform_3, window_bounds = array<i64: 1, 128>}, {pipeline_mode = #tpu.pipeline_mode<synchronous>, transform_indices = @transform_4, window_bounds = array<i64: 16, 16>}, {pipeline_mode = #tpu.pipeline_mode<synchronous>, transform_indices = @transform_5, window_bounds = array<i64: 16, 16>}, {pipeline_mode = #tpu.pipeline_mode<synchronous>, transform_indices = @transform_6, window_bounds = array<i64: 16, 16>}, {pipeline_mode = #tpu.pipeline_mode<synchronous>, transform_indices = @transform_7, window_bounds = array<i64: 16, 16>}, {pipeline_mode = #tpu.pipeline_mode<synchronous>, transform_indices = @transform_8, window_bounds = array<i64: 16, 16>}, {transform_indices = @transform_9, window_bounds = array<i64: 128, 256>}, {pipeline_mode = #tpu.pipeline_mode<synchronous>, transform_indices = @transform_10, window_bounds = array<i64: 16, 16>}, {pipeline_mode = #tpu.pipeline_mode<synchronous>, transform_indices = @transform_11, window_bounds = array<i64: 16, 16>}, {transform_indices = @transform_12, window_bounds = array<i64: 1, 1>}]} {
    %c0 = arith.constant 0 : index
    %c0_0 = arith.constant 0 : index
    %0 = memref.load %arg1[%c0, %c0_0] : memref<1x1xf32, #tpu.memory_space<smem>>
    %c0_1 = arith.constant 0 : index
    %c0_2 = arith.constant 0 : index
    %1 = vector.load %arg3[%c0_1, %c0_2] : memref<1x128xf32, #tpu.memory_space<vmem>>, vector<1x128xf32>
    %2 = vector.broadcast %0 : f32 to vector<1x128xf32>
    %3 = arith.mulf %2, %1 : vector<1x128xf32>
    %cst = arith.constant 1.000000e+00 : f32
    %4 = arith.subf %cst, %0 : f32
    %c0_3 = arith.constant 0 : index
    %c0_4 = arith.constant 0 : index
    %5 = vector.load %arg4[%c0_3, %c0_4] : memref<1x128xf32, #tpu.memory_space<vmem>>, vector<1x128xf32>
    %6 = vector.broadcast %4 : f32 to vector<1x128xf32>
    %7 = arith.mulf %6, %5 : vector<1x128xf32>
    %8 = arith.addf %3, %7 : vector<1x128xf32>
    %c0_5 = arith.constant 0 : index
    %c0_6 = arith.constant 0 : index
    %9 = vector.load %arg10[%c0_5, %c0_6] : memref<128x256xf32, #tpu.memory_space<vmem>>, vector<128x256xf32>
    %cst_7 = arith.constant dense<0.000000e+00> : vector<1x256xf32>
    %10 = tpu.matmul %8, %9, %cst_7 {dimension_numbers = #tpu.dot_dimension_numbers<[1], [0], [0], [1], [0, 0, 1, 1], [], []>} : vector<1x128xf32>, vector<128x256xf32>, vector<1x256xf32> -> vector<1x256xf32>
    %c0_i32 = arith.constant 0 : i32
    %11 = arith.cmpi eq, %arg0, %c0_i32 : i32
    %12 = arith.extui %11 : i1 to i32
    %c0_i32_8 = arith.constant 0 : i32
    %13 = arith.cmpi ne, %12, %c0_i32_8 : i32
    scf.if %13 {
      %cst_14 = arith.constant 0.000000e+00 : f32
      %20 = vector.broadcast %cst_14 : f32 to vector<1x256xf32>
      %c0_15 = arith.constant 0 : index
      %c0_16 = arith.constant 0 : index
      %21 = vector.load %arg14[%c0_15, %c0_16] : memref<1x256xf32, #tpu.memory_space<vmem>>, vector<1x256xf32>
      tpu.vector_store %arg14[%c0_15, %c0_16], %20 {strides = array<i32>} : memref<1x256xf32, #tpu.memory_space<vmem>>, vector<1x256xf32>,
    } else {
    }
    %c0_9 = arith.constant 0 : index
    %c0_10 = arith.constant 0 : index
    %14 = vector.load %arg14[%c0_9, %c0_10] : memref<1x256xf32, #tpu.memory_space<vmem>>, vector<1x256xf32>
    %15 = arith.addf %14, %10 : vector<1x256xf32>
    %c0_11 = arith.constant 0 : index
    %c0_12 = arith.constant 0 : index
    %16 = vector.load %arg14[%c0_11, %c0_12] : memref<1x256xf32, #tpu.memory_space<vmem>>, vector<1x256xf32>
    tpu.vector_store %arg14[%c0_11, %c0_12], %15 {strides = array<i32>} : memref<1x256xf32, #tpu.memory_space<vmem>>, vector<1x256xf32>,
    %c1_i32 = arith.constant 1 : i32
    %17 = arith.cmpi eq, %arg0, %c1_i32 : i32
    %18 = arith.extui %17 : i1 to i32
    %c0_i32_13 = arith.constant 0 : i32
    %19 = arith.cmpi ne, %18, %c0_i32_13 : i32
    scf.if %19 {
      %c0_14 = arith.constant 0 : index
      %c0_15 = arith.constant 0 : index
      %20 = vector.load %arg14[%c0_14, %c0_15] : memref<1x256xf32, #tpu.memory_space<vmem>>, vector<1x16xf32>
      %c0_16 = arith.constant 0 : index
      %c0_17 = arith.constant 0 : index
      %21 = vector.load %arg15[%c0_16, %c0_17] : memref<16x16xf32, #tpu.memory_space<vmem>>, vector<1x16xf32>
      tpu.vector_store %arg15[%c0_16, %c0_17], %20 {strides = array<i32>} : memref<16x16xf32, #tpu.memory_space<vmem>>, vector<1x16xf32>,
      %c0_18 = arith.constant 0 : index
      %c16 = arith.constant 16 : index
      %22 = vector.load %arg14[%c0_18, %c16] : memref<1x256xf32, #tpu.memory_space<vmem>>, vector<1x16xf32>
      %c1 = arith.constant 1 : index
      %c0_19 = arith.constant 0 : index
      %23 = vector.load %arg15[%c1, %c0_19] : memref<16x16xf32, #tpu.memory_space<vmem>>, vector<1x16xf32>
      tpu.vector_store %arg15[%c1, %c0_19], %22 {strides = array<i32>} : memref<16x16xf32, #tpu.memory_space<vmem>>, vector<1x16xf32>,
      %c0_20 = arith.constant 0 : index
      %c32 = arith.constant 32 : index
      %24 = vector.load %arg14[%c0_20, %c32] : memref<1x256xf32, #tpu.memory_space<vmem>>, vector<1x16xf32>
      %c2 = arith.constant 2 : index
      %c0_21 = arith.constant 0 : index
      %25 = vector.load %arg15[%c2, %c0_21] : memref<16x16xf32, #tpu.memory_space<vmem>>, vector<1x16xf32>
      tpu.vector_store %arg15[%c2, %c0_21], %24 {strides = array<i32>} : memref<16x16xf32, #tpu.memory_space<vmem>>, vector<1x16xf32>,
      %c0_22 = arith.constant 0 : index
      %c48 = arith.constant 48 : index
      %26 = vector.load %arg14[%c0_22, %c48] : memref<1x256xf32, #tpu.memory_space<vmem>>, vector<1x16xf32>
      %c3 = arith.constant 3 : index
      %c0_23 = arith.constant 0 : index
      %27 = vector.load %arg15[%c3, %c0_23] : memref<16x16xf32, #tpu.memory_space<vmem>>, vector<1x16xf32>
      tpu.vector_store %arg15[%c3, %c0_23], %26 {strides = array<i32>} : memref<16x16xf32, #tpu.memory_space<vmem>>, vector<1x16xf32>,
      %c0_24 = arith.constant 0 : index
      %c64 = arith.constant 64 : index
      %28 = vector.load %arg14[%c0_24, %c64] : memref<1x256xf32, #tpu.memory_space<vmem>>, vector<1x16xf32>
      %c4 = arith.constant 4 : index
      %c0_25 = arith.constant 0 : index
      %29 = vector.load %arg15[%c4, %c0_25] : memref<16x16xf32, #tpu.memory_space<vmem>>, vector<1x16xf32>
      tpu.vector_store %arg15[%c4, %c0_25], %28 {strides = array<i32>} : memref<16x16xf32, #tpu.memory_space<vmem>>, vector<1x16xf32>,
      %c0_26 = arith.constant 0 : index
      %c80 = arith.constant 80 : index
      %30 = vector.load %arg14[%c0_26, %c80] : memref<1x256xf32, #tpu.memory_space<vmem>>, vector<1x16xf32>
      %c5 = arith.constant 5 : index
      %c0_27 = arith.constant 0 : index
      %31 = vector.load %arg15[%c5, %c0_27] : memref<16x16xf32, #tpu.memory_space<vmem>>, vector<1x16xf32>
      tpu.vector_store %arg15[%c5, %c0_27], %30 {strides = array<i32>} : memref<16x16xf32, #tpu.memory_space<vmem>>, vector<1x16xf32>,
      %c0_28 = arith.constant 0 : index
      %c96 = arith.constant 96 : index
      %32 = vector.load %arg14[%c0_28, %c96] : memref<1x256xf32, #tpu.memory_space<vmem>>, vector<1x16xf32>
      %c6 = arith.constant 6 : index
      %c0_29 = arith.constant 0 : index
      %33 = vector.load %arg15[%c6, %c0_29] : memref<16x16xf32, #tpu.memory_space<vmem>>, vector<1x16xf32>
      tpu.vector_store %arg15[%c6, %c0_29], %32 {strides = array<i32>} : memref<16x16xf32, #tpu.memory_space<vmem>>, vector<1x16xf32>,
      %c0_30 = arith.constant 0 : index
      %c112 = arith.constant 112 : index
      %34 = vector.load %arg14[%c0_30, %c112] : memref<1x256xf32, #tpu.memory_space<vmem>>, vector<1x16xf32>
      %c7 = arith.constant 7 : index
      %c0_31 = arith.constant 0 : index
      %35 = vector.load %arg15[%c7, %c0_31] : memref<16x16xf32, #tpu.memory_space<vmem>>, vector<1x16xf32>
      tpu.vector_store %arg15[%c7, %c0_31], %34 {strides = array<i32>} : memref<16x16xf32, #tpu.memory_space<vmem>>, vector<1x16xf32>,
      %c0_32 = arith.constant 0 : index
      %c128 = arith.constant 128 : index
      %36 = vector.load %arg14[%c0_32, %c128] : memref<1x256xf32, #tpu.memory_space<vmem>>, vector<1x16xf32>
      %c8 = arith.constant 8 : index
      %c0_33 = arith.constant 0 : index
      %37 = vector.load %arg15[%c8, %c0_33] : memref<16x16xf32, #tpu.memory_space<vmem>>, vector<1x16xf32>
      tpu.vector_store %arg15[%c8, %c0_33], %36 {strides = array<i32>} : memref<16x16xf32, #tpu.memory_space<vmem>>, vector<1x16xf32>,
      %c0_34 = arith.constant 0 : index
      %c144 = arith.constant 144 : index
      %38 = vector.load %arg14[%c0_34, %c144] : memref<1x256xf32, #tpu.memory_space<vmem>>, vector<1x16xf32>
      %c9 = arith.constant 9 : index
      %c0_35 = arith.constant 0 : index
      %39 = vector.load %arg15[%c9, %c0_35] : memref<16x16xf32, #tpu.memory_space<vmem>>, vector<1x16xf32>
      tpu.vector_store %arg15[%c9, %c0_35], %38 {strides = array<i32>} : memref<16x16xf32, #tpu.memory_space<vmem>>, vector<1x16xf32>,
      %c0_36 = arith.constant 0 : index
      %c160 = arith.constant 160 : index
      %40 = vector.load %arg14[%c0_36, %c160] : memref<1x256xf32, #tpu.memory_space<vmem>>, vector<1x16xf32>
      %c10 = arith.constant 10 : index
      %c0_37 = arith.constant 0 : index
      %41 = vector.load %arg15[%c10, %c0_37] : memref<16x16xf32, #tpu.memory_space<vmem>>, vector<1x16xf32>
      tpu.vector_store %arg15[%c10, %c0_37], %40 {strides = array<i32>} : memref<16x16xf32, #tpu.memory_space<vmem>>, vector<1x16xf32>,
      %c0_38 = arith.constant 0 : index
      %c176 = arith.constant 176 : index
      %42 = vector.load %arg14[%c0_38, %c176] : memref<1x256xf32, #tpu.memory_space<vmem>>, vector<1x16xf32>
      %c11 = arith.constant 11 : index
      %c0_39 = arith.constant 0 : index
      %43 = vector.load %arg15[%c11, %c0_39] : memref<16x16xf32, #tpu.memory_space<vmem>>, vector<1x16xf32>
      tpu.vector_store %arg15[%c11, %c0_39], %42 {strides = array<i32>} : memref<16x16xf32, #tpu.memory_space<vmem>>, vector<1x16xf32>,
      %c0_40 = arith.constant 0 : index
      %c192 = arith.constant 192 : index
      %44 = vector.load %arg14[%c0_40, %c192] : memref<1x256xf32, #tpu.memory_space<vmem>>, vector<1x16xf32>
      %c12 = arith.constant 12 : index
      %c0_41 = arith.constant 0 : index
      %45 = vector.load %arg15[%c12, %c0_41] : memref<16x16xf32, #tpu.memory_space<vmem>>, vector<1x16xf32>
      tpu.vector_store %arg15[%c12, %c0_41], %44 {strides = array<i32>} : memref<16x16xf32, #tpu.memory_space<vmem>>, vector<1x16xf32>,
      %c0_42 = arith.constant 0 : index
      %c208 = arith.constant 208 : index
      %46 = vector.load %arg14[%c0_42, %c208] : memref<1x256xf32, #tpu.memory_space<vmem>>, vector<1x16xf32>
      %c13 = arith.constant 13 : index
      %c0_43 = arith.constant 0 : index
      %47 = vector.load %arg15[%c13, %c0_43] : memref<16x16xf32, #tpu.memory_space<vmem>>, vector<1x16xf32>
      tpu.vector_store %arg15[%c13, %c0_43], %46 {strides = array<i32>} : memref<16x16xf32, #tpu.memory_space<vmem>>, vector<1x16xf32>,
      %c0_44 = arith.constant 0 : index
      %c224 = arith.constant 224 : index
      %48 = vector.load %arg14[%c0_44, %c224] : memref<1x256xf32, #tpu.memory_space<vmem>>, vector<1x16xf32>
      %c14 = arith.constant 14 : index
      %c0_45 = arith.constant 0 : index
      %49 = vector.load %arg15[%c14, %c0_45] : memref<16x16xf32, #tpu.memory_space<vmem>>, vector<1x16xf32>
      tpu.vector_store %arg15[%c14, %c0_45], %48 {strides = array<i32>} : memref<16x16xf32, #tpu.memory_space<vmem>>, vector<1x16xf32>,
      %c0_46 = arith.constant 0 : index
      %c240 = arith.constant 240 : index
      %50 = vector.load %arg14[%c0_46, %c240] : memref<1x256xf32, #tpu.memory_space<vmem>>, vector<1x16xf32>
      %c15 = arith.constant 15 : index
      %c0_47 = arith.constant 0 : index
      %51 = vector.load %arg15[%c15, %c0_47] : memref<16x16xf32, #tpu.memory_space<vmem>>, vector<1x16xf32>
      tpu.vector_store %arg15[%c15, %c0_47], %50 {strides = array<i32>} : memref<16x16xf32, #tpu.memory_space<vmem>>, vector<1x16xf32>,
      %c0_48 = arith.constant 0 : index
      %c0_49 = arith.constant 0 : index
      %52 = vector.load %arg5[%c0_48, %c0_49] : memref<16x16xf32, #tpu.memory_space<vmem>>, vector<16x16xf32>
      %53 = vector.broadcast %0 : f32 to vector<16x16xf32>
      %54 = arith.mulf %53, %52 : vector<16x16xf32>
      %cst_50 = arith.constant 1.000000e+00 : f32
      %55 = arith.subf %cst_50, %0 : f32
      %c0_51 = arith.constant 0 : index
      %c0_52 = arith.constant 0 : index
      %56 = vector.load %arg6[%c0_51, %c0_52] : memref<16x16xf32, #tpu.memory_space<vmem>>, vector<16x16xf32>
      %57 = vector.broadcast %55 : f32 to vector<16x16xf32>
      %58 = arith.mulf %57, %56 : vector<16x16xf32>
      %59 = arith.addf %54, %58 : vector<16x16xf32>
      %c0_53 = arith.constant 0 : index
      %c0_54 = arith.constant 0 : index
      %60 = vector.load %arg11[%c0_53, %c0_54] : memref<16x16xf32, #tpu.memory_space<vmem>>, vector<16x16xf32>
      tpu.vector_store %arg11[%c0_53, %c0_54], %59 {strides = array<i32>} : memref<16x16xf32, #tpu.memory_space<vmem>>, vector<16x16xf32>,
      %c0_55 = arith.constant 0 : index
      %c0_56 = arith.constant 0 : index
      %61 = vector.load %arg15[%c0_55, %c0_56] : memref<16x16xf32, #tpu.memory_space<vmem>>, vector<16x16xf32>
      %c0_57 = arith.constant 0 : index
      %c0_58 = arith.constant 0 : index
      %62 = vector.load %arg7[%c0_57, %c0_58] : memref<16x16xf32, #tpu.memory_space<vmem>>, vector<16x16xf32>
      %63 = arith.addf %62, %61 : vector<16x16xf32>
      %c0_59 = arith.constant 0 : index
      %c0_60 = arith.constant 0 : index
      %64 = vector.load %arg8[%c0_59, %c0_60] : memref<16x16xf32, #tpu.memory_space<vmem>>, vector<16x16xf32>
      %c0_61 = arith.constant 0 : index
      %c0_62 = arith.constant 0 : index
      %65 = vector.load %arg9[%c0_61, %c0_62] : memref<16x16xf32, #tpu.memory_space<vmem>>, vector<16x16xf32>
      %cst_63 = arith.constant dense<0.000000e+00> : vector<16x16xf32>
      %66 = tpu.matmul %63, %65, %cst_63 {dimension_numbers = #tpu.dot_dimension_numbers<[1], [0], [0], [1], [0, 0, 1, 1], [], []>} : vector<16x16xf32>, vector<16x16xf32>, vector<16x16xf32> -> vector<16x16xf32>
      %cst_64 = arith.constant dense<0.000000e+00> : vector<16x16xf32>
      %67 = tpu.matmul %64, %66, %cst_64 {dimension_numbers = #tpu.dot_dimension_numbers<[1], [0], [0], [1], [0, 0, 1, 1], [], []>} : vector<16x16xf32>, vector<16x16xf32>, vector<16x16xf32> -> vector<16x16xf32>
      %c0_65 = arith.constant 0 : index
      %c0_66 = arith.constant 0 : index
      %68 = vector.load %arg12[%c0_65, %c0_66] : memref<16x16xf32, #tpu.memory_space<vmem>>, vector<16x16xf32>
      tpu.vector_store %arg12[%c0_65, %c0_66], %67 {strides = array<i32>} : memref<16x16xf32, #tpu.memory_space<vmem>>, vector<16x16xf32>,
      %69 = arith.mulf %59, %62 : vector<16x16xf32>
      %70 = vector.shape_cast %69 : vector<16x16xf32> to vector<1x16x16xf32>
      %cst_67 = arith.constant dense<0.000000e+00> : vector<1xf32>
      %71 = vector.multi_reduction <add>, %70, %cst_67 [1, 2] : vector<1x16x16xf32> to vector<1xf32>
      %72 = vector.shape_cast %71 : vector<1xf32> to vector<1x1x1xf32>
      %73 = vector.extract %72[0, 0, 0] : f32 from vector<1x1x1xf32>
      %74 = arith.mulf %59, %61 : vector<16x16xf32>
      %75 = vector.shape_cast %74 : vector<16x16xf32> to vector<1x16x16xf32>
      %cst_68 = arith.constant dense<0.000000e+00> : vector<1xf32>
      %76 = vector.multi_reduction <add>, %75, %cst_68 [1, 2] : vector<1x16x16xf32> to vector<1xf32>
      %77 = vector.shape_cast %76 : vector<1xf32> to vector<1x1x1xf32>
      %78 = vector.extract %77[0, 0, 0] : f32 from vector<1x1x1xf32>
      %cst_69 = arith.constant 5.000000e-01 : f32
      %79 = arith.mulf %cst_69, %78 : f32
      %80 = arith.addf %73, %79 : f32
      %c0_70 = arith.constant 0 : index
      %c0_71 = arith.constant 0 : index
      %81 = memref.load %arg2[%c0_70, %c0_71] : memref<1x1xf32, #tpu.memory_space<smem>>
      %82 = arith.addf %80, %81 : f32
      %c0_72 = arith.constant 0 : index
      %c0_73 = arith.constant 0 : index
      %83 = memref.load %arg13[%c0_72, %c0_73] : memref<1x1xf32, #tpu.memory_space<smem>>
      memref.store %82, %arg13[%c0_72, %c0_73] : memref<1x1xf32, #tpu.memory_space<smem>>
    } else {
    }
    return
  }
  func.func @transform_0(%arg0: i32) -> (i32, i32) {
    %c0_i32 = arith.constant 0 : i32
    %c0_i32_0 = arith.constant 0 : i32
    %c0_i32_1 = arith.constant 0 : i32
    return %c0_i32, %c0_i32_0 : i32, i32
  }
  func.func @transform_1(%arg0: i32) -> (i32, i32) {
    %c0_i32 = arith.constant 0 : i32
    %c0_i32_0 = arith.constant 0 : i32
    %c0_i32_1 = arith.constant 0 : i32
    return %c0_i32, %c0_i32_0 : i32, i32
  }
  func.func @transform_2(%arg0: i32) -> (i32, i32) {
    %c0_i32 = arith.constant 0 : i32
    %c0_i32_0 = arith.constant 0 : i32
    return %c0_i32, %arg0 : i32, i32
  }
  func.func @transform_3(%arg0: i32) -> (i32, i32) {
    %c0_i32 = arith.constant 0 : i32
    %c0_i32_0 = arith.constant 0 : i32
    return %c0_i32, %arg0 : i32, i32
  }
  func.func @transform_4(%arg0: i32) -> (i32, i32) {
    %c0_i32 = arith.constant 0 : i32
    %c0_i32_0 = arith.constant 0 : i32
    %c0_i32_1 = arith.constant 0 : i32
    return %c0_i32, %c0_i32_0 : i32, i32
  }
  func.func @transform_5(%arg0: i32) -> (i32, i32) {
    %c0_i32 = arith.constant 0 : i32
    %c0_i32_0 = arith.constant 0 : i32
    %c0_i32_1 = arith.constant 0 : i32
    return %c0_i32, %c0_i32_0 : i32, i32
  }
  func.func @transform_6(%arg0: i32) -> (i32, i32) {
    %c0_i32 = arith.constant 0 : i32
    %c0_i32_0 = arith.constant 0 : i32
    %c0_i32_1 = arith.constant 0 : i32
    return %c0_i32, %c0_i32_0 : i32, i32
  }
  func.func @transform_7(%arg0: i32) -> (i32, i32) {
    %c0_i32 = arith.constant 0 : i32
    %c0_i32_0 = arith.constant 0 : i32
    %c0_i32_1 = arith.constant 0 : i32
    return %c0_i32, %c0_i32_0 : i32, i32
  }
  func.func @transform_8(%arg0: i32) -> (i32, i32) {
    %c0_i32 = arith.constant 0 : i32
    %c0_i32_0 = arith.constant 0 : i32
    %c0_i32_1 = arith.constant 0 : i32
    return %c0_i32, %c0_i32_0 : i32, i32
  }
  func.func @transform_9(%arg0: i32) -> (i32, i32) {
    %c0_i32 = arith.constant 0 : i32
    %c0_i32_0 = arith.constant 0 : i32
    return %arg0, %c0_i32 : i32, i32
  }
  func.func @transform_10(%arg0: i32) -> (i32, i32) {
    %c0_i32 = arith.constant 0 : i32
    %c0_i32_0 = arith.constant 0 : i32
    %c0_i32_1 = arith.constant 0 : i32
    return %c0_i32, %c0_i32_0 : i32, i32
  }
  func.func @transform_11(%arg0: i32) -> (i32, i32) {
    %c0_i32 = arith.constant 0 : i32
    %c0_i32_0 = arith.constant 0 : i32
    %c0_i32_1 = arith.constant 0 : i32
    return %c0_i32, %c0_i32_0 : i32, i32
  }
  func.func @transform_12(%arg0: i32) -> (i32, i32) {
    %c0_i32 = arith.constant 0 : i32
    %c0_i32_0 = arith.constant 0 : i32
    %c0_i32_1 = arith.constant 0 : i32
    return %c0_i32, %c0_i32_0 : i32, i32
  }
}

module attributes {stable_mosaic.version = 11 : i64} {
  func.func @_rdm1_kernel(%arg0: i32, %arg1: memref<16x16xf32, #tpu.memory_space<vmem>>, %arg2: memref<16x8xf32, #tpu.memory_space<vmem>>, %arg3: memref<1x8xf32, #tpu.memory_space<vmem>>, %arg4: memref<16x16xf32, #tpu.memory_space<vmem>>) attributes {dimension_semantics = [#tpu.dimension_semantics<arbitrary>], iteration_bounds = array<i64: 1>, scalar_prefetch = 0 : i64, scratch_operands = 0 : i64, tpu.core_type = #tpu.core_type<tc>, window_params = [{pipeline_mode = #tpu.pipeline_mode<synchronous>, transform_indices = @transform_0, window_bounds = array<i64: 16, 16>}, {pipeline_mode = #tpu.pipeline_mode<synchronous>, transform_indices = @transform_1, window_bounds = array<i64: 16, 8>}, {pipeline_mode = #tpu.pipeline_mode<synchronous>, transform_indices = @transform_2, window_bounds = array<i64: 1, 8>}, {pipeline_mode = #tpu.pipeline_mode<synchronous>, transform_indices = @transform_3, window_bounds = array<i64: 16, 16>}]} {
    %c0 = arith.constant 0 : index
    %c0_0 = arith.constant 0 : index
    %0 = vector.load %arg1[%c0, %c0_0] : memref<16x16xf32, #tpu.memory_space<vmem>>, vector<16x16xf32>
    %c0_1 = arith.constant 0 : index
    %c0_2 = arith.constant 0 : index
    %1 = vector.load %arg2[%c0_1, %c0_2] : memref<16x8xf32, #tpu.memory_space<vmem>>, vector<16x8xf32>
    %cst = arith.constant dense<0.000000e+00> : vector<16x8xf32>
    %2 = tpu.matmul %0, %1, %cst {dimension_numbers = #tpu.dot_dimension_numbers<[1], [0], [0], [1], [0, 0, 1, 1], [], []>} : vector<16x16xf32>, vector<16x8xf32>, vector<16x8xf32> -> vector<16x8xf32>
    %c0_3 = arith.constant 0 : index
    %c0_4 = arith.constant 0 : index
    %3 = vector.load %arg3[%c0_3, %c0_4] : memref<1x8xf32, #tpu.memory_space<vmem>>, vector<1x8xf32>
    %4 = vector.broadcast %3 : vector<1x8xf32> to vector<16x8xf32>
    %5 = arith.mulf %2, %4 : vector<16x8xf32>
    %cst_5 = arith.constant dense<0.000000e+00> : vector<16x16xf32>
    %6 = tpu.matmul %5, %2, %cst_5 {dimension_numbers = #tpu.dot_dimension_numbers<[1], [1], [0], [0], [0, 0, 1, 0], [], []>} : vector<16x8xf32>, vector<16x8xf32>, vector<16x16xf32> -> vector<16x16xf32>
    %c0_6 = arith.constant 0 : index
    %c0_7 = arith.constant 0 : index
    %7 = vector.load %arg4[%c0_6, %c0_7] : memref<16x16xf32, #tpu.memory_space<vmem>>, vector<16x16xf32>
    tpu.vector_store %arg4[%c0_6, %c0_7], %6 {strides = array<i32>} : memref<16x16xf32, #tpu.memory_space<vmem>>, vector<16x16xf32>,
    return
  }
  func.func @transform_0(%arg0: i32) -> (i32, i32) {
    %c0_i32 = arith.constant 0 : i32
    %c0_i32_0 = arith.constant 0 : i32
    %c0_i32_1 = arith.constant 0 : i32
    return %c0_i32, %c0_i32_0 : i32, i32
  }
  func.func @transform_1(%arg0: i32) -> (i32, i32) {
    %c0_i32 = arith.constant 0 : i32
    %c0_i32_0 = arith.constant 0 : i32
    %c0_i32_1 = arith.constant 0 : i32
    return %c0_i32, %c0_i32_0 : i32, i32
  }
  func.func @transform_2(%arg0: i32) -> (i32, i32) {
    %c0_i32 = arith.constant 0 : i32
    %c0_i32_0 = arith.constant 0 : i32
    %c0_i32_1 = arith.constant 0 : i32
    return %c0_i32, %c0_i32_0 : i32, i32
  }
  func.func @transform_3(%arg0: i32) -> (i32, i32) {
    %c0_i32 = arith.constant 0 : i32
    %c0_i32_0 = arith.constant 0 : i32
    %c0_i32_1 = arith.constant 0 : i32
    return %c0_i32, %c0_i32_0 : i32, i32
  }
}

</mosaic_0001>

<llo_original>
// kernel: custom-call.11
$region0: #{custom-call.11}
  %s0 = inlined_call_operand.vmem [shape: f32[8,8], index: 0, kind: input, shape index: {}]
  %s1 = inlined_call_operand.vmem [shape: f32[8,8], index: 1, kind: input, shape index: {}]
  %s2 = inlined_call_operand.vmem [shape: f32[8,8], index: 2, kind: input, shape index: {}]
  %s3 = inlined_call_operand.vmem [shape: f32[8,8], index: 3, kind: input, shape index: {}]
  %s4 = inlined_call_operand.vmem [shape: f32[8], index: 4, kind: output, shape index: {0}]
  %s5 = inlined_call_operand.vmem [shape: f32[8], index: 5, kind: output, shape index: {1}]
  %s6 = inlined_call_operand.vmem [shape: f32[8,8], index: 6, kind: output, shape index: {2}]
  %s7 = inlined_call_operand.vmem [shape: f32[8,8], index: 7, kind: output, shape index: {3}]
  %s8 = inlined_call_operand.vmem [shape: f32[8,8], index: 8, kind: output, shape index: {4}]
  %s9 = inlined_call_operand.vmem [shape: f32[8,8], index: 9, kind: output, shape index: {5}]
  %10 = xla_tuple %s4, %s5, %s6, %s7, %s8, %s9
  $region1: #{custom-call.11} parent=0
    #allocation0 [shape = 'u8[4096]{0}', space=vmem, size = 0x1000, scoped, tag = 'operand span for operand 0']
    #allocation1 [shape = 'u8[4096]{0}', space=vmem, size = 0x1000, scoped, tag = 'operand span for operand 1']
    #allocation2 [shape = 'u8[4096]{0}', space=vmem, size = 0x1000, scoped, tag = 'operand span for operand 2']
    #allocation3 [shape = 'u8[4096]{0}', space=vmem, size = 0x1000, scoped, tag = 'operand span for operand 3']
    #allocation4 [shape = 'u8[4096]{0}', space=vmem, size = 0x1000, scoped, tag = 'operand span for operand 4']
    #allocation5 [shape = 'u8[512]{0}', space=vmem, size = 0x400, scoped, tag = 'packed  for operand 4']
    #allocation6 [shape = 'u8[4096]{0}', space=vmem, size = 0x1000, scoped, tag = 'operand span for operand 5']
    #allocation7 [shape = 'u8[512]{0}', space=vmem, size = 0x400, scoped, tag = 'packed  for operand 5']
    #allocation8 [shape = 'u8[4096]{0}', space=vmem, size = 0x1000, scoped, tag = 'operand span for operand 6']
    #allocation9 [shape = 'u8[4096]{0}', space=vmem, size = 0x1000, scoped, tag = 'operand span for operand 7']
    #allocation10 [shape = 'u8[4096]{0}', space=vmem, size = 0x1000, scoped, tag = 'operand span for operand 8']
    #allocation11 [shape = 'u8[4096]{0}', space=vmem, size = 0x1000, scoped, tag = 'operand span for operand 9']
    #allocation12 [shape = 'f32[8,8]{1,0}', space=vmem, size = 0x1000, scoped, tag = 'a top-left matrix']
    #allocation13 [shape = 'f32[8,8]{1,0}', space=vmem, size = 0x1000, scoped, tag = 'a top-right matrix']
    #allocation14 [shape = 'f32[8,8]{1,0}', space=vmem, size = 0x1000, scoped, tag = 'a bottom-left matrix']
    #allocation15 [shape = 'f32[8,8]{1,0}', space=vmem, size = 0x1000, scoped, tag = 'a bottom-right matrix']
    %p12 = scmp.gt.s32.totalorder 8, 0
    // Predicated region
    $region2: #{custom-call.11} parent=1 // pred_check
      %p13 = pneg %p12
    $region3: #{custom-call.11} parent=1 // pred_check_branch
      %15 = sbr.rel (%p13) target = $region5
    $region4: #{custom-call.11} parent=1 // pred_region
      %s16 = sshra.s32 8, 3
      %p17 = scmp.gt.s32.totalorder %s16, 0
      // Predicated region
      $region6: #{custom-call.11} parent=4 // pred_check
        %p18 = pneg %p17
      $region7: #{custom-call.11} parent=4 // pred_check_branch
        %20 = sbr.rel (%p18) target = $region9
      $region8: #{custom-call.11} parent=4 // pred_region
        %s21 = ssub.s32 %s16, 1
        %s22 = smul.u32 %s21, 128
        %s23 = sshra.s32 %s22, 4
        %s24 = scalar_lea.vmem %s0, %s23
        %v25 = vld [vmem:[%s0] sm:$0xff]
        // While loop
        $region10: #{custom-call.11} parent=8 // loop_pre_header
          _
        $region11: #{custom-call.11} parent=8 // loop_header
          %s26 = sphi %s0, %s48
          %s27 = sphi [#allocation0], %s49
          %v28 = vphi %v25, %v50
          %s29 = ssub.s32 %s24, 64
          %p30 = scmp.gt.s32.totalorder %s26, %s29
        $region12: #{custom-call.11} parent=8 // loop_header_branch
          %32 = sbr.rel (%p30) target = $region16
        $region13: #{custom-call.11} parent=8 // loop_body
          %33 = vst [vmem:[%s27] sm:$0xff] %v28
          %v34 = vld [vmem:[%s26 + $0x8] sm:$0xff]
          %35 = vst [vmem:[%s27 + $0x8] sm:$0xff] %v34
          %v36 = vld [vmem:[%s26 + $0x10] sm:$0xff]
          %37 = vst [vmem:[%s27 + $0x10] sm:$0xff] %v36
          %v38 = vld [vmem:[%s26 + $0x18] sm:$0xff]
          %39 = vst [vmem:[%s27 + $0x18] sm:$0xff] %v38
          %v40 = vld [vmem:[%s26 + $0x20] sm:$0xff]
          %41 = vst [vmem:[%s27 + $0x20] sm:$0xff] %v40
          %v42 = vld [vmem:[%s26 + $0x28] sm:$0xff]
          %43 = vst [vmem:[%s27 + $0x28] sm:$0xff] %v42
          %v44 = vld [vmem:[%s26 + $0x30] sm:$0xff]
          %45 = vst [vmem:[%s27 + $0x30] sm:$0xff] %v44
          %v46 = vld [vmem:[%s26 + $0x38] sm:$0xff]
          %47 = vst [vmem:[%s27 + $0x38] sm:$0xff] %v46
        $region14: #{custom-call.11} parent=8 // loop_footer
          %s48 = scalar_lea.vmem %s26, 64
          %s49 = scalar_lea.vmem %s27, 64
          %v50 = vld [vmem:[%s26 + $0x40] sm:$0xff]
        $region15: #{custom-call.11} parent=8 // loop_footer_branch
          %51 = sbr.rel target = $region11
        $region16: #{custom-call.11} parent=8 // loop_exit
          _
        // While loop
        $region17: #{custom-call.11} parent=8 // loop_pre_header
          _
        $region18: #{custom-call.11} parent=8 // loop_header
          %s52 = sphi %s26, %s60
          %s53 = sphi %s27, %s61
          %v54 = vphi %v28, %v54
          %p55 = scmp.gt.s32.totalorder %s52, %s24
        $region19: #{custom-call.11} parent=8 // loop_header_branch
          %57 = sbr.rel (%p55) target = $region23
        $region20: #{custom-call.11} parent=8 // loop_body
          %v58 = vld [vmem:[%s52] sm:$0xff]
          %59 = vst [vmem:[%s53] sm:$0xff] %v58
        $region21: #{custom-call.11} parent=8 // loop_footer
          %s60 = scalar_lea.vmem %s52, 8
          %s61 = scalar_lea.vmem %s53, 8
        $region22: #{custom-call.11} parent=8 // loop_footer_branch
          %62 = sbr.rel target = $region18
        $region23: #{custom-call.11} parent=8 // loop_exit
          _
      $region9: #{custom-call.11} parent=4 // pred_fallthru
        _
      %s63 = sand.u32 8, 7
      %s64 = sshllo.u32 0, %s63
      %s65 = smul.u32 %s16, 128
      %s66 = sshra.s32 %s65, 4
      %s67 = scalar_lea.vmem [#allocation0], %s66
      %s68 = smul.u32 %s16, 128
      %s69 = sshra.s32 %s68, 4
      %s70 = scalar_lea.vmem %s0, %s69
      %v71 = vld [vmem:[%s70] sm:%s64]
      %72 = vst [vmem:[%s67] sm:%s64] %v71
    $region5: #{custom-call.11} parent=1 // pred_fallthru
      _
    %p74 = scmp.gt.s32.totalorder 8, 0
    // Predicated region
    $region24: #{custom-call.11} parent=1 // pred_check
      %p75 = pneg %p74
    $region25: #{custom-call.11} parent=1 // pred_check_branch
      %77 = sbr.rel (%p75) target = $region27
    $region26: #{custom-call.11} parent=1 // pred_region
      %s78 = sshra.s32 8, 3
      %p79 = scmp.gt.s32.totalorder %s78, 0
      // Predicated region
      $region28: #{custom-call.11} parent=26 // pred_check
        %p80 = pneg %p79
      $region29: #{custom-call.11} parent=26 // pred_check_branch
        %82 = sbr.rel (%p80) target = $region31
      $region30: #{custom-call.11} parent=26 // pred_region
        %s83 = ssub.s32 %s78, 1
        %s84 = smul.u32 %s83, 128
        %s85 = sshra.s32 %s84, 4
        %s86 = scalar_lea.vmem %s1, %s85
        %v87 = vld [vmem:[%s1] sm:$0xff]
        // While loop
        $region32: #{custom-call.11} parent=30 // loop_pre_header
          _
        $region33: #{custom-call.11} parent=30 // loop_header
          %s88 = sphi %s1, %s110
          %s89 = sphi [#allocation1], %s111
          %v90 = vphi %v87, %v112
          %s91 = ssub.s32 %s86, 64
          %p92 = scmp.gt.s32.totalorder %s88, %s91
        $region34: #{custom-call.11} parent=30 // loop_header_branch
          %94 = sbr.rel (%p92) target = $region38
        $region35: #{custom-call.11} parent=30 // loop_body
          %95 = vst [vmem:[%s89] sm:$0xff] %v90
          %v96 = vld [vmem:[%s88 + $0x8] sm:$0xff]
          %97 = vst [vmem:[%s89 + $0x8] sm:$0xff] %v96
          %v98 = vld [vmem:[%s88 + $0x10] sm:$0xff]
          %99 = vst [vmem:[%s89 + $0x10] sm:$0xff] %v98
          %v100 = vld [vmem:[%s88 + $0x18] sm:$0xff]
          %101 = vst [vmem:[%s89 + $0x18] sm:$0xff] %v100
          %v102 = vld [vmem:[%s88 + $0x20] sm:$0xff]
          %103 = vst [vmem:[%s89 + $0x20] sm:$0xff] %v102
          %v104 = vld [vmem:[%s88 + $0x28] sm:$0xff]
          %105 = vst [vmem:[%s89 + $0x28] sm:$0xff] %v104
          %v106 = vld [vmem:[%s88 + $0x30] sm:$0xff]
          %107 = vst [vmem:[%s89 + $0x30] sm:$0xff] %v106
          %v108 = vld [vmem:[%s88 + $0x38] sm:$0xff]
          %109 = vst [vmem:[%s89 + $0x38] sm:$0xff] %v108
        $region36: #{custom-call.11} parent=30 // loop_footer
          %s110 = scalar_lea.vmem %s88, 64
          %s111 = scalar_lea.vmem %s89, 64
          %v112 = vld [vmem:[%s88 + $0x40] sm:$0xff]
        $region37: #{custom-call.11} parent=30 // loop_footer_branch
          %113 = sbr.rel target = $region33
        $region38: #{custom-call.11} parent=30 // loop_exit
          _
        // While loop
        $region39: #{custom-call.11} parent=30 // loop_pre_header
          _
        $region40: #{custom-call.11} parent=30 // loop_header
          %s114 = sphi %s88, %s122
          %s115 = sphi %s89, %s123
          %v116 = vphi %v90, %v116
          %p117 = scmp.gt.s32.totalorder %s114, %s86
        $region41: #{custom-call.11} parent=30 // loop_header_branch
          %119 = sbr.rel (%p117) target = $region45
        $region42: #{custom-call.11} parent=30 // loop_body
          %v120 = vld [vmem:[%s114] sm:$0xff]
          %121 = vst [vmem:[%s115] sm:$0xff] %v120
        $region43: #{custom-call.11} parent=30 // loop_footer
          %s122 = scalar_lea.vmem %s114, 8
          %s123 = scalar_lea.vmem %s115, 8
        $region44: #{custom-call.11} parent=30 // loop_footer_branch
          %124 = sbr.rel target = $region40
        $region45: #{custom-call.11} parent=30 // loop_exit
          _
      $region31: #{custom-call.11} parent=26 // pred_fallthru
        _
      %s125 = sand.u32 8, 7
      %s126 = sshllo.u32 0, %s125
      %s127 = smul.u32 %s78, 128
      %s128 = sshra.s32 %s127, 4
      %s129 = scalar_lea.vmem [#allocation1], %s128
      %s130 = smul.u32 %s78, 128
      %s131 = sshra.s32 %s130, 4
      %s132 = scalar_lea.vmem %s1, %s131
      %v133 = vld [vmem:[%s132] sm:%s126]
      %134 = vst [vmem:[%s129] sm:%s126] %v133
    $region27: #{custom-call.11} parent=1 // pred_fallthru
      _
    %p136 = scmp.gt.s32.totalorder 8, 0
    // Predicated region
    $region46: #{custom-call.11} parent=1 // pred_check
      %p137 = pneg %p136
    $region47: #{custom-call.11} parent=1 // pred_check_branch
      %139 = sbr.rel (%p137) target = $region49
    $region48: #{custom-call.11} parent=1 // pred_region
      %s140 = sshra.s32 8, 3
      %p141 = scmp.gt.s32.totalorder %s140, 0
      // Predicated region
      $region50: #{custom-call.11} parent=48 // pred_check
        %p142 = pneg %p141
      $region51: #{custom-call.11} parent=48 // pred_check_branch
        %144 = sbr.rel (%p142) target = $region53
      $region52: #{custom-call.11} parent=48 // pred_region
        %s145 = ssub.s32 %s140, 1
        %s146 = smul.u32 %s145, 128
        %s147 = sshra.s32 %s146, 4
        %s148 = scalar_lea.vmem %s2, %s147
        %v149 = vld [vmem:[%s2] sm:$0xff]
        // While loop
        $region54: #{custom-call.11} parent=52 // loop_pre_header
          _
        $region55: #{custom-call.11} parent=52 // loop_header
          %s150 = sphi %s2, %s172
          %s151 = sphi [#allocation2], %s173
          %v152 = vphi %v149, %v174
          %s153 = ssub.s32 %s148, 64
          %p154 = scmp.gt.s32.totalorder %s150, %s153
        $region56: #{custom-call.11} parent=52 // loop_header_branch
          %156 = sbr.rel (%p154) target = $region60
        $region57: #{custom-call.11} parent=52 // loop_body
          %157 = vst [vmem:[%s151] sm:$0xff] %v152
          %v158 = vld [vmem:[%s150 + $0x8] sm:$0xff]
          %159 = vst [vmem:[%s151 + $0x8] sm:$0xff] %v158
          %v160 = vld [vmem:[%s150 + $0x10] sm:$0xff]
          %161 = vst [vmem:[%s151 + $0x10] sm:$0xff] %v160
          %v162 = vld [vmem:[%s150 + $0x18] sm:$0xff]
          %163 = vst [vmem:[%s151 + $0x18] sm:$0xff] %v162
          %v164 = vld [vmem:[%s150 + $0x20] sm:$0xff]
          %165 = vst [vmem:[%s151 + $0x20] sm:$0xff] %v164
          %v166 = vld [vmem:[%s150 + $0x28] sm:$0xff]
          %167 = vst [vmem:[%s151 + $0x28] sm:$0xff] %v166
          %v168 = vld [vmem:[%s150 + $0x30] sm:$0xff]
          %169 = vst [vmem:[%s151 + $0x30] sm:$0xff] %v168
          %v170 = vld [vmem:[%s150 + $0x38] sm:$0xff]
          %171 = vst [vmem:[%s151 + $0x38] sm:$0xff] %v170
        $region58: #{custom-call.11} parent=52 // loop_footer
          %s172 = scalar_lea.vmem %s150, 64
          %s173 = scalar_lea.vmem %s151, 64
          %v174 = vld [vmem:[%s150 + $0x40] sm:$0xff]
        $region59: #{custom-call.11} parent=52 // loop_footer_branch
          %175 = sbr.rel target = $region55
        $region60: #{custom-call.11} parent=52 // loop_exit
          _
        // While loop
        $region61: #{custom-call.11} parent=52 // loop_pre_header
          _
        $region62: #{custom-call.11} parent=52 // loop_header
          %s176 = sphi %s150, %s184
          %s177 = sphi %s151, %s185
          %v178 = vphi %v152, %v178
          %p179 = scmp.gt.s32.totalorder %s176, %s148
        $region63: #{custom-call.11} parent=52 // loop_header_branch
          %181 = sbr.rel (%p179) target = $region67
        $region64: #{custom-call.11} parent=52 // loop_body
          %v182 = vld [vmem:[%s176] sm:$0xff]
          %183 = vst [vmem:[%s177] sm:$0xff] %v182
        $region65: #{custom-call.11} parent=52 // loop_footer
          %s184 = scalar_lea.vmem %s176, 8
          %s185 = scalar_lea.vmem %s177, 8
        $region66: #{custom-call.11} parent=52 // loop_footer_branch
          %186 = sbr.rel target = $region62
        $region67: #{custom-call.11} parent=52 // loop_exit
          _
      $region53: #{custom-call.11} parent=48 // pred_fallthru
        _
      %s187 = sand.u32 8, 7
      %s188 = sshllo.u32 0, %s187
      %s189 = smul.u32 %s140, 128
      %s190 = sshra.s32 %s189, 4
      %s191 = scalar_lea.vmem [#allocation2], %s190
      %s192 = smul.u32 %s140, 128
      %s193 = sshra.s32 %s192, 4
      %s194 = scalar_lea.vmem %s2, %s193
      %v195 = vld [vmem:[%s194] sm:%s188]
      %196 = vst [vmem:[%s191] sm:%s188] %v195
    $region49: #{custom-call.11} parent=1 // pred_fallthru
      _
    %p198 = scmp.gt.s32.totalorder 8, 0
    // Predicated region
    $region68: #{custom-call.11} parent=1 // pred_check
      %p199 = pneg %p198
    $region69: #{custom-call.11} parent=1 // pred_check_branch
      %201 = sbr.rel (%p199) target = $region71
    $region70: #{custom-call.11} parent=1 // pred_region
      %s202 = sshra.s32 8, 3
      %p203 = scmp.gt.s32.totalorder %s202, 0
      // Predicated region
      $region72: #{custom-call.11} parent=70 // pred_check
        %p204 = pneg %p203
      $region73: #{custom-call.11} parent=70 // pred_check_branch
        %206 = sbr.rel (%p204) target = $region75
      $region74: #{custom-call.11} parent=70 // pred_region
        %s207 = ssub.s32 %s202, 1
        %s208 = smul.u32 %s207, 128
        %s209 = sshra.s32 %s208, 4
        %s210 = scalar_lea.vmem %s3, %s209
        %v211 = vld [vmem:[%s3] sm:$0xff]
        // While loop
        $region76: #{custom-call.11} parent=74 // loop_pre_header
          _
        $region77: #{custom-call.11} parent=74 // loop_header
          %s212 = sphi %s3, %s234
          %s213 = sphi [#allocation3], %s235
          %v214 = vphi %v211, %v236
          %s215 = ssub.s32 %s210, 64
          %p216 = scmp.gt.s32.totalorder %s212, %s215
        $region78: #{custom-call.11} parent=74 // loop_header_branch
          %218 = sbr.rel (%p216) target = $region82
        $region79: #{custom-call.11} parent=74 // loop_body
          %219 = vst [vmem:[%s213] sm:$0xff] %v214
          %v220 = vld [vmem:[%s212 + $0x8] sm:$0xff]
          %221 = vst [vmem:[%s213 + $0x8] sm:$0xff] %v220
          %v222 = vld [vmem:[%s212 + $0x10] sm:$0xff]
          %223 = vst [vmem:[%s213 + $0x10] sm:$0xff] %v222
          %v224 = vld [vmem:[%s212 + $0x18] sm:$0xff]
          %225 = vst [vmem:[%s213 + $0x18] sm:$0xff] %v224
          %v226 = vld [vmem:[%s212 + $0x20] sm:$0xff]
          %227 = vst [vmem:[%s213 + $0x20] sm:$0xff] %v226
          %v228 = vld [vmem:[%s212 + $0x28] sm:$0xff]
          %229 = vst [vmem:[%s213 + $0x28] sm:$0xff] %v228
          %v230 = vld [vmem:[%s212 + $0x30] sm:$0xff]
          %231 = vst [vmem:[%s213 + $0x30] sm:$0xff] %v230
          %v232 = vld [vmem:[%s212 + $0x38] sm:$0xff]
          %233 = vst [vmem:[%s213 + $0x38] sm:$0xff] %v232
        $region80: #{custom-call.11} parent=74 // loop_footer
          %s234 = scalar_lea.vmem %s212, 64
          %s235 = scalar_lea.vmem %s213, 64
          %v236 = vld [vmem:[%s212 + $0x40] sm:$0xff]
        $region81: #{custom-call.11} parent=74 // loop_footer_branch
          %237 = sbr.rel target = $region77
        $region82: #{custom-call.11} parent=74 // loop_exit
          _
        // While loop
        $region83: #{custom-call.11} parent=74 // loop_pre_header
          _
        $region84: #{custom-call.11} parent=74 // loop_header
          %s238 = sphi %s212, %s246
          %s239 = sphi %s213, %s247
          %v240 = vphi %v214, %v240
          %p241 = scmp.gt.s32.totalorder %s238, %s210
        $region85: #{custom-call.11} parent=74 // loop_header_branch
          %243 = sbr.rel (%p241) target = $region89
        $region86: #{custom-call.11} parent=74 // loop_body
          %v244 = vld [vmem:[%s238] sm:$0xff]
          %245 = vst [vmem:[%s239] sm:$0xff] %v244
        $region87: #{custom-call.11} parent=74 // loop_footer
          %s246 = scalar_lea.vmem %s238, 8
          %s247 = scalar_lea.vmem %s239, 8
        $region88: #{custom-call.11} parent=74 // loop_footer_branch
          %248 = sbr.rel target = $region84
        $region89: #{custom-call.11} parent=74 // loop_exit
          _
      $region75: #{custom-call.11} parent=70 // pred_fallthru
        _
      %s249 = sand.u32 8, 7
      %s250 = sshllo.u32 0, %s249
      %s251 = smul.u32 %s202, 128
      %s252 = sshra.s32 %s251, 4
      %s253 = scalar_lea.vmem [#allocation3], %s252
      %s254 = smul.u32 %s202, 128
      %s255 = sshra.s32 %s254, 4
      %s256 = scalar_lea.vmem %s3, %s255
      %v257 = vld [vmem:[%s256] sm:%s250]
      %258 = vst [vmem:[%s253] sm:%s250] %v257
    $region71: #{custom-call.11} parent=1 // pred_fallthru
      _
    %s259 = smov [#allocation12]
    %v260 = vld [vmem:[#allocation0] sm:$0xff]
    %261 = vst [vmem:[%s259] sm:$0xff] %v260
    %s262 = smov [#allocation13]
    %v263 = vld [vmem:[#allocation1] sm:$0xff]
    %264 = vst [vmem:[%s262] sm:$0xff] %v263
    %s265 = smov [#allocation14]
    %v266 = vld [vmem:[#allocation2] sm:$0xff]
    %267 = vst [vmem:[%s265] sm:$0xff] %v266
    %s268 = smov [#allocation15]
    %v269 = vld [vmem:[#allocation3] sm:$0xff]
    %270 = vst [vmem:[%s268] sm:$0xff] %v269
    %271 = vst [vmem:[#allocation8] sm:$0xff] 0.0
    %272 = vst [vmem:[#allocation9] sm:$0xff] 0.0
    %273 = vst [vmem:[#allocation10] sm:$0xff] 0.0
    %274 = vst [vmem:[#allocation11] sm:$0xff] 0.0
    %s275 = smov [#allocation8]
    %v276 = vlaneseq
    %v277 = vand.u32 %v276, 127
    %v278 = vmov %v277
    %v279 = vlaneseq
    %v280 = vshrl.u32 %v279, 7
    %v281 = vmov %v280
    %v282 = vld [vmem:[%s275] sm:$0xff]
    %vm285 = vcmp.eq.s32.totalorder %v281, %v278
    %v286 = vsel %vm285, 1.0, %v282
    %287 = vst [vmem:[%s275] sm:$0xff] %v286
    %s288 = smov [#allocation11]
    %v289 = vlaneseq
    %v290 = vand.u32 %v289, 127
    %v291 = vmov %v290
    %v292 = vlaneseq
    %v293 = vshrl.u32 %v292, 7
    %v294 = vmov %v293
    %v295 = vld [vmem:[%s288] sm:$0xff]
    %vm298 = vcmp.eq.s32.totalorder %v294, %v291
    %v299 = vsel %vm298, 1.0, %v295
    %300 = vst [vmem:[%s288] sm:$0xff] %v299
    // While loop
    $region90: #{custom-call.11} parent=1 // loop_pre_header
      _
    $region91: #{custom-call.11} parent=1 // loop_header
      %s302 = sphi 0, %s844
      %v303 = vlaneseq
      %v304 = vand.u32 %v303, 127
      %v305 = vmov %v304
      %v306 = vlaneseq
      %v307 = vshrl.u32 %v306, 7
      %v308 = vmov %v307
      %s309 = smov [#allocation12]
      %v310 = vlaneseq
      %v311 = vand.u32 %v310, 127
      %vm312 = vcmp.ge.s32.totalorder %v311, 0
      %vm313 = vcmp.lt.s32.totalorder %v311, 8
      %vm314 = vmand %vm312, %vm313
      %v315 = vld [vmem:[%s309] sm:$0xff]
      %v316 = vsel %vm314, %v315, 0.0
      %v317 = vmul.f32 %v316, %v316
      %vm320 = vcmp.eq.s32.totalorder %v308, %v305
      %v321 = vsel %vm320, 0.0, %v317
      %v322 = vlaneseq
      %v323 = vand.u32 %v322, 127
      %v324 = vmov %v323
      %v325 = vlaneseq
      %v326 = vshrl.u32 %v325, 7
      %v327 = vmov %v326
      %s328 = smov [#allocation13]
      %v329 = vlaneseq
      %v330 = vand.u32 %v329, 127
      %vm331 = vcmp.ge.s32.totalorder %v330, 0
      %vm332 = vcmp.lt.s32.totalorder %v330, 8
      %vm333 = vmand %vm331, %vm332
      %v334 = vld [vmem:[%s328] sm:$0xff]
      %v335 = vsel %vm333, %v334, 0.0
      %v336 = vmul.f32 %v335, %v335
      %v337 = vadd.f32 %v321, %v336
      %v338 = vadd.f32 %v317, %v336
      %v339 = vlaneseq
      %v340 = vand.u32 %v339, 127
      %v341 = vmov %v340
      %v342 = vlaneseq
      %v343 = vshrl.u32 %v342, 7
      %v344 = vmov %v343
      %s345 = smov [#allocation14]
      %v346 = vlaneseq
      %v347 = vand.u32 %v346, 127
      %vm348 = vcmp.ge.s32.totalorder %v347, 0
      %vm349 = vcmp.lt.s32.totalorder %v347, 8
      %vm350 = vmand %vm348, %vm349
      %v351 = vld [vmem:[%s345] sm:$0xff]
      %v352 = vsel %vm350, %v351, 0.0
      %v353 = vmul.f32 %v352, %v352
      %v354 = vadd.f32 %v337, %v353
      %v355 = vadd.f32 %v338, %v353
      %v356 = vlaneseq
      %v357 = vand.u32 %v356, 127
      %v358 = vmov %v357
      %v359 = vlaneseq
      %v360 = vshrl.u32 %v359, 7
      %v361 = vmov %v360
      %s362 = smov [#allocation15]
      %v363 = vlaneseq
      %v364 = vand.u32 %v363, 127
      %vm365 = vcmp.ge.s32.totalorder %v364, 0
      %vm366 = vcmp.lt.s32.totalorder %v364, 8
      %vm367 = vmand %vm365, %vm366
      %v368 = vld [vmem:[%s362] sm:$0xff]
      %v369 = vsel %vm367, %v368, 0.0
      %v370 = vmul.f32 %v369, %v369
      %vm373 = vcmp.eq.s32.totalorder %v361, %v358
      %v374 = vsel %vm373, 0.0, %v370
      %v375 = vadd.f32 %v354, %v374
      %v376 = vadd.f32 %v355, %v370
      %377 = vadd.xlane.f32.xlu0 %v376
      %v378 = vpop.xlane.xlu0 %377
      %v379 = vrot.slane %v378, 4
      %v380 = vadd.f32 %v378, %v379
      %v381 = vrot.slane %v380, 2
      %v382 = vadd.f32 %v380, %v381
      %v383 = vrot.slane %v382, 1
      %v384 = vadd.f32 %v382, %v383
      %385 = vadd.xlane.f32.xlu0 %v375
      %v386 = vpop.xlane.xlu0 %385
      %v387 = vrot.slane %v386, 4
      %v388 = vadd.f32 %v386, %v387
      %v389 = vrot.slane %v388, 2
      %v390 = vadd.f32 %v388, %v389
      %v391 = vrot.slane %v390, 1
      %v392 = vadd.f32 %v390, %v391
      %s393 = vtos %v392
      %s394 = vtos %v384
      %s395 = smul.f32 1e-10, %s394
      %p396 = scmp.le.f32.partialorder %s393, %s395
      %p397 = scmp.ge.s32.totalorder %s302, 15
      %p398 = por %p396, %p397
    $region92: #{custom-call.11} parent=1 // loop_header_branch
      %846 = sbr.rel (%p398) target = $region96
    $region93: #{custom-call.11} parent=1 // loop_body
      loop: start=0, step=1, limit=15
      $region97: #{custom-call.11} parent=93 // loop_pre_header
        _
      $region98: #{custom-call.11} parent=93 // loop_header
        %s400 = sphi 0, %s404
        %p401 = scmp.ge.s32.totalorder %s400, 15
      $region99: #{custom-call.11} parent=93 // loop_header_branch
        %403 = sbr.rel (%p401) target = $region103
      $region100: #{custom-call.11} parent=93 // loop_body
        #allocation16 [shape = 'f32[1024]{0}', space=vmem, size = 0x1000, scoped, tag = 'a_tl_diag vmem']
        #allocation17 [shape = 'f32[1024]{0}', space=vmem, size = 0x1000, scoped, tag = 'a_tr_diag vmem']
        #allocation18 [shape = 'f32[1024]{0}', space=vmem, size = 0x1000, scoped, tag = 'a_br_diag vmem']
        #allocation19 [shape = 'f32[1024]{0}', space=vmem, size = 0x1000, scoped, tag = 'rt1 vmem']
        #allocation20 [shape = 'f32[1024]{0}', space=vmem, size = 0x1000, scoped, tag = 'rt2 vmem']
        #allocation21 [shape = 'f32[1024]{0}', space=vmem, size = 0x1000, scoped, tag = 'c vmem']
        #allocation22 [shape = 'f32[1024]{0}', space=vmem, size = 0x1000, scoped, tag = 's vmem']
        #allocation23 [shape = 'f32[4096]{0}', space=vmem, size = 0x4000, scoped, tag = 'c broadcast']
        #allocation24 [shape = 'f32[4096]{0}', space=vmem, size = 0x4000, scoped, tag = 's broadcast']
        %s405 = smov [#allocation12]
        %s406 = smov [#allocation16]
        %v407 = vlaneseq
        %v408 = vand.u32 %v407, 127
        %v409 = vmov %v408
        %v410 = vlaneseq
        %v411 = vshrl.u32 %v410, 7
        %v412 = vmov %v411
        %v413 = vld [vmem:[%s405] sm:$0xff]
        %vm416 = vcmp.eq.s32.totalorder %v412, %v409
        %v417 = vsel %vm416, %v413, 0.0
        %v418 = vrot.slane %v417, 4
        %v419 = vadd.f32 %v417, %v418
        %v420 = vrot.slane %v419, 2
        %v421 = vadd.f32 %v419, %v420
        %v422 = vrot.slane %v421, 1
        %v423 = vadd.f32 %v421, %v422
        %424 = vst [vmem:[%s406] sm:$0x1] %v423
        %s425 = smov [#allocation13]
        %s426 = smov [#allocation17]
        %v427 = vlaneseq
        %v428 = vand.u32 %v427, 127
        %v429 = vmov %v428
        %v430 = vlaneseq
        %v431 = vshrl.u32 %v430, 7
        %v432 = vmov %v431
        %v433 = vld [vmem:[%s425] sm:$0xff]
        %vm436 = vcmp.eq.s32.totalorder %v432, %v429
        %v437 = vsel %vm436, %v433, 0.0
        %v438 = vrot.slane %v437, 4
        %v439 = vadd.f32 %v437, %v438
        %v440 = vrot.slane %v439, 2
        %v441 = vadd.f32 %v439, %v440
        %v442 = vrot.slane %v441, 1
        %v443 = vadd.f32 %v441, %v442
        %444 = vst [vmem:[%s426] sm:$0x1] %v443
        %s445 = smov [#allocation15]
        %s446 = smov [#allocation18]
        %v447 = vlaneseq
        %v448 = vand.u32 %v447, 127
        %v449 = vmov %v448
        %v450 = vlaneseq
        %v451 = vshrl.u32 %v450, 7
        %v452 = vmov %v451
        %v453 = vld [vmem:[%s445] sm:$0xff]
        %vm456 = vcmp.eq.s32.totalorder %v452, %v449
        %v457 = vsel %vm456, %v453, 0.0
        %v458 = vrot.slane %v457, 4
        %v459 = vadd.f32 %v457, %v458
        %v460 = vrot.slane %v459, 2
        %v461 = vadd.f32 %v459, %v460
        %v462 = vrot.slane %v461, 1
        %v463 = vadd.f32 %v461, %v462
        %464 = vst [vmem:[%s446] sm:$0x1] %v463
        %s465 = smov [#allocation21]
        %s466 = smov [#allocation22]
        %s467 = smov [#allocation16]
        %v468 = vld [vmem:[%s467] sm:$0xff]
        %s469 = smov [#allocation17]
        %v470 = vld [vmem:[%s469] sm:$0xff]
        %s471 = smov [#allocation18]
        %v472 = vld [vmem:[%s471] sm:$0xff]
        %v473 = vsub.f32 %v472, %v468
        %v474 = vmul.f32 2.0, %v470
        %v475 = vrcp.pop %v474
        %v476 = vmul.f32 %v473, %v475
        %vm477 = vcmp.ge.f32.partialorder %v476, 0.0
        %v478 = vmul.f32 %v476, %v476
        %v479 = vadd.f32 1.0, %v478
        %v480 = vrsqrt.pop %v479
        %v481 = vmul.f32 %v479, %v480
        %vm482 = vcmp.eq.f32.partialorder %v479, inf
        %v483 = vsel %vm482, %v479, %v481
        %vm484 = vcmp.eq.f32.partialorder %v479, 0.0
        %v485 = vand.u32 %v479, 2147483648
        %v486 = vsel %vm484, %v485, %v483
        %v487 = vxor.u32 %v486, 2147483648
        %v488 = vsel %vm477, %v486, %v487
        %v489 = vadd.f32 %v476, %v488
        %v490 = vrcp.pop %v489
        %v491 = vand.u32 2147483647, %v468
        %v492 = vand.u32 2147483647, %v470
        %v493 = vand.u32 2147483647, %v472
        %v494 = vmin.f32 %v491, %v493
        %v495 = vmul.f32 1.1920929e-08, %v494
        %vm496 = vcmp.le.f32.partialorder %v492, %v495
        %v497 = vsel %vm496, 0.0, %v490
        %v498 = vmul.f32 %v497, %v497
        %v499 = vadd.f32 1.0, %v498
        %v500 = vrsqrt.pop %v499
        %v501 = vmul.f32 %v497, %v500
        %v502 = vmul.f32 %v497, %v470
        %v503 = vsub.f32 %v468, %v502
        %v504 = vmul.f32 %v497, %v470
        %v505 = vadd.f32 %v472, %v504
        %s506 = smov [#allocation19]
        %507 = vst [vmem:[%s506] sm:$0xff] %v503
        %s508 = smov [#allocation20]
        %509 = vst [vmem:[%s508] sm:$0xff] %v505
        %s510 = smov %s465
        %511 = vst [vmem:[%s510] sm:$0xff] %v500
        %s512 = smov %s466
        %513 = vst [vmem:[%s512] sm:$0xff] %v501
        %s514 = smov [#allocation21]
        %v515 = vld [vmem:[%s514] ss:$0 sm:$0xff]
        %v516 = vlaneseq
        %v517 = vand.u32 %v516, 127
        %v518 = vmov %v517
        %v519 = vlaneseq
        %v520 = vshrl.u32 %v519, 7
        %v521 = vmov %v520
        %vm523 = vcmp.eq.s32.totalorder %v521, %v518
        %v524 = vsel %vm523, %v515, 0.0
        %525 = vadd.xlane.f32.xlu0 %v524
        %v526 = vpop.xlane.xlu0 %525
        %s527 = smov [#allocation23]
        %528 = vst [vmem:[%s527] sm:$0xff] %v526
        %s529 = smov [#allocation22]
        %v530 = vld [vmem:[%s529] ss:$0 sm:$0xff]
        %v531 = vlaneseq
        %v532 = vand.u32 %v531, 127
        %v533 = vmov %v532
        %v534 = vlaneseq
        %v535 = vshrl.u32 %v534, 7
        %v536 = vmov %v535
        %vm538 = vcmp.eq.s32.totalorder %v536, %v533
        %v539 = vsel %vm538, %v530, 0.0
        %540 = vadd.xlane.f32.xlu0 %v539
        %v541 = vpop.xlane.xlu0 %540
        %s542 = smov [#allocation24]
        %543 = vst [vmem:[%s542] sm:$0xff] %v541
        %s544 = smov [#allocation23]
        %v545 = vld [vmem:[%s544] sm:$0xff]
        %s546 = smov [#allocation24]
        %v547 = vld [vmem:[%s546] sm:$0xff]
        %s548 = smov [#allocation12]
        %s549 = smov [#allocation13]
        %s550 = smov [#allocation14]
        %s551 = smov [#allocation15]
        %v552 = vld [vmem:[%s548] sm:$0xff]
        %v553 = vld [vmem:[%s549] sm:$0xff]
        %v554 = vld [vmem:[%s550] sm:$0xff]
        %v555 = vld [vmem:[%s551] sm:$0xff]
        %v556 = vmul.f32 %v545, %v552
        %v557 = vmul.f32 %v547, %v554
        %v558 = vsub.f32 %v556, %v557
        %v559 = vmul.f32 %v545, %v553
        %v560 = vmul.f32 %v547, %v555
        %v561 = vsub.f32 %v559, %v560
        %v562 = vmul.f32 %v547, %v552
        %v563 = vmul.f32 %v545, %v554
        %v564 = vadd.f32 %v562, %v563
        %v565 = vmul.f32 %v547, %v553
        %v566 = vmul.f32 %v545, %v555
        %v567 = vadd.f32 %v565, %v566
        %568 = vst [vmem:[%s548] sm:$0xff] %v558
        %569 = vst [vmem:[%s549] sm:$0xff] %v561
        %570 = vst [vmem:[%s550] sm:$0xff] %v564
        %571 = vst [vmem:[%s551] sm:$0xff] %v567
        %s572 = smov [#allocation21]
        %v573 = vld [vmem:[%s572] ss:$0 sm:$0xff]
        %s574 = smov [#allocation22]
        %v575 = vld [vmem:[%s574] ss:$0 sm:$0xff]
        %s576 = smov [#allocation12]
        %s577 = smov [#allocation13]
        %s578 = smov [#allocation14]
        %s579 = smov [#allocation15]
        %v580 = vld [vmem:[%s576] sm:$0xff]
        %v581 = vld [vmem:[%s577] sm:$0xff]
        %v582 = vld [vmem:[%s578] sm:$0xff]
        %v583 = vld [vmem:[%s579] sm:$0xff]
        %v584 = vmul.f32 %v573, %v580
        %v585 = vmul.f32 %v575, %v581
        %v586 = vsub.f32 %v584, %v585
        %v587 = vmul.f32 %v575, %v580
        %v588 = vmul.f32 %v573, %v581
        %v589 = vadd.f32 %v587, %v588
        %v590 = vmul.f32 %v573, %v582
        %v591 = vmul.f32 %v575, %v583
        %v592 = vsub.f32 %v590, %v591
        %v593 = vmul.f32 %v575, %v582
        %v594 = vmul.f32 %v573, %v583
        %v595 = vadd.f32 %v593, %v594
        %596 = vst [vmem:[%s576] sm:$0xff] %v586
        %597 = vst [vmem:[%s577] sm:$0xff] %v589
        %598 = vst [vmem:[%s578] sm:$0xff] %v592
        %599 = vst [vmem:[%s579] sm:$0xff] %v595
        %s600 = smov [#allocation12]
        %s601 = smov [#allocation19]
        %v602 = vlaneseq
        %v603 = vand.u32 %v602, 127
        %v604 = vmov %v603
        %v605 = vlaneseq
        %v606 = vshrl.u32 %v605, 7
        %v607 = vmov %v606
        %v608 = vld [vmem:[%s601] ss:$0 sm:$0xff]
        %v609 = vld [vmem:[%s600] sm:$0xff]
        %vm612 = vcmp.eq.s32.totalorder %v607, %v604
        %v613 = vsel %vm612, %v608, %v609
        %614 = vst [vmem:[%s600] sm:$0xff] %v613
        %s615 = smov [#allocation13]
        %v616 = vlaneseq
        %v617 = vand.u32 %v616, 127
        %v618 = vmov %v617
        %v619 = vlaneseq
        %v620 = vshrl.u32 %v619, 7
        %v621 = vmov %v620
        %v622 = vld [vmem:[%s615] sm:$0xff]
        %vm625 = vcmp.eq.s32.totalorder %v621, %v618
        %v626 = vsel %vm625, 0.0, %v622
        %627 = vst [vmem:[%s615] sm:$0xff] %v626
        %s628 = smov [#allocation14]
        %v629 = vlaneseq
        %v630 = vand.u32 %v629, 127
        %v631 = vmov %v630
        %v632 = vlaneseq
        %v633 = vshrl.u32 %v632, 7
        %v634 = vmov %v633
        %v635 = vld [vmem:[%s628] sm:$0xff]
        %vm638 = vcmp.eq.s32.totalorder %v634, %v631
        %v639 = vsel %vm638, 0.0, %v635
        %640 = vst [vmem:[%s628] sm:$0xff] %v639
        %s641 = smov [#allocation15]
        %s642 = smov [#allocation20]
        %v643 = vlaneseq
        %v644 = vand.u32 %v643, 127
        %v645 = vmov %v644
        %v646 = vlaneseq
        %v647 = vshrl.u32 %v646, 7
        %v648 = vmov %v647
        %v649 = vld [vmem:[%s642] ss:$0 sm:$0xff]
        %v650 = vld [vmem:[%s641] sm:$0xff]
        %vm653 = vcmp.eq.s32.totalorder %v648, %v645
        %v654 = vsel %vm653, %v649, %v650
        %655 = vst [vmem:[%s641] sm:$0xff] %v654
        %s656 = smov [#allocation12]
        %s657 = smov [#allocation13]
        %v658 = vld [vmem:[%s657] sm:$0xff]
        %659 = vrot.lane.b32.xlu0 %v658, 1
        %v660 = vpop.permute.xlu0 %659
        %v661 = vld [vmem:[%s656] sm:$0xff]
        %v662 = vld [vmem:[%s656] sm:$0xff]
        %663 = vrot.lane.b32.xlu0 %v662, 1
        %v664 = vpop.permute.xlu0 %663
        %v665 = vlaneseq
        %v666 = vand.u32 %v665, 127
        %vm667 = vcmp.eq.s32.totalorder %v666, 0
        %v668 = vsel %vm667, %v662, %v664
        %v669 = vlaneseq
        %v670 = vand.u32 %v669, 127
        %vm671 = vcmp.eq.s32.totalorder %v670, 1
        %v672 = vsel %vm671, %v660, %v668
        %v673 = vlaneseq
        %v674 = vand.u32 %v673, 127
        %vm675 = vcmp.ge.s32.totalorder %v674, 0
        %vm676 = vcmp.lt.s32.totalorder %v674, 8
        %vm677 = vmand %vm675, %vm676
        %v678 = vsel %vm677, %v672, 0.0
        %v679 = vld [vmem:[%s657] sm:$0xff]
        %680 = vrot.lane.b32.xlu0 %v679, 127
        %v681 = vpop.permute.xlu0 %680
        %v682 = vlaneseq
        %v683 = vand.u32 %v682, 127
        %vm684 = vcmp.eq.s32.totalorder %v683, 7
        %v685 = vsel %vm684, %v661, %v681
        %686 = vst [vmem:[%s656] sm:$0xff] %v678
        %687 = vst [vmem:[%s657] sm:$0xff] %v685
        %s688 = smov [#allocation14]
        %s689 = smov [#allocation15]
        %v690 = vld [vmem:[%s689] sm:$0xff]
        %691 = vrot.lane.b32.xlu0 %v690, 1
        %v692 = vpop.permute.xlu0 %691
        %v693 = vld [vmem:[%s688] sm:$0xff]
        %v694 = vld [vmem:[%s688] sm:$0xff]
        %695 = vrot.lane.b32.xlu0 %v694, 1
        %v696 = vpop.permute.xlu0 %695
        %v697 = vlaneseq
        %v698 = vand.u32 %v697, 127
        %vm699 = vcmp.eq.s32.totalorder %v698, 0
        %v700 = vsel %vm699, %v694, %v696
        %v701 = vlaneseq
        %v702 = vand.u32 %v701, 127
        %vm703 = vcmp.eq.s32.totalorder %v702, 1
        %v704 = vsel %vm703, %v692, %v700
        %v705 = vlaneseq
        %v706 = vand.u32 %v705, 127
        %vm707 = vcmp.ge.s32.totalorder %v706, 0
        %vm708 = vcmp.lt.s32.totalorder %v706, 8
        %vm709 = vmand %vm707, %vm708
        %v710 = vsel %vm709, %v704, 0.0
        %v711 = vld [vmem:[%s689] sm:$0xff]
        %712 = vrot.lane.b32.xlu0 %v711, 127
        %v713 = vpop.permute.xlu0 %712
        %v714 = vlaneseq
        %v715 = vand.u32 %v714, 127
        %vm716 = vcmp.eq.s32.totalorder %v715, 7
        %v717 = vsel %vm716, %v693, %v713
        %718 = vst [vmem:[%s688] sm:$0xff] %v710
        %719 = vst [vmem:[%s689] sm:$0xff] %v717
        %s720 = smov [#allocation12]
        %s721 = smov [#allocation14]
        %v722 = vld [vmem:[%s720] ss:$0 sm:$0xff]
        %s724 = scalar_lea.vmem %s720, 4294967295
        %v725 = vld [vmem:[%s724] sm:$0xfe]
        %v726 = vlaneseq
        %v727 = vshrl.u32 %v726, 7
        %vm728 = vcmp.eq.s32.totalorder %v727, 0
        %v729 = vsel %vm728, %v722, %v725
        %s730 = scalar_lea.vmem %s720, 7
        %v731 = vld [vmem:[%s730] ss:$0 sm:$0xff]
        %732 = vst [vmem:[%s720] sm:$0xff] %v729
        %v733 = vld [vmem:[%s721] ss:$0 sm:$0xff]
        %s734 = scalar_lea.vmem %s720, 1
        %735 = vst [vmem:[%s734] sm:$0x1] %v733
        %s736 = scalar_lea.vmem %s721, 1
        %v737 = vld [vmem:[%s736] sm:$0x7f]
        %v738 = vlaneseq
        %v739 = vshrl.u32 %v738, 7
        %vm740 = vcmp.eq.s32.totalorder %v739, 7
        %v741 = vsel %vm740, %v731, %v737
        %v742 = vld [vmem:[%s721] ss:$0 sm:$0xff]
        %743 = vst [vmem:[%s721] sm:$0xff] %v741
        %s744 = smov [#allocation13]
        %s745 = smov [#allocation15]
        %v746 = vld [vmem:[%s744] ss:$0 sm:$0xff]
        %s748 = scalar_lea.vmem %s744, 4294967295
        %v749 = vld [vmem:[%s748] sm:$0xfe]
        %v750 = vlaneseq
        %v751 = vshrl.u32 %v750, 7
        %vm752 = vcmp.eq.s32.totalorder %v751, 0
        %v753 = vsel %vm752, %v746, %v749
        %s754 = scalar_lea.vmem %s744, 7
        %v755 = vld [vmem:[%s754] ss:$0 sm:$0xff]
        %756 = vst [vmem:[%s744] sm:$0xff] %v753
        %v757 = vld [vmem:[%s745] ss:$0 sm:$0xff]
        %s758 = scalar_lea.vmem %s744, 1
        %759 = vst [vmem:[%s758] sm:$0x1] %v757
        %s760 = scalar_lea.vmem %s745, 1
        %v761 = vld [vmem:[%s760] sm:$0x7f]
        %v762 = vlaneseq
        %v763 = vshrl.u32 %v762, 7
        %vm764 = vcmp.eq.s32.totalorder %v763, 7
        %v765 = vsel %vm764, %v755, %v761
        %v766 = vld [vmem:[%s745] ss:$0 sm:$0xff]
        %767 = vst [vmem:[%s745] sm:$0xff] %v765
        %s768 = smov [#allocation23]
        %v769 = vld [vmem:[%s768] sm:$0xff]
        %s770 = smov [#allocation24]
        %v771 = vld [vmem:[%s770] sm:$0xff]
        %s772 = smov [#allocation8]
        %s773 = smov [#allocation9]
        %s774 = smov [#allocation10]
        %s775 = smov [#allocation11]
        %v776 = vld [vmem:[%s772] sm:$0xff]
        %v777 = vld [vmem:[%s773] sm:$0xff]
        %v778 = vld [vmem:[%s774] sm:$0xff]
        %v779 = vld [vmem:[%s775] sm:$0xff]
        %v780 = vmul.f32 %v769, %v776
        %v781 = vmul.f32 %v771, %v778
        %v782 = vsub.f32 %v780, %v781
        %v783 = vmul.f32 %v769, %v777
        %v784 = vmul.f32 %v771, %v779
        %v785 = vsub.f32 %v783, %v784
        %v786 = vmul.f32 %v771, %v776
        %v787 = vmul.f32 %v769, %v778
        %v788 = vadd.f32 %v786, %v787
        %v789 = vmul.f32 %v771, %v777
        %v790 = vmul.f32 %v769, %v779
        %v791 = vadd.f32 %v789, %v790
        %792 = vst [vmem:[%s772] sm:$0xff] %v782
        %793 = vst [vmem:[%s773] sm:$0xff] %v785
        %794 = vst [vmem:[%s774] sm:$0xff] %v788
        %795 = vst [vmem:[%s775] sm:$0xff] %v791
        %s796 = smov [#allocation8]
        %s797 = smov [#allocation10]
        %v798 = vld [vmem:[%s796] ss:$0 sm:$0xff]
        %s800 = scalar_lea.vmem %s796, 4294967295
        %v801 = vld [vmem:[%s800] sm:$0xfe]
        %v802 = vlaneseq
        %v803 = vshrl.u32 %v802, 7
        %vm804 = vcmp.eq.s32.totalorder %v803, 0
        %v805 = vsel %vm804, %v798, %v801
        %s806 = scalar_lea.vmem %s796, 7
        %v807 = vld [vmem:[%s806] ss:$0 sm:$0xff]
        %808 = vst [vmem:[%s796] sm:$0xff] %v805
        %v809 = vld [vmem:[%s797] ss:$0 sm:$0xff]
        %s810 = scalar_lea.vmem %s796, 1
        %811 = vst [vmem:[%s810] sm:$0x1] %v809
        %s812 = scalar_lea.vmem %s797, 1
        %v813 = vld [vmem:[%s812] sm:$0x7f]
        %v814 = vlaneseq
        %v815 = vshrl.u32 %v814, 7
        %vm816 = vcmp.eq.s32.totalorder %v815, 7
        %v817 = vsel %vm816, %v807, %v813
        %v818 = vld [vmem:[%s797] ss:$0 sm:$0xff]
        %819 = vst [vmem:[%s797] sm:$0xff] %v817
        %s820 = smov [#allocation9]
        %s821 = smov [#allocation11]
        %v822 = vld [vmem:[%s820] ss:$0 sm:$0xff]
        %s824 = scalar_lea.vmem %s820, 4294967295
        %v825 = vld [vmem:[%s824] sm:$0xfe]
        %v826 = vlaneseq
        %v827 = vshrl.u32 %v826, 7
        %vm828 = vcmp.eq.s32.totalorder %v827, 0
        %v829 = vsel %vm828, %v822, %v825
        %s830 = scalar_lea.vmem %s820, 7
        %v831 = vld [vmem:[%s830] ss:$0 sm:$0xff]
        %832 = vst [vmem:[%s820] sm:$0xff] %v829
        %v833 = vld [vmem:[%s821] ss:$0 sm:$0xff]
        %s834 = scalar_lea.vmem %s820, 1
        %835 = vst [vmem:[%s834] sm:$0x1] %v833
        %s836 = scalar_lea.vmem %s821, 1
        %v837 = vld [vmem:[%s836] sm:$0x7f]
        %v838 = vlaneseq
        %v839 = vshrl.u32 %v838, 7
        %vm840 = vcmp.eq.s32.totalorder %v839, 7
        %v841 = vsel %vm840, %v831, %v837
        %v842 = vld [vmem:[%s821] ss:$0 sm:$0xff]
        %843 = vst [vmem:[%s821] sm:$0xff] %v841
      $region101: #{custom-call.11} parent=93 // loop_footer
        %s404 = sadd.s32 1, %s400
      $region102: #{custom-call.11} parent=93 // loop_footer_branch
        %399 = sbr.rel target = $region98
      $region103: #{custom-call.11} parent=93 // loop_exit
        _
      %s844 = sadd.s32 %s302, 1
    $region94: #{custom-call.11} parent=1 // loop_footer
      _
    $region95: #{custom-call.11} parent=1 // loop_footer_branch
      %301 = sbr.rel target = $region91
    $region96: #{custom-call.11} parent=1 // loop_exit
      _
    %s847 = smov [#allocation12]
    %s848 = smov [#allocation4]
    %v849 = vlaneseq
    %v850 = vand.u32 %v849, 127
    %v851 = vmov %v850
    %v852 = vlaneseq
    %v853 = vshrl.u32 %v852, 7
    %v854 = vmov %v853
    %v855 = vld [vmem:[%s847] sm:$0xff]
    %vm858 = vcmp.eq.s32.totalorder %v854, %v851
    %v859 = vsel %vm858, %v855, 0.0
    %v860 = vrot.slane %v859, 4
    %v861 = vadd.f32 %v859, %v860
    %v862 = vrot.slane %v861, 2
    %v863 = vadd.f32 %v861, %v862
    %v864 = vrot.slane %v863, 1
    %v865 = vadd.f32 %v863, %v864
    %866 = vst [vmem:[%s848] sm:$0x1] %v865
    %s867 = smov [#allocation15]
    %s868 = smov [#allocation6]
    %v869 = vlaneseq
    %v870 = vand.u32 %v869, 127
    %v871 = vmov %v870
    %v872 = vlaneseq
    %v873 = vshrl.u32 %v872, 7
    %v874 = vmov %v873
    %v875 = vld [vmem:[%s867] sm:$0xff]
    %vm878 = vcmp.eq.s32.totalorder %v874, %v871
    %v879 = vsel %vm878, %v875, 0.0
    %v880 = vrot.slane %v879, 4
    %v881 = vadd.f32 %v879, %v880
    %v882 = vrot.slane %v881, 2
    %v883 = vadd.f32 %v881, %v882
    %v884 = vrot.slane %v883, 1
    %v885 = vadd.f32 %v883, %v884
    %886 = vst [vmem:[%s868] sm:$0x1] %v885
    %s888 = sshllo.u32 0, 1
    %v890 = vld [vmem:[#allocation4] sm:%s888]
    %s891 = sshllo.u32 0, 1
    %892 = vst [vmem:[#allocation5] sm:%s891] %v890
    %s894 = sshllo.u32 0, 1
    %v896 = vld [vmem:[#allocation6] sm:%s894]
    %s897 = sshllo.u32 0, 1
    %898 = vst [vmem:[#allocation7] sm:%s897] %v896
    // Predicated region
    $region104: #{custom-call.11} parent=1 // pred_check
      _
    $region105: #{custom-call.11} parent=1 // pred_check_branch
      %900 = sbr.rel (0) target = $region107
    $region106: #{custom-call.11} parent=1 // pred_region
      %p902 = scmp.gt.s32.totalorder 1, 0
      // Predicated region
      $region108: #{custom-call.11} parent=106 // pred_check
        %p903 = pneg %p902
      $region109: #{custom-call.11} parent=106 // pred_check_branch
        %905 = sbr.rel (%p903) target = $region111
      $region110: #{custom-call.11} parent=106 // pred_region
        %s906 = sshra.s32 1, 3
        %p907 = scmp.gt.s32.totalorder %s906, 0
        // Predicated region
        $region112: #{custom-call.11} parent=110 // pred_check
          %p908 = pneg %p907
        $region113: #{custom-call.11} parent=110 // pred_check_branch
          %910 = sbr.rel (%p908) target = $region115
        $region114: #{custom-call.11} parent=110 // pred_region
          %s911 = ssub.s32 %s906, 1
          %s912 = smul.u32 %s911, 128
          %s913 = sshra.s32 %s912, 4
          %s914 = scalar_lea.vmem [#allocation5], %s913
          %v915 = vld [vmem:[#allocation5] sm:$0xff]
          // While loop
          $region116: #{custom-call.11} parent=114 // loop_pre_header
            _
          $region117: #{custom-call.11} parent=114 // loop_header
            %s916 = sphi [#allocation5], %s938
            %s917 = sphi %s4, %s939
            %v918 = vphi %v915, %v940
            %s919 = ssub.s32 %s914, 64
            %p920 = scmp.gt.s32.totalorder %s916, %s919
          $region118: #{custom-call.11} parent=114 // loop_header_branch
            %922 = sbr.rel (%p920) target = $region122
          $region119: #{custom-call.11} parent=114 // loop_body
            %923 = vst [vmem:[%s917] sm:$0xff] %v918
            %v924 = vld [vmem:[%s916 + $0x8] sm:$0xff]
            %925 = vst [vmem:[%s917 + $0x8] sm:$0xff] %v924
            %v926 = vld [vmem:[%s916 + $0x10] sm:$0xff]
            %927 = vst [vmem:[%s917 + $0x10] sm:$0xff] %v926
            %v928 = vld [vmem:[%s916 + $0x18] sm:$0xff]
            %929 = vst [vmem:[%s917 + $0x18] sm:$0xff] %v928
            %v930 = vld [vmem:[%s916 + $0x20] sm:$0xff]
            %931 = vst [vmem:[%s917 + $0x20] sm:$0xff] %v930
            %v932 = vld [vmem:[%s916 + $0x28] sm:$0xff]
            %933 = vst [vmem:[%s917 + $0x28] sm:$0xff] %v932
            %v934 = vld [vmem:[%s916 + $0x30] sm:$0xff]
            %935 = vst [vmem:[%s917 + $0x30] sm:$0xff] %v934
            %v936 = vld [vmem:[%s916 + $0x38] sm:$0xff]
            %937 = vst [vmem:[%s917 + $0x38] sm:$0xff] %v936
          $region120: #{custom-call.11} parent=114 // loop_footer
            %s938 = scalar_lea.vmem %s916, 64
            %s939 = scalar_lea.vmem %s917, 64
            %v940 = vld [vmem:[%s916 + $0x40] sm:$0xff]
          $region121: #{custom-call.11} parent=114 // loop_footer_branch
            %941 = sbr.rel target = $region117
          $region122: #{custom-call.11} parent=114 // loop_exit
            _
          // While loop
          $region123: #{custom-call.11} parent=114 // loop_pre_header
            _
          $region124: #{custom-call.11} parent=114 // loop_header
            %s942 = sphi %s916, %s950
            %s943 = sphi %s917, %s951
            %v944 = vphi %v918, %v944
            %p945 = scmp.gt.s32.totalorder %s942, %s914
          $region125: #{custom-call.11} parent=114 // loop_header_branch
            %947 = sbr.rel (%p945) target = $region129
          $region126: #{custom-call.11} parent=114 // loop_body
            %v948 = vld [vmem:[%s942] sm:$0xff]
            %949 = vst [vmem:[%s943] sm:$0xff] %v948
          $region127: #{custom-call.11} parent=114 // loop_footer
            %s950 = scalar_lea.vmem %s942, 8
            %s951 = scalar_lea.vmem %s943, 8
          $region128: #{custom-call.11} parent=114 // loop_footer_branch
            %952 = sbr.rel target = $region124
          $region129: #{custom-call.11} parent=114 // loop_exit
            _
        $region115: #{custom-call.11} parent=110 // pred_fallthru
          _
        %s953 = sand.u32 1, 7
        %s954 = sshllo.u32 0, %s953
        %s955 = smul.u32 %s906, 128
        %s956 = sshra.s32 %s955, 4
        %s957 = scalar_lea.vmem %s4, %s956
        %s958 = smul.u32 %s906, 128
        %s959 = sshra.s32 %s958, 4
        %s960 = scalar_lea.vmem [#allocation5], %s959
        %v961 = vld [vmem:[%s960] sm:%s954]
        %962 = vst [vmem:[%s957] sm:%s954] %v961
      $region111: #{custom-call.11} parent=106 // pred_fallthru
        _
    $region107: #{custom-call.11} parent=1 // pred_fallthru
      _
    // Predicated region
    $region130: #{custom-call.11} parent=1 // pred_check
      _
    $region131: #{custom-call.11} parent=1 // pred_check_branch
      %964 = sbr.rel (0) target = $region133
    $region132: #{custom-call.11} parent=1 // pred_region
      %p966 = scmp.gt.s32.totalorder 1, 0
      // Predicated region
      $region134: #{custom-call.11} parent=132 // pred_check
        %p967 = pneg %p966
      $region135: #{custom-call.11} parent=132 // pred_check_branch
        %969 = sbr.rel (%p967) target = $region137
      $region136: #{custom-call.11} parent=132 // pred_region
        %s970 = sshra.s32 1, 3
        %p971 = scmp.gt.s32.totalorder %s970, 0
        // Predicated region
        $region138: #{custom-call.11} parent=136 // pred_check
          %p972 = pneg %p971
        $region139: #{custom-call.11} parent=136 // pred_check_branch
          %974 = sbr.rel (%p972) target = $region141
        $region140: #{custom-call.11} parent=136 // pred_region
          %s975 = ssub.s32 %s970, 1
          %s976 = smul.u32 %s975, 128
          %s977 = sshra.s32 %s976, 4
          %s978 = scalar_lea.vmem [#allocation7], %s977
          %v979 = vld [vmem:[#allocation7] sm:$0xff]
          // While loop
          $region142: #{custom-call.11} parent=140 // loop_pre_header
            _
          $region143: #{custom-call.11} parent=140 // loop_header
            %s980 = sphi [#allocation7], %s1002
            %s981 = sphi %s5, %s1003
            %v982 = vphi %v979, %v1004
            %s983 = ssub.s32 %s978, 64
            %p984 = scmp.gt.s32.totalorder %s980, %s983
          $region144: #{custom-call.11} parent=140 // loop_header_branch
            %986 = sbr.rel (%p984) target = $region148
          $region145: #{custom-call.11} parent=140 // loop_body
            %987 = vst [vmem:[%s981] sm:$0xff] %v982
            %v988 = vld [vmem:[%s980 + $0x8] sm:$0xff]
            %989 = vst [vmem:[%s981 + $0x8] sm:$0xff] %v988
            %v990 = vld [vmem:[%s980 + $0x10] sm:$0xff]
            %991 = vst [vmem:[%s981 + $0x10] sm:$0xff] %v990
            %v992 = vld [vmem:[%s980 + $0x18] sm:$0xff]
            %993 = vst [vmem:[%s981 + $0x18] sm:$0xff] %v992
            %v994 = vld [vmem:[%s980 + $0x20] sm:$0xff]
            %995 = vst [vmem:[%s981 + $0x20] sm:$0xff] %v994
            %v996 = vld [vmem:[%s980 + $0x28] sm:$0xff]
            %997 = vst [vmem:[%s981 + $0x28] sm:$0xff] %v996
            %v998 = vld [vmem:[%s980 + $0x30] sm:$0xff]
            %999 = vst [vmem:[%s981 + $0x30] sm:$0xff] %v998
            %v1000 = vld [vmem:[%s980 + $0x38] sm:$0xff]
            %1001 = vst [vmem:[%s981 + $0x38] sm:$0xff] %v1000
          $region146: #{custom-call.11} parent=140 // loop_footer
            %s1002 = scalar_lea.vmem %s980, 64
            %s1003 = scalar_lea.vmem %s981, 64
            %v1004 = vld [vmem:[%s980 + $0x40] sm:$0xff]
          $region147: #{custom-call.11} parent=140 // loop_footer_branch
            %1005 = sbr.rel target = $region143
          $region148: #{custom-call.11} parent=140 // loop_exit
            _
          // While loop
          $region149: #{custom-call.11} parent=140 // loop_pre_header
            _
          $region150: #{custom-call.11} parent=140 // loop_header
            %s1006 = sphi %s980, %s1014
            %s1007 = sphi %s981, %s1015
            %v1008 = vphi %v982, %v1008
            %p1009 = scmp.gt.s32.totalorder %s1006, %s978
          $region151: #{custom-call.11} parent=140 // loop_header_branch
            %1011 = sbr.rel (%p1009) target = $region155
          $region152: #{custom-call.11} parent=140 // loop_body
            %v1012 = vld [vmem:[%s1006] sm:$0xff]
            %1013 = vst [vmem:[%s1007] sm:$0xff] %v1012
          $region153: #{custom-call.11} parent=140 // loop_footer
            %s1014 = scalar_lea.vmem %s1006, 8
            %s1015 = scalar_lea.vmem %s1007, 8
          $region154: #{custom-call.11} parent=140 // loop_footer_branch
            %1016 = sbr.rel target = $region150
          $region155: #{custom-call.11} parent=140 // loop_exit
            _
        $region141: #{custom-call.11} parent=136 // pred_fallthru
          _
        %s1017 = sand.u32 1, 7
        %s1018 = sshllo.u32 0, %s1017
        %s1019 = smul.u32 %s970, 128
        %s1020 = sshra.s32 %s1019, 4
        %s1021 = scalar_lea.vmem %s5, %s1020
        %s1022 = smul.u32 %s970, 128
        %s1023 = sshra.s32 %s1022, 4
        %s1024 = scalar_lea.vmem [#allocation7], %s1023
        %v1025 = vld [vmem:[%s1024] sm:%s1018]
        %1026 = vst [vmem:[%s1021] sm:%s1018] %v1025
      $region137: #{custom-call.11} parent=132 // pred_fallthru
        _
    $region133: #{custom-call.11} parent=1 // pred_fallthru
      _
    %p1028 = scmp.gt.s32.totalorder 8, 0
    // Predicated region
    $region156: #{custom-call.11} parent=1 // pred_check
      %p1029 = pneg %p1028
    $region157: #{custom-call.11} parent=1 // pred_check_branch
      %1031 = sbr.rel (%p1029) target = $region159
    $region158: #{custom-call.11} parent=1 // pred_region
      %s1032 = sshra.s32 8, 3
      %p1033 = scmp.gt.s32.totalorder %s1032, 0
      // Predicated region
      $region160: #{custom-call.11} parent=158 // pred_check
        %p1034 = pneg %p1033
      $region161: #{custom-call.11} parent=158 // pred_check_branch
        %1036 = sbr.rel (%p1034) target = $region163
      $region162: #{custom-call.11} parent=158 // pred_region
        %s1037 = ssub.s32 %s1032, 1
        %s1038 = smul.u32 %s1037, 128
        %s1039 = sshra.s32 %s1038, 4
        %s1040 = scalar_lea.vmem [#allocation8], %s1039
        %v1041 = vld [vmem:[#allocation8] sm:$0xff]
        // While loop
        $region164: #{custom-call.11} parent=162 // loop_pre_header
          _
        $region165: #{custom-call.11} parent=162 // loop_header
          %s1042 = sphi [#allocation8], %s1064
          %s1043 = sphi %s6, %s1065
          %v1044 = vphi %v1041, %v1066
          %s1045 = ssub.s32 %s1040, 64
          %p1046 = scmp.gt.s32.totalorder %s1042, %s1045
        $region166: #{custom-call.11} parent=162 // loop_header_branch
          %1048 = sbr.rel (%p1046) target = $region170
        $region167: #{custom-call.11} parent=162 // loop_body
          %1049 = vst [vmem:[%s1043] sm:$0xff] %v1044
          %v1050 = vld [vmem:[%s1042 + $0x8] sm:$0xff]
          %1051 = vst [vmem:[%s1043 + $0x8] sm:$0xff] %v1050
          %v1052 = vld [vmem:[%s1042 + $0x10] sm:$0xff]
          %1053 = vst [vmem:[%s1043 + $0x10] sm:$0xff] %v1052
          %v1054 = vld [vmem:[%s1042 + $0x18] sm:$0xff]
          %1055 = vst [vmem:[%s1043 + $0x18] sm:$0xff] %v1054
          %v1056 = vld [vmem:[%s1042 + $0x20] sm:$0xff]
          %1057 = vst [vmem:[%s1043 + $0x20] sm:$0xff] %v1056
          %v1058 = vld [vmem:[%s1042 + $0x28] sm:$0xff]
          %1059 = vst [vmem:[%s1043 + $0x28] sm:$0xff] %v1058
          %v1060 = vld [vmem:[%s1042 + $0x30] sm:$0xff]
          %1061 = vst [vmem:[%s1043 + $0x30] sm:$0xff] %v1060
          %v1062 = vld [vmem:[%s1042 + $0x38] sm:$0xff]
          %1063 = vst [vmem:[%s1043 + $0x38] sm:$0xff] %v1062
        $region168: #{custom-call.11} parent=162 // loop_footer
          %s1064 = scalar_lea.vmem %s1042, 64
          %s1065 = scalar_lea.vmem %s1043, 64
          %v1066 = vld [vmem:[%s1042 + $0x40] sm:$0xff]
        $region169: #{custom-call.11} parent=162 // loop_footer_branch
          %1067 = sbr.rel target = $region165
        $region170: #{custom-call.11} parent=162 // loop_exit
          _
        // While loop
        $region171: #{custom-call.11} parent=162 // loop_pre_header
          _
        $region172: #{custom-call.11} parent=162 // loop_header
          %s1068 = sphi %s1042, %s1076
          %s1069 = sphi %s1043, %s1077
          %v1070 = vphi %v1044, %v1070
          %p1071 = scmp.gt.s32.totalorder %s1068, %s1040
        $region173: #{custom-call.11} parent=162 // loop_header_branch
          %1073 = sbr.rel (%p1071) target = $region177
        $region174: #{custom-call.11} parent=162 // loop_body
          %v1074 = vld [vmem:[%s1068] sm:$0xff]
          %1075 = vst [vmem:[%s1069] sm:$0xff] %v1074
        $region175: #{custom-call.11} parent=162 // loop_footer
          %s1076 = scalar_lea.vmem %s1068, 8
          %s1077 = scalar_lea.vmem %s1069, 8
        $region176: #{custom-call.11} parent=162 // loop_footer_branch
          %1078 = sbr.rel target = $region172
        $region177: #{custom-call.11} parent=162 // loop_exit
          _
      $region163: #{custom-call.11} parent=158 // pred_fallthru
        _
      %s1079 = sand.u32 8, 7
      %s1080 = sshllo.u32 0, %s1079
      %s1081 = smul.u32 %s1032, 128
      %s1082 = sshra.s32 %s1081, 4
      %s1083 = scalar_lea.vmem %s6, %s1082
      %s1084 = smul.u32 %s1032, 128
      %s1085 = sshra.s32 %s1084, 4
      %s1086 = scalar_lea.vmem [#allocation8], %s1085
      %v1087 = vld [vmem:[%s1086] sm:%s1080]
      %1088 = vst [vmem:[%s1083] sm:%s1080] %v1087
    $region159: #{custom-call.11} parent=1 // pred_fallthru
      _
    %p1090 = scmp.gt.s32.totalorder 8, 0
    // Predicated region
    $region178: #{custom-call.11} parent=1 // pred_check
      %p1091 = pneg %p1090
    $region179: #{custom-call.11} parent=1 // pred_check_branch
      %1093 = sbr.rel (%p1091) target = $region181
    $region180: #{custom-call.11} parent=1 // pred_region
      %s1094 = sshra.s32 8, 3
      %p1095 = scmp.gt.s32.totalorder %s1094, 0
      // Predicated region
      $region182: #{custom-call.11} parent=180 // pred_check
        %p1096 = pneg %p1095
      $region183: #{custom-call.11} parent=180 // pred_check_branch
        %1098 = sbr.rel (%p1096) target = $region185
      $region184: #{custom-call.11} parent=180 // pred_region
        %s1099 = ssub.s32 %s1094, 1
        %s1100 = smul.u32 %s1099, 128
        %s1101 = sshra.s32 %s1100, 4
        %s1102 = scalar_lea.vmem [#allocation9], %s1101
        %v1103 = vld [vmem:[#allocation9] sm:$0xff]
        // While loop
        $region186: #{custom-call.11} parent=184 // loop_pre_header
          _
        $region187: #{custom-call.11} parent=184 // loop_header
          %s1104 = sphi [#allocation9], %s1126
          %s1105 = sphi %s7, %s1127
          %v1106 = vphi %v1103, %v1128
          %s1107 = ssub.s32 %s1102, 64
          %p1108 = scmp.gt.s32.totalorder %s1104, %s1107
        $region188: #{custom-call.11} parent=184 // loop_header_branch
          %1110 = sbr.rel (%p1108) target = $region192
        $region189: #{custom-call.11} parent=184 // loop_body
          %1111 = vst [vmem:[%s1105] sm:$0xff] %v1106
          %v1112 = vld [vmem:[%s1104 + $0x8] sm:$0xff]
          %1113 = vst [vmem:[%s1105 + $0x8] sm:$0xff] %v1112
          %v1114 = vld [vmem:[%s1104 + $0x10] sm:$0xff]
          %1115 = vst [vmem:[%s1105 + $0x10] sm:$0xff] %v1114
          %v1116 = vld [vmem:[%s1104 + $0x18] sm:$0xff]
          %1117 = vst [vmem:[%s1105 + $0x18] sm:$0xff] %v1116
          %v1118 = vld [vmem:[%s1104 + $0x20] sm:$0xff]
          %1119 = vst [vmem:[%s1105 + $0x20] sm:$0xff] %v1118
          %v1120 = vld [vmem:[%s1104 + $0x28] sm:$0xff]
          %1121 = vst [vmem:[%s1105 + $0x28] sm:$0xff] %v1120
          %v1122 = vld [vmem:[%s1104 + $0x30] sm:$0xff]
          %1123 = vst [vmem:[%s1105 + $0x30] sm:$0xff] %v1122
          %v1124 = vld [vmem:[%s1104 + $0x38] sm:$0xff]
          %1125 = vst [vmem:[%s1105 + $0x38] sm:$0xff] %v1124
        $region190: #{custom-call.11} parent=184 // loop_footer
          %s1126 = scalar_lea.vmem %s1104, 64
          %s1127 = scalar_lea.vmem %s1105, 64
          %v1128 = vld [vmem:[%s1104 + $0x40] sm:$0xff]
        $region191: #{custom-call.11} parent=184 // loop_footer_branch
          %1129 = sbr.rel target = $region187
        $region192: #{custom-call.11} parent=184 // loop_exit
          _
        // While loop
        $region193: #{custom-call.11} parent=184 // loop_pre_header
          _
        $region194: #{custom-call.11} parent=184 // loop_header
          %s1130 = sphi %s1104, %s1138
          %s1131 = sphi %s1105, %s1139
          %v1132 = vphi %v1106, %v1132
          %p1133 = scmp.gt.s32.totalorder %s1130, %s1102
        $region195: #{custom-call.11} parent=184 // loop_header_branch
          %1135 = sbr.rel (%p1133) target = $region199
        $region196: #{custom-call.11} parent=184 // loop_body
          %v1136 = vld [vmem:[%s1130] sm:$0xff]
          %1137 = vst [vmem:[%s1131] sm:$0xff] %v1136
        $region197: #{custom-call.11} parent=184 // loop_footer
          %s1138 = scalar_lea.vmem %s1130, 8
          %s1139 = scalar_lea.vmem %s1131, 8
        $region198: #{custom-call.11} parent=184 // loop_footer_branch
          %1140 = sbr.rel target = $region194
        $region199: #{custom-call.11} parent=184 // loop_exit
          _
      $region185: #{custom-call.11} parent=180 // pred_fallthru
        _
      %s1141 = sand.u32 8, 7
      %s1142 = sshllo.u32 0, %s1141
      %s1143 = smul.u32 %s1094, 128
      %s1144 = sshra.s32 %s1143, 4
      %s1145 = scalar_lea.vmem %s7, %s1144
      %s1146 = smul.u32 %s1094, 128
      %s1147 = sshra.s32 %s1146, 4
      %s1148 = scalar_lea.vmem [#allocation9], %s1147
      %v1149 = vld [vmem:[%s1148] sm:%s1142]
      %1150 = vst [vmem:[%s1145] sm:%s1142] %v1149
    $region181: #{custom-call.11} parent=1 // pred_fallthru
      _
    %p1152 = scmp.gt.s32.totalorder 8, 0
    // Predicated region
    $region200: #{custom-call.11} parent=1 // pred_check
      %p1153 = pneg %p1152
    $region201: #{custom-call.11} parent=1 // pred_check_branch
      %1155 = sbr.rel (%p1153) target = $region203
    $region202: #{custom-call.11} parent=1 // pred_region
      %s1156 = sshra.s32 8, 3
      %p1157 = scmp.gt.s32.totalorder %s1156, 0
      // Predicated region
      $region204: #{custom-call.11} parent=202 // pred_check
        %p1158 = pneg %p1157
      $region205: #{custom-call.11} parent=202 // pred_check_branch
        %1160 = sbr.rel (%p1158) target = $region207
      $region206: #{custom-call.11} parent=202 // pred_region
        %s1161 = ssub.s32 %s1156, 1
        %s1162 = smul.u32 %s1161, 128
        %s1163 = sshra.s32 %s1162, 4
        %s1164 = scalar_lea.vmem [#allocation10], %s1163
        %v1165 = vld [vmem:[#allocation10] sm:$0xff]
        // While loop
        $region208: #{custom-call.11} parent=206 // loop_pre_header
          _
        $region209: #{custom-call.11} parent=206 // loop_header
          %s1166 = sphi [#allocation10], %s1188
          %s1167 = sphi %s8, %s1189
          %v1168 = vphi %v1165, %v1190
          %s1169 = ssub.s32 %s1164, 64
          %p1170 = scmp.gt.s32.totalorder %s1166, %s1169
        $region210: #{custom-call.11} parent=206 // loop_header_branch
          %1172 = sbr.rel (%p1170) target = $region214
        $region211: #{custom-call.11} parent=206 // loop_body
          %1173 = vst [vmem:[%s1167] sm:$0xff] %v1168
          %v1174 = vld [vmem:[%s1166 + $0x8] sm:$0xff]
          %1175 = vst [vmem:[%s1167 + $0x8] sm:$0xff] %v1174
          %v1176 = vld [vmem:[%s1166 + $0x10] sm:$0xff]
          %1177 = vst [vmem:[%s1167 + $0x10] sm:$0xff] %v1176
          %v1178 = vld [vmem:[%s1166 + $0x18] sm:$0xff]
          %1179 = vst [vmem:[%s1167 + $0x18] sm:$0xff] %v1178
          %v1180 = vld [vmem:[%s1166 + $0x20] sm:$0xff]
          %1181 = vst [vmem:[%s1167 + $0x20] sm:$0xff] %v1180
          %v1182 = vld [vmem:[%s1166 + $0x28] sm:$0xff]
          %1183 = vst [vmem:[%s1167 + $0x28] sm:$0xff] %v1182
          %v1184 = vld [vmem:[%s1166 + $0x30] sm:$0xff]
          %1185 = vst [vmem:[%s1167 + $0x30] sm:$0xff] %v1184
          %v1186 = vld [vmem:[%s1166 + $0x38] sm:$0xff]
          %1187 = vst [vmem:[%s1167 + $0x38] sm:$0xff] %v1186
        $region212: #{custom-call.11} parent=206 // loop_footer
          %s1188 = scalar_lea.vmem %s1166, 64
          %s1189 = scalar_lea.vmem %s1167, 64
          %v1190 = vld [vmem:[%s1166 + $0x40] sm:$0xff]
        $region213: #{custom-call.11} parent=206 // loop_footer_branch
          %1191 = sbr.rel target = $region209
        $region214: #{custom-call.11} parent=206 // loop_exit
          _
        // While loop
        $region215: #{custom-call.11} parent=206 // loop_pre_header
          _
        $region216: #{custom-call.11} parent=206 // loop_header
          %s1192 = sphi %s1166, %s1200
          %s1193 = sphi %s1167, %s1201
          %v1194 = vphi %v1168, %v1194
          %p1195 = scmp.gt.s32.totalorder %s1192, %s1164
        $region217: #{custom-call.11} parent=206 // loop_header_branch
          %1197 = sbr.rel (%p1195) target = $region221
        $region218: #{custom-call.11} parent=206 // loop_body
          %v1198 = vld [vmem:[%s1192] sm:$0xff]
          %1199 = vst [vmem:[%s1193] sm:$0xff] %v1198
        $region219: #{custom-call.11} parent=206 // loop_footer
          %s1200 = scalar_lea.vmem %s1192, 8
          %s1201 = scalar_lea.vmem %s1193, 8
        $region220: #{custom-call.11} parent=206 // loop_footer_branch
          %1202 = sbr.rel target = $region216
        $region221: #{custom-call.11} parent=206 // loop_exit
          _
      $region207: #{custom-call.11} parent=202 // pred_fallthru
        _
      %s1203 = sand.u32 8, 7
      %s1204 = sshllo.u32 0, %s1203
      %s1205 = smul.u32 %s1156, 128
      %s1206 = sshra.s32 %s1205, 4
      %s1207 = scalar_lea.vmem %s8, %s1206
      %s1208 = smul.u32 %s1156, 128
      %s1209 = sshra.s32 %s1208, 4
      %s1210 = scalar_lea.vmem [#allocation10], %s1209
      %v1211 = vld [vmem:[%s1210] sm:%s1204]
      %1212 = vst [vmem:[%s1207] sm:%s1204] %v1211
    $region203: #{custom-call.11} parent=1 // pred_fallthru
      _
    %p1214 = scmp.gt.s32.totalorder 8, 0
    // Predicated region
    $region222: #{custom-call.11} parent=1 // pred_check
      %p1215 = pneg %p1214
    $region223: #{custom-call.11} parent=1 // pred_check_branch
      %1217 = sbr.rel (%p1215) target = $region225
    $region224: #{custom-call.11} parent=1 // pred_region
      %s1218 = sshra.s32 8, 3
      %p1219 = scmp.gt.s32.totalorder %s1218, 0
      // Predicated region
      $region226: #{custom-call.11} parent=224 // pred_check
        %p1220 = pneg %p1219
      $region227: #{custom-call.11} parent=224 // pred_check_branch
        %1222 = sbr.rel (%p1220) target = $region229
      $region228: #{custom-call.11} parent=224 // pred_region
        %s1223 = ssub.s32 %s1218, 1
        %s1224 = smul.u32 %s1223, 128
        %s1225 = sshra.s32 %s1224, 4
        %s1226 = scalar_lea.vmem [#allocation11], %s1225
        %v1227 = vld [vmem:[#allocation11] sm:$0xff]
        // While loop
        $region230: #{custom-call.11} parent=228 // loop_pre_header
          _
        $region231: #{custom-call.11} parent=228 // loop_header
          %s1228 = sphi [#allocation11], %s1250
          %s1229 = sphi %s9, %s1251
          %v1230 = vphi %v1227, %v1252
          %s1231 = ssub.s32 %s1226, 64
          %p1232 = scmp.gt.s32.totalorder %s1228, %s1231
        $region232: #{custom-call.11} parent=228 // loop_header_branch
          %1234 = sbr.rel (%p1232) target = $region236
        $region233: #{custom-call.11} parent=228 // loop_body
          %1235 = vst [vmem:[%s1229] sm:$0xff] %v1230
          %v1236 = vld [vmem:[%s1228 + $0x8] sm:$0xff]
          %1237 = vst [vmem:[%s1229 + $0x8] sm:$0xff] %v1236
          %v1238 = vld [vmem:[%s1228 + $0x10] sm:$0xff]
          %1239 = vst [vmem:[%s1229 + $0x10] sm:$0xff] %v1238
          %v1240 = vld [vmem:[%s1228 + $0x18] sm:$0xff]
          %1241 = vst [vmem:[%s1229 + $0x18] sm:$0xff] %v1240
          %v1242 = vld [vmem:[%s1228 + $0x20] sm:$0xff]
          %1243 = vst [vmem:[%s1229 + $0x20] sm:$0xff] %v1242
          %v1244 = vld [vmem:[%s1228 + $0x28] sm:$0xff]
          %1245 = vst [vmem:[%s1229 + $0x28] sm:$0xff] %v1244
          %v1246 = vld [vmem:[%s1228 + $0x30] sm:$0xff]
          %1247 = vst [vmem:[%s1229 + $0x30] sm:$0xff] %v1246
          %v1248 = vld [vmem:[%s1228 + $0x38] sm:$0xff]
          %1249 = vst [vmem:[%s1229 + $0x38] sm:$0xff] %v1248
        $region234: #{custom-call.11} parent=228 // loop_footer
          %s1250 = scalar_lea.vmem %s1228, 64
          %s1251 = scalar_lea.vmem %s1229, 64
          %v1252 = vld [vmem:[%s1228 + $0x40] sm:$0xff]
        $region235: #{custom-call.11} parent=228 // loop_footer_branch
          %1253 = sbr.rel target = $region231
        $region236: #{custom-call.11} parent=228 // loop_exit
          _
        // While loop
        $region237: #{custom-call.11} parent=228 // loop_pre_header
          _
        $region238: #{custom-call.11} parent=228 // loop_header
          %s1254 = sphi %s1228, %s1262
          %s1255 = sphi %s1229, %s1263
          %v1256 = vphi %v1230, %v1256
          %p1257 = scmp.gt.s32.totalorder %s1254, %s1226
        $region239: #{custom-call.11} parent=228 // loop_header_branch
          %1259 = sbr.rel (%p1257) target = $region243
        $region240: #{custom-call.11} parent=228 // loop_body
          %v1260 = vld [vmem:[%s1254] sm:$0xff]
          %1261 = vst [vmem:[%s1255] sm:$0xff] %v1260
        $region241: #{custom-call.11} parent=228 // loop_footer
          %s1262 = scalar_lea.vmem %s1254, 8
          %s1263 = scalar_lea.vmem %s1255, 8
        $region242: #{custom-call.11} parent=228 // loop_footer_branch
          %1264 = sbr.rel target = $region238
        $region243: #{custom-call.11} parent=228 // loop_exit
          _
      $region229: #{custom-call.11} parent=224 // pred_fallthru
        _
      %s1265 = sand.u32 8, 7
      %s1266 = sshllo.u32 0, %s1265
      %s1267 = smul.u32 %s1218, 128
      %s1268 = sshra.s32 %s1267, 4
      %s1269 = scalar_lea.vmem %s9, %s1268
      %s1270 = smul.u32 %s1218, 128
      %s1271 = sshra.s32 %s1270, 4
      %s1272 = scalar_lea.vmem [#allocation11], %s1271
      %v1273 = vld [vmem:[%s1272] sm:%s1266]
      %1274 = vst [vmem:[%s1269] sm:%s1266] %v1273
    $region225: #{custom-call.11} parent=1 // pred_fallthru
      _
    // Predicated region
    $region244: #{custom-call.11} parent=1 // pred_check
      _
    $region245: #{custom-call.11} parent=1 // pred_check_branch
      %1276 = sbr.rel (0) target = $region247
    $region246: #{custom-call.11} parent=1 // pred_region
      _
    $region247: #{custom-call.11} parent=1 // pred_fallthru
      _
    // Predicated region
    $region248: #{custom-call.11} parent=1 // pred_check
      _
    $region249: #{custom-call.11} parent=1 // pred_check_branch
      %1278 = sbr.rel (0) target = $region251
    $region250: #{custom-call.11} parent=1 // pred_region
      _
    $region251: #{custom-call.11} parent=1 // pred_fallthru
      _

// kernel: _scf_loop.20
$region0: #{_scf_loop.20}
  #allocation0 [shape = 'u32[]', space=smem, size = 0x4, offset = 0x4, fixed_abs, tag = 'smem constant byte address 0x4 - core index']
  #allocation1 [shape = 'u32[144,128]{1,0:T(1,128)}', space=vmem, size = 0x12000, scoped, tag = 'internal scratch']
  #allocation2 [shape = 'f32[1,256]{1,0:T(1,128)}', space=vmem, size = 0x400, scoped, tag = 'scratch operand']
  #allocation3 [shape = 'f32[16,16]{1,0:T(8,128)}', space=vmem, size = 0x2000, scoped, tag = 'scratch operand']
  #allocation4 [shape = 'f32[1,1]{1,0:T(1,128)S(6)}', space=smem, size = 0x200, scoped, tag = 'scoped memory for _scf_loop.20']
  #allocation5 [shape = 'f32[1,1]{1,0:T(1,128)S(6)}', space=smem, size = 0x200, scoped, tag = 'scoped memory for _scf_loop.20']
  %s0 = inlined_call_operand.<no memory space> [shape: f32[1,1], index: 0, kind: input, shape index: {}]
  %s1 = inlined_call_operand.<no memory space> [shape: f32[1,1], index: 1, kind: input, shape index: {}]
  %s2 = inlined_call_operand.vmem [shape: f32[1,256], index: 2, kind: input, shape index: {}, may-alias: {2,3}]
  %s3 = inlined_call_operand.vmem [shape: f32[1,256], index: 3, kind: input, shape index: {}, may-alias: {2,3}]
  %s4 = inlined_call_operand.vmem [shape: f32[16,16], index: 4, kind: input, shape index: {}, may-alias: {4,5}]
  %s5 = inlined_call_operand.vmem [shape: f32[16,16], index: 5, kind: input, shape index: {}, may-alias: {4,5}]
  %s6 = inlined_call_operand.vmem [shape: f32[16,16], index: 6, kind: input, shape index: {}]
  %s7 = inlined_call_operand.vmem [shape: f32[16,16], index: 7, kind: input, shape index: {}]
  %s8 = inlined_call_operand.vmem [shape: f32[16,16], index: 8, kind: input, shape index: {}]
  %s9 = inlined_call_operand.vmem [shape: f32[256,256], index: 9, kind: input, shape index: {}]
  %s10 = inlined_call_operand.vmem [shape: f32[16,16], index: 10, kind: output, shape index: {0}]
  %s11 = inlined_call_operand.vmem [shape: f32[16,16], index: 11, kind: output, shape index: {1}]
  %s12 = inlined_call_operand.hbm [shape: f32[1,1], index: 12, kind: output, shape index: {2}]
  %13 = xla_tuple %s10, %s11, %s12
  %s14 = sld [smem:[#allocation0]]
  $region97: #{_scf_loop.20} parent=0
    _
  %s16 = ssub.s32 1, %s14
  %s17 = scalar_select 0, %s16, %s14
  %18 = sst [smem:[#allocation4]] %s0
  %19 = sst [smem:[#allocation5]] %s1
  $region1: #{_scf_loop.20} parent=0
    #allocation6 [shape = 'u8[512]{0}', space=smem, size = 0x200, scoped, tag = 'output window, operand 2, single buffered']
    #allocation7 [shape = 's32[2]{0}', space=sflag, size = 0x8, scoped, tag = 'scoped memory for _scf_loop.20']
    %20 = vsyncpa [#allocation7], 0
    loop: start=0, step=1, limit=4
    $region2: #{_scf_loop.20} parent=1 // loop_pre_header
      _
    $region3: #{_scf_loop.20} parent=1 // loop_header
      %s22 = sphi 0, %s26
      %p23 = scmp.ge.s32.totalorder %s22, 4
      %s30 = sphi 0, %s30
      %s32 = sphi 0, %s30
      %s33 = sphi 0, %s32
      %s47 = sphi 0, %s33
      %s51 = sphi 0, %s51
      %s53 = sphi 0, %s51
      %s54 = sphi 0, %s53
      %s68 = sphi 0, %s54
      %s74 = sphi 0, %s76
      %s77 = sphi 0, %s74
      %s78 = sphi 0, %s77
      %s94 = sphi 0, %s78
      %s100 = sphi 0, %s102
      %s103 = sphi 0, %s100
      %s104 = sphi 0, %s103
      %s120 = sphi 0, %s104
      %s124 = sphi 0, %s124
      %s126 = sphi 0, %s124
      %s127 = sphi 0, %s126
      %s141 = sphi 0, %s127
      %s145 = sphi 0, %s145
      %s147 = sphi 0, %s145
      %s148 = sphi 0, %s147
      %s162 = sphi 0, %s148
      %s166 = sphi 0, %s166
      %s168 = sphi 0, %s166
      %s169 = sphi 0, %s168
      %s183 = sphi 0, %s169
      %s187 = sphi 0, %s187
      %s189 = sphi 0, %s187
      %s190 = sphi 0, %s189
      %s204 = sphi 0, %s190
      %s208 = sphi 0, %s208
      %s210 = sphi 0, %s208
      %s211 = sphi 0, %s210
      %s225 = sphi 0, %s211
      %s231 = sphi 0, %s233
      %s234 = sphi 0, %s231
      %s235 = sphi 0, %s234
      %s251 = sphi 0, %s235
      %s255 = sphi 0, %s255
      %s257 = sphi 0, %s255
      %s258 = sphi 0, %s257
      %s272 = sphi 0, %s258
      %s276 = sphi 0, %s276
      %s278 = sphi 0, %s276
      %s279 = sphi 0, %s278
      %s293 = sphi 0, %s279
      %s297 = sphi 0, %s297
      %s299 = sphi 0, %s297
      %s300 = sphi 0, %s299
      %s314 = sphi 0, %s300
    $region4: #{_scf_loop.20} parent=1 // loop_header_branch
      %25 = sbr.rel (%p23) target = $region8
    $region5: #{_scf_loop.20} parent=1 // loop_body
      %s27 = ssub.s32 %s22, 1
      %s28 = ssub.s32 %s22, 2
      %s29 = sadd.s32 %s22, 1
      %s31 = sadd.s32 %s30, 1
      %p34 = scmp.eq.s32.totalorder %s22, 1
      %p35 = scmp.ne.s32.totalorder %s30, %s32
      %p36 = scmp.eq.s32.totalorder %s22, 0
      %p37 = por %p35, %p36
      %p38 = scmp.ne.s32.totalorder %s30, %s32
      %p39 = scmp.eq.s32.totalorder %s27, 1
      %p40 = por %p38, %p39
      %p41 = scmp.ne.s32.totalorder %s32, %s33
      %p42 = scmp.eq.s32.totalorder %s27, 0
      %p43 = por %p41, %p42
      %p44 = scmp.ne.s32.totalorder %s32, %s33
      %p45 = scmp.eq.s32.totalorder %s28, 1
      %p46 = por %p44, %p45
      %p48 = scmp.ne.s32.totalorder %s33, %s47
      %p49 = scmp.eq.s32.totalorder %s28, 0
      %p50 = por %p48, %p49
      %s52 = sadd.s32 %s51, 1
      %p55 = scmp.eq.s32.totalorder %s22, 1
      %p56 = scmp.ne.s32.totalorder %s51, %s53
      %p57 = scmp.eq.s32.totalorder %s22, 0
      %p58 = por %p56, %p57
      %p59 = scmp.ne.s32.totalorder %s51, %s53
      %p60 = scmp.eq.s32.totalorder %s27, 1
      %p61 = por %p59, %p60
      %p62 = scmp.ne.s32.totalorder %s53, %s54
      %p63 = scmp.eq.s32.totalorder %s27, 0
      %p64 = por %p62, %p63
      %p65 = scmp.ne.s32.totalorder %s53, %s54
      %p66 = scmp.eq.s32.totalorder %s28, 1
      %p67 = por %p65, %p66
      %p69 = scmp.ne.s32.totalorder %s54, %s68
      %p70 = scmp.eq.s32.totalorder %s28, 0
      %p71 = por %p69, %p70
      %s72 = ssub.s32 %s22, %s29
      %p73 = scmp.eq.s32.totalorder %s72, 0
      %s75 = sadd.s32 %s74, 1
      %s76 = scalar_select %p73, %s74, %s75
      %p79 = pneg %p73
      %p80 = scmp.eq.s32.totalorder %s22, 1
      %p81 = por %p79, %p80
      %p82 = scmp.ne.s32.totalorder %s74, %s77
      %p83 = scmp.eq.s32.totalorder %s22, 0
      %p84 = por %p82, %p83
      %p85 = scmp.ne.s32.totalorder %s74, %s77
      %p86 = scmp.eq.s32.totalorder %s27, 1
      %p87 = por %p85, %p86
      %p88 = scmp.ne.s32.totalorder %s77, %s78
      %p89 = scmp.eq.s32.totalorder %s27, 0
      %p90 = por %p88, %p89
      %p91 = scmp.ne.s32.totalorder %s77, %s78
      %p92 = scmp.eq.s32.totalorder %s28, 1
      %p93 = por %p91, %p92
      %p95 = scmp.ne.s32.totalorder %s78, %s94
      %p96 = scmp.eq.s32.totalorder %s28, 0
      %p97 = por %p95, %p96
      %s98 = ssub.s32 %s22, %s29
      %p99 = scmp.eq.s32.totalorder %s98, 0
      %s101 = sadd.s32 %s100, 1
      %s102 = scalar_select %p99, %s100, %s101
      %p105 = pneg %p99
      %p106 = scmp.eq.s32.totalorder %s22, 1
      %p107 = por %p105, %p106
      %p108 = scmp.ne.s32.totalorder %s100, %s103
      %p109 = scmp.eq.s32.totalorder %s22, 0
      %p110 = por %p108, %p109
      %p111 = scmp.ne.s32.totalorder %s100, %s103
      %p112 = scmp.eq.s32.totalorder %s27, 1
      %p113 = por %p111, %p112
      %p114 = scmp.ne.s32.totalorder %s103, %s104
      %p115 = scmp.eq.s32.totalorder %s27, 0
      %p116 = por %p114, %p115
      %p117 = scmp.ne.s32.totalorder %s103, %s104
      %p118 = scmp.eq.s32.totalorder %s28, 1
      %p119 = por %p117, %p118
      %p121 = scmp.ne.s32.totalorder %s104, %s120
      %p122 = scmp.eq.s32.totalorder %s28, 0
      %p123 = por %p121, %p122
      %s125 = sadd.s32 %s124, 1
      %p128 = scmp.eq.s32.totalorder %s22, 1
      %p129 = scmp.ne.s32.totalorder %s124, %s126
      %p130 = scmp.eq.s32.totalorder %s22, 0
      %p131 = por %p129, %p130
      %p132 = scmp.ne.s32.totalorder %s124, %s126
      %p133 = scmp.eq.s32.totalorder %s27, 1
      %p134 = por %p132, %p133
      %p135 = scmp.ne.s32.totalorder %s126, %s127
      %p136 = scmp.eq.s32.totalorder %s27, 0
      %p137 = por %p135, %p136
      %p138 = scmp.ne.s32.totalorder %s126, %s127
      %p139 = scmp.eq.s32.totalorder %s28, 1
      %p140 = por %p138, %p139
      %p142 = scmp.ne.s32.totalorder %s127, %s141
      %p143 = scmp.eq.s32.totalorder %s28, 0
      %p144 = por %p142, %p143
      %s146 = sadd.s32 %s145, 1
      %p149 = scmp.eq.s32.totalorder %s22, 1
      %p150 = scmp.ne.s32.totalorder %s145, %s147
      %p151 = scmp.eq.s32.totalorder %s22, 0
      %p152 = por %p150, %p151
      %p153 = scmp.ne.s32.totalorder %s145, %s147
      %p154 = scmp.eq.s32.totalorder %s27, 1
      %p155 = por %p153, %p154
      %p156 = scmp.ne.s32.totalorder %s147, %s148
      %p157 = scmp.eq.s32.totalorder %s27, 0
      %p158 = por %p156, %p157
      %p159 = scmp.ne.s32.totalorder %s147, %s148
      %p160 = scmp.eq.s32.totalorder %s28, 1
      %p161 = por %p159, %p160
      %p163 = scmp.ne.s32.totalorder %s148, %s162
      %p164 = scmp.eq.s32.totalorder %s28, 0
      %p165 = por %p163, %p164
      %s167 = sadd.s32 %s166, 1
      %p170 = scmp.eq.s32.totalorder %s22, 1
      %p171 = scmp.ne.s32.totalorder %s166, %s168
      %p172 = scmp.eq.s32.totalorder %s22, 0
      %p173 = por %p171, %p172
      %p174 = scmp.ne.s32.totalorder %s166, %s168
      %p175 = scmp.eq.s32.totalorder %s27, 1
      %p176 = por %p174, %p175
      %p177 = scmp.ne.s32.totalorder %s168, %s169
      %p178 = scmp.eq.s32.totalorder %s27, 0
      %p179 = por %p177, %p178
      %p180 = scmp.ne.s32.totalorder %s168, %s169
      %p181 = scmp.eq.s32.totalorder %s28, 1
      %p182 = por %p180, %p181
      %p184 = scmp.ne.s32.totalorder %s169, %s183
      %p185 = scmp.eq.s32.totalorder %s28, 0
      %p186 = por %p184, %p185
      %s188 = sadd.s32 %s187, 1
      %p191 = scmp.eq.s32.totalorder %s22, 1
      %p192 = scmp.ne.s32.totalorder %s187, %s189
      %p193 = scmp.eq.s32.totalorder %s22, 0
      %p194 = por %p192, %p193
      %p195 = scmp.ne.s32.totalorder %s187, %s189
      %p196 = scmp.eq.s32.totalorder %s27, 1
      %p197 = por %p195, %p196
      %p198 = scmp.ne.s32.totalorder %s189, %s190
      %p199 = scmp.eq.s32.totalorder %s27, 0
      %p200 = por %p198, %p199
      %p201 = scmp.ne.s32.totalorder %s189, %s190
      %p202 = scmp.eq.s32.totalorder %s28, 1
      %p203 = por %p201, %p202
      %p205 = scmp.ne.s32.totalorder %s190, %s204
      %p206 = scmp.eq.s32.totalorder %s28, 0
      %p207 = por %p205, %p206
      %s209 = sadd.s32 %s208, 1
      %p212 = scmp.eq.s32.totalorder %s22, 1
      %p213 = scmp.ne.s32.totalorder %s208, %s210
      %p214 = scmp.eq.s32.totalorder %s22, 0
      %p215 = por %p213, %p214
      %p216 = scmp.ne.s32.totalorder %s208, %s210
      %p217 = scmp.eq.s32.totalorder %s27, 1
      %p218 = por %p216, %p217
      %p219 = scmp.ne.s32.totalorder %s210, %s211
      %p220 = scmp.eq.s32.totalorder %s27, 0
      %p221 = por %p219, %p220
      %p222 = scmp.ne.s32.totalorder %s210, %s211
      %p223 = scmp.eq.s32.totalorder %s28, 1
      %p224 = por %p222, %p223
      %p226 = scmp.ne.s32.totalorder %s211, %s225
      %p227 = scmp.eq.s32.totalorder %s28, 0
      %p228 = por %p226, %p227
      %s229 = ssub.s32 %s22, %s29
      %p230 = scmp.eq.s32.totalorder %s229, 0
      %s232 = sadd.s32 %s231, 1
      %s233 = scalar_select %p230, %s231, %s232
      %p236 = pneg %p230
      %p237 = scmp.eq.s32.totalorder %s22, 1
      %p238 = por %p236, %p237
      %p239 = scmp.ne.s32.totalorder %s231, %s234
      %p240 = scmp.eq.s32.totalorder %s22, 0
      %p241 = por %p239, %p240
      %p242 = scmp.ne.s32.totalorder %s231, %s234
      %p243 = scmp.eq.s32.totalorder %s27, 1
      %p244 = por %p242, %p243
      %p245 = scmp.ne.s32.totalorder %s234, %s235
      %p246 = scmp.eq.s32.totalorder %s27, 0
      %p247 = por %p245, %p246
      %p248 = scmp.ne.s32.totalorder %s234, %s235
      %p249 = scmp.eq.s32.totalorder %s28, 1
      %p250 = por %p248, %p249
      %p252 = scmp.ne.s32.totalorder %s235, %s251
      %p253 = scmp.eq.s32.totalorder %s28, 0
      %p254 = por %p252, %p253
      %s256 = sadd.s32 %s255, 1
      %p259 = scmp.eq.s32.totalorder %s22, 1
      %p260 = scmp.ne.s32.totalorder %s255, %s257
      %p261 = scmp.eq.s32.totalorder %s22, 0
      %p262 = por %p260, %p261
      %p263 = scmp.ne.s32.totalorder %s255, %s257
      %p264 = scmp.eq.s32.totalorder %s27, 1
      %p265 = por %p263, %p264
      %p266 = scmp.ne.s32.totalorder %s257, %s258
      %p267 = scmp.eq.s32.totalorder %s27, 0
      %p268 = por %p266, %p267
      %p269 = scmp.ne.s32.totalorder %s257, %s258
      %p270 = scmp.eq.s32.totalorder %s28, 1
      %p271 = por %p269, %p270
      %p273 = scmp.ne.s32.totalorder %s258, %s272
      %p274 = scmp.eq.s32.totalorder %s28, 0
      %p275 = por %p273, %p274
      %s277 = sadd.s32 %s276, 1
      %p280 = scmp.eq.s32.totalorder %s22, 1
      %p281 = scmp.ne.s32.totalorder %s276, %s278
      %p282 = scmp.eq.s32.totalorder %s22, 0
      %p283 = por %p281, %p282
      %p284 = scmp.ne.s32.totalorder %s276, %s278
      %p285 = scmp.eq.s32.totalorder %s27, 1
      %p286 = por %p284, %p285
      %p287 = scmp.ne.s32.totalorder %s278, %s279
      %p288 = scmp.eq.s32.totalorder %s27, 0
      %p289 = por %p287, %p288
      %p290 = scmp.ne.s32.totalorder %s278, %s279
      %p291 = scmp.eq.s32.totalorder %s28, 1
      %p292 = por %p290, %p291
      %p294 = scmp.ne.s32.totalorder %s279, %s293
      %p295 = scmp.eq.s32.totalorder %s28, 0
      %p296 = por %p294, %p295
      %s298 = sadd.s32 %s297, 1
      %p301 = scmp.eq.s32.totalorder %s22, 1
      %p302 = scmp.ne.s32.totalorder %s297, %s299
      %p303 = scmp.eq.s32.totalorder %s22, 0
      %p304 = por %p302, %p303
      %p305 = scmp.ne.s32.totalorder %s297, %s299
      %p306 = scmp.eq.s32.totalorder %s27, 1
      %p307 = por %p305, %p306
      %p308 = scmp.ne.s32.totalorder %s299, %s300
      %p309 = scmp.eq.s32.totalorder %s27, 0
      %p310 = por %p308, %p309
      %p311 = scmp.ne.s32.totalorder %s299, %s300
      %p312 = scmp.eq.s32.totalorder %s28, 1
      %p313 = por %p311, %p312
      %p315 = scmp.ne.s32.totalorder %s300, %s314
      %p316 = scmp.eq.s32.totalorder %s28, 0
      %p317 = por %p315, %p316
      %p318 = scmp.le.s32.totalorder 1, %s22
      %p319 = scmp.lt.s32.totalorder %s22, 3
      %p320 = pnand %p318, %p319
      %p321 = pneg %p320
      // Predicated region
      $region9: #{_scf_loop.20} parent=5 // pred_check
        _
      $region10: #{_scf_loop.20} parent=5 // pred_check_branch
        %323 = sbr.rel (%p320) target = $region12
      $region11: #{_scf_loop.20} parent=5 // pred_region
        %s324 = ssub.s32 %s22, 1
        // Predicated region
        $region13: #{_scf_loop.20} parent=11 // pred_check
          %p325 = pneg %p43
        $region14: #{_scf_loop.20} parent=11 // pred_check_branch
          %327 = sbr.rel (%p325) target = $region16
        $region15: #{_scf_loop.20} parent=11 // pred_region
          _
        $region16: #{_scf_loop.20} parent=11 // pred_fallthru
          _
        // Predicated region
        $region17: #{_scf_loop.20} parent=11 // pred_check
          %p328 = pneg %p64
        $region18: #{_scf_loop.20} parent=11 // pred_check_branch
          %330 = sbr.rel (%p328) target = $region20
        $region19: #{_scf_loop.20} parent=11 // pred_region
          _
        $region20: #{_scf_loop.20} parent=11 // pred_fallthru
          _
        // Predicated region
        $region21: #{_scf_loop.20} parent=11 // pred_check
          %p331 = pneg %p137
        $region22: #{_scf_loop.20} parent=11 // pred_check_branch
          %333 = sbr.rel (%p331) target = $region24
        $region23: #{_scf_loop.20} parent=11 // pred_region
          _
        $region24: #{_scf_loop.20} parent=11 // pred_fallthru
          _
        // Predicated region
        $region25: #{_scf_loop.20} parent=11 // pred_check
          %p334 = pneg %p158
        $region26: #{_scf_loop.20} parent=11 // pred_check_branch
          %336 = sbr.rel (%p334) target = $region28
        $region27: #{_scf_loop.20} parent=11 // pred_region
          _
        $region28: #{_scf_loop.20} parent=11 // pred_fallthru
          _
        // Predicated region
        $region29: #{_scf_loop.20} parent=11 // pred_check
          %p337 = pneg %p179
        $region30: #{_scf_loop.20} parent=11 // pred_check_branch
          %339 = sbr.rel (%p337) target = $region32
        $region31: #{_scf_loop.20} parent=11 // pred_region
          _
        $region32: #{_scf_loop.20} parent=11 // pred_fallthru
          _
        // Predicated region
        $region33: #{_scf_loop.20} parent=11 // pred_check
          %p340 = pneg %p200
        $region34: #{_scf_loop.20} parent=11 // pred_check_branch
          %342 = sbr.rel (%p340) target = $region36
        $region35: #{_scf_loop.20} parent=11 // pred_region
          _
        $region36: #{_scf_loop.20} parent=11 // pred_fallthru
          _
        // Predicated region
        $region37: #{_scf_loop.20} parent=11 // pred_check
          %p343 = pneg %p221
        $region38: #{_scf_loop.20} parent=11 // pred_check_branch
          %345 = sbr.rel (%p343) target = $region40
        $region39: #{_scf_loop.20} parent=11 // pred_region
          _
        $region40: #{_scf_loop.20} parent=11 // pred_fallthru
          _
      $region12: #{_scf_loop.20} parent=5 // pred_fallthru
        _
      %p346 = scmp.lt.s32.totalorder %s22, 2
      // Predicated region
      $region41: #{_scf_loop.20} parent=5 // pred_check
        %p347 = pneg %p346
      $region42: #{_scf_loop.20} parent=5 // pred_check_branch
        %349 = sbr.rel (%p347) target = $region44
      $region43: #{_scf_loop.20} parent=5 // pred_region
        // Predicated region
        $region45: #{_scf_loop.20} parent=43 // pred_check
          %p350 = pneg %p84
        $region46: #{_scf_loop.20} parent=43 // pred_check_branch
          %352 = sbr.rel (%p350) target = $region48
        $region47: #{_scf_loop.20} parent=43 // pred_region
          %p353 = scmp.lt.s32.totalorder %s22, 1
          %s354 = scalar_select %p353, %s22, 1
          %s355 = scalar_lea.vmem %s2, %s354
        $region48: #{_scf_loop.20} parent=43 // pred_fallthru
          _
        // Predicated region
        $region49: #{_scf_loop.20} parent=43 // pred_check
          %p356 = pneg %p110
        $region50: #{_scf_loop.20} parent=43 // pred_check_branch
          %358 = sbr.rel (%p356) target = $region52
        $region51: #{_scf_loop.20} parent=43 // pred_region
          %p359 = scmp.lt.s32.totalorder %s22, 1
          %s360 = scalar_select %p359, %s22, 1
          %s361 = scalar_lea.vmem %s3, %s360
        $region52: #{_scf_loop.20} parent=43 // pred_fallthru
          _
        // Predicated region
        $region53: #{_scf_loop.20} parent=43 // pred_check
          %p362 = pneg %p241
        $region54: #{_scf_loop.20} parent=43 // pred_check_branch
          %364 = sbr.rel (%p362) target = $region56
        $region55: #{_scf_loop.20} parent=43 // pred_region
          %s365 = smul.u32 16, %s22
          %p366 = scmp.lt.s32.totalorder %s365, 31
          %s367 = scalar_select %p366, %s365, 31
          %s368 = smul.addr %s367, 2
          %s369 = smul.addr %s368, 8
          %s370 = scalar_lea.vmem %s9, %s369
          %s371 = smul.u32 16, %s22
        $region56: #{_scf_loop.20} parent=43 // pred_fallthru
          _
      $region44: #{_scf_loop.20} parent=5 // pred_fallthru
        _
      %p372 = scmp.le.s32.totalorder 1, %s22
      %p373 = scmp.lt.s32.totalorder %s22, 3
      %p374 = pnand %p372, %p373
      %p375 = pneg %p374
      // Predicated region
      $region57: #{_scf_loop.20} parent=5 // pred_check
        _
      $region58: #{_scf_loop.20} parent=5 // pred_check_branch
        %377 = sbr.rel (%p374) target = $region60
      $region59: #{_scf_loop.20} parent=5 // pred_region
        %s378 = ssub.s32 %s22, 1
        %p379 = pneg %p43
        %p380 = pneg %p40
        %p381 = pneg %p64
        %p382 = pneg %p61
        %p383 = scmp.lt.s32.totalorder %s27, 1
        %s384 = scalar_select %p383, %s27, 1
        %s385 = scalar_lea.vmem %s2, %s384
        %p386 = pneg %p90
        %p387 = pneg %p87
        %p388 = scmp.lt.s32.totalorder %s27, 1
        %s389 = scalar_select %p388, %s27, 1
        %s390 = scalar_lea.vmem %s3, %s389
        %p391 = pneg %p116
        %p392 = pneg %p113
        %p393 = pneg %p137
        %p394 = pneg %p134
        %p395 = pneg %p158
        %p396 = pneg %p155
        %p397 = pneg %p179
        %p398 = pneg %p176
        %p399 = pneg %p200
        %p400 = pneg %p197
        %p401 = pneg %p221
        %p402 = pneg %p218
        %s403 = smul.u32 16, %s27
        %p404 = scmp.lt.s32.totalorder %s403, 31
        %s405 = scalar_select %p404, %s403, 31
        %s406 = smul.addr %s405, 2
        %s407 = smul.addr %s406, 8
        %s408 = scalar_lea.vmem %s9, %s407
        %p409 = pneg %p247
        %p410 = pneg %p244
        %p411 = pneg %p268
        %p412 = pneg %p265
        %p413 = pneg %p289
        %p414 = pneg %p286
        %p415 = pneg %p310
        %p416 = pneg %p307
        %p417 = scmp.lt.s32.totalorder %s27, 1
        %s418 = scalar_select %p417, %s27, 1
        %s419 = scalar_lea.vmem %s2, %s418
        %p420 = scmp.lt.s32.totalorder %s27, 1
        %s421 = scalar_select %p420, %s27, 1
        %s422 = scalar_lea.vmem %s3, %s421
        %s423 = smul.u32 16, %s27
        %p424 = scmp.lt.s32.totalorder %s423, 31
        %s425 = scalar_select %p424, %s423, 31
        %s426 = smul.addr %s425, 2
        %s427 = smul.addr %s426, 8
        %s428 = scalar_lea.vmem %s9, %s427
        %s429 = smul.u32 16, %s27
        %s430 = sld [smem:[#allocation4]]
        %v431 = vld [vmem:[%s419] sm:$0x1]
        %v432 = vstv %s430
        %v433 = vmul.f32 %v432, %v431
        %s434 = ssub.f32 1.0, %s430
        %v435 = vld [vmem:[%s422] sm:$0x1]
        %v436 = vstv %s434
        %v437 = vmul.f32 %v436, %v435
        %v438 = vadd.f32 %v433, %v437
        %v439 = vld [vmem:[%s428] sm:$0xff]
        %v440 = vld [vmem:[%s428 + $0x8] sm:$0xff]
        %v441 = vld [vmem:[%s428 + $0x10] sm:$0xff]
        %v442 = vld [vmem:[%s428 + $0x18] sm:$0xff]
        %v443 = vld [vmem:[%s428 + $0x20] sm:$0xff]
        %v444 = vld [vmem:[%s428 + $0x28] sm:$0xff]
        %v445 = vld [vmem:[%s428 + $0x30] sm:$0xff]
        %v446 = vld [vmem:[%s428 + $0x38] sm:$0xff]
        %v447 = vld [vmem:[%s428 + $0x40] sm:$0xff]
        %v448 = vld [vmem:[%s428 + $0x48] sm:$0xff]
        %v449 = vld [vmem:[%s428 + $0x50] sm:$0xff]
        %v450 = vld [vmem:[%s428 + $0x58] sm:$0xff]
        %v451 = vld [vmem:[%s428 + $0x60] sm:$0xff]
        %v452 = vld [vmem:[%s428 + $0x68] sm:$0xff]
        %v453 = vld [vmem:[%s428 + $0x70] sm:$0xff]
        %v454 = vld [vmem:[%s428 + $0x78] sm:$0xff]
        %v455 = vld [vmem:[%s428 + $0x80] sm:$0xff]
        %v456 = vld [vmem:[%s428 + $0x88] sm:$0xff]
        %v457 = vld [vmem:[%s428 + $0x90] sm:$0xff]
        %v458 = vld [vmem:[%s428 + $0x98] sm:$0xff]
        %v459 = vld [vmem:[%s428 + $0xa0] sm:$0xff]
        %v460 = vld [vmem:[%s428 + $0xa8] sm:$0xff]
        %v461 = vld [vmem:[%s428 + $0xb0] sm:$0xff]
        %v462 = vld [vmem:[%s428 + $0xb8] sm:$0xff]
        %v463 = vld [vmem:[%s428 + $0xc0] sm:$0xff]
        %v464 = vld [vmem:[%s428 + $0xc8] sm:$0xff]
        %v465 = vld [vmem:[%s428 + $0xd0] sm:$0xff]
        %v466 = vld [vmem:[%s428 + $0xd8] sm:$0xff]
        %v467 = vld [vmem:[%s428 + $0xe0] sm:$0xff]
        %v468 = vld [vmem:[%s428 + $0xe8] sm:$0xff]
        %v469 = vld [vmem:[%s428 + $0xf0] sm:$0xff]
        %v470 = vld [vmem:[%s428 + $0xf8] sm:$0xff]
        %471 = vmatprep.subr.mxu0 %v440
        %472 = vmatpush1.msra.mxu0 %v439
        %473 = vmatprep.subr.mxu0 %v442
        %474 = vmatpush1.msra.mxu0 %v441
        %475 = vmatprep.subr.mxu0 %v444
        %476 = vmatpush1.msra.mxu0 %v443
        %477 = vmatprep.subr.mxu0 %v446
        %478 = vmatpush1.msra.mxu0 %v445
        %479 = vmatprep.subr.mxu0 %v448
        %480 = vmatpush1.msra.mxu0 %v447
        %481 = vmatprep.subr.mxu0 %v450
        %482 = vmatpush1.msra.mxu0 %v449
        %483 = vmatprep.subr.mxu0 %v452
        %484 = vmatpush1.msra.mxu0 %v451
        %485 = vmatprep.subr.mxu0 %v454
        %486 = vmatpush1.msra.mxu0 %v453
        %487 = vmatprep.subr.mxu0 %v456
        %488 = vmatpush1.msra.mxu0 %v455
        %489 = vmatprep.subr.mxu0 %v458
        %490 = vmatpush1.msra.mxu0 %v457
        %491 = vmatprep.subr.mxu0 %v460
        %492 = vmatpush1.msra.mxu0 %v459
        %493 = vmatprep.subr.mxu0 %v462
        %494 = vmatpush1.msra.mxu0 %v461
        %495 = vmatprep.subr.mxu0 %v464
        %496 = vmatpush1.msra.mxu0 %v463
        %497 = vmatprep.subr.mxu0 %v466
        %498 = vmatpush1.msra.mxu0 %v465
        %499 = vmatprep.subr.mxu0 %v468
        %500 = vmatpush1.msra.mxu0 %v467
        %501 = vmatprep.subr.mxu0 %v470
        %502 = vmatpush1.msra.mxu0 %v469
        %503 = vmatprep.subr.mxu0 0.0
        %504 = vmatpush1.msra.mxu0 0.0
        %505 = vmatprep.subr.mxu0 0.0
        %506 = vmatpush1.msra.mxu0 0.0
        %507 = vmatprep.subr.mxu0 0.0
        %508 = vmatpush1.msra.mxu0 0.0
        %509 = vmatprep.subr.mxu0 0.0
        %510 = vmatpush1.msra.mxu0 0.0
        %511 = vmatprep.subr.mxu0 0.0
        %512 = vmatpush1.msra.mxu0 0.0
        %513 = vmatprep.subr.mxu0 0.0
        %514 = vmatpush1.msra.mxu0 0.0
        %515 = vmatprep.subr.mxu0 0.0
        %516 = vmatpush1.msra.mxu0 0.0
        %517 = vmatprep.subr.mxu0 0.0
        %518 = vmatpush1.msra.mxu0 0.0
        %519 = vmatprep.subr.mxu0 0.0
        %520 = vmatpush1.msra.mxu0 0.0
        %521 = vmatprep.subr.mxu0 0.0
        %522 = vmatpush1.msra.mxu0 0.0
        %523 = vmatprep.subr.mxu0 0.0
        %524 = vmatpush1.msra.mxu0 0.0
        %525 = vmatprep.subr.mxu0 0.0
        %526 = vmatpush1.msra.mxu0 0.0
        %527 = vmatprep.subr.mxu0 0.0
        %528 = vmatpush1.msra.mxu0 0.0
        %529 = vmatprep.subr.mxu0 0.0
        %530 = vmatpush1.msra.mxu0 0.0
        %531 = vmatprep.subr.mxu0 0.0
        %532 = vmatpush1.msra.mxu0 0.0
        %533 = vmatprep.subr.mxu0 0.0
        %534 = vmatpush1.msra.mxu0 0.0
        %535 = vmatprep.mubr.f32.mxu0 0.0
        %536 = vmatmul.mubr.f32.gmra.mrb[0].mxu0 %v438
        %v537 = vpop.f32.mrb[0].mxu0
        %v538 = vadd.f32 0.0, %v537
        %v539 = vpop.f32.mrb[0].mxu0
        %v540 = vadd.f32 0.0, %v539
        %541 = vdwg.mxu0
        %p542 = scmp.eq.s32.totalorder %s27, 0
        // Predicated region
        $region61: #{_scf_loop.20} parent=59 // pred_check
          %p543 = pneg %p542
        $region62: #{_scf_loop.20} parent=59 // pred_check_branch
          %545 = sbr.rel (%p543) target = $region64
        $region63: #{_scf_loop.20} parent=59 // pred_region
          %v546 = vlaneseq
          %vm547 = vcmp.ge.s32.totalorder %v546, 0
          %vm548 = vcmp.lt.s32.totalorder %v546, 256
          %vm549 = vmand %vm547, %vm548
          %550 = vst.msk [vmem:[#allocation2] sm:$0x3] %vm549, 0.0
        $region64: #{_scf_loop.20} parent=59 // pred_fallthru
          _
        %v551 = vld [vmem:[#allocation2] sm:$0x3]
        %v554 = vcombine.low %v538, %v540
        %v556 = vunpack.c.l.s4 1966171168
        %v557 = vunpack.c.0.s8 %v556
        %v558 = vlaneseq
        %v559 = vshrl.u32 %v558, 7
        %v560 = vsub.s32 %v557, %v559
        %v561 = vrot.slane %v554, %v560
        %v563 = vunpack.c.l.s4 1966171168
        %v564 = vunpack.c.0.s8 %v563
        %v565 = vlaneseq
        %v566 = vshrl.u32 %v565, 7
        %v567 = vsub.s32 %v564, %v566
        %v568 = vrot.slane %v561, %v567
        %v570 = vadd.f32 %v551, %v568
        %v571 = vlaneseq
        %vm572 = vcmp.ge.s32.totalorder %v571, 0
        %vm573 = vcmp.lt.s32.totalorder %v571, 256
        %vm574 = vmand %vm572, %vm573
        %575 = vst.msk [vmem:[#allocation2] sm:$0x3] %vm574, %v570
        %p576 = scmp.eq.s32.totalorder %s27, 1
        // Predicated region
        $region65: #{_scf_loop.20} parent=59 // pred_check
          %p577 = pneg %p576
        $region66: #{_scf_loop.20} parent=59 // pred_check_branch
          %579 = sbr.rel (%p577) target = $region68
        $region67: #{_scf_loop.20} parent=59 // pred_region
          %v580 = vld [vmem:[#allocation2] sm:$0x1]
          %vm581 = vcmask 122880
          %582 = vst.msk [vmem:[#allocation3] sm:$0x1] %vm581, %v580
          %v583 = vld [vmem:[#allocation2] sm:$0x1]
          %v585 = vlaneseq
          %v586 = vshrl.u32 %v585, 7
          %v587 = vsub.s32 0, %v586
          %v588 = vrot.slane %v583, %v587
          %589 = vrot.lane.b32.xlu0 %v588, 112
          %v590 = vpop.permute.xlu0 %589
          %592 = vst.msk [vmem:[#allocation3 + $0x1] sm:$0x1] %vm581, %v590
          %v593 = vld [vmem:[#allocation2] sm:$0x1]
          %v595 = vlaneseq
          %v596 = vshrl.u32 %v595, 7
          %v597 = vsub.s32 0, %v596
          %v598 = vrot.slane %v593, %v597
          %599 = vrot.lane.b32.xlu0 %v598, 96
          %v600 = vpop.permute.xlu0 %599
          %602 = vst.msk [vmem:[#allocation3 + $0x2] sm:$0x1] %vm581, %v600
          %v603 = vld [vmem:[#allocation2] sm:$0x1]
          %v605 = vlaneseq
          %v606 = vshrl.u32 %v605, 7
          %v607 = vsub.s32 0, %v606
          %v608 = vrot.slane %v603, %v607
          %609 = vrot.lane.b32.xlu0 %v608, 80
          %v610 = vpop.permute.xlu0 %609
          %612 = vst.msk [vmem:[#allocation3 + $0x3] sm:$0x1] %vm581, %v610
          %v613 = vld [vmem:[#allocation2] sm:$0x1]
          %v615 = vlaneseq
          %v616 = vshrl.u32 %v615, 7
          %v617 = vsub.s32 0, %v616
          %v618 = vrot.slane %v613, %v617
          %619 = vrot.lane.b32.xlu0 %v618, 64
          %v620 = vpop.permute.xlu0 %619
          %622 = vst.msk [vmem:[#allocation3 + $0x4] sm:$0x1] %vm581, %v620
          %v623 = vld [vmem:[#allocation2] sm:$0x1]
          %v625 = vlaneseq
          %v626 = vshrl.u32 %v625, 7
          %v627 = vsub.s32 0, %v626
          %v628 = vrot.slane %v623, %v627
          %629 = vrot.lane.b32.xlu0 %v628, 48
          %v630 = vpop.permute.xlu0 %629
          %632 = vst.msk [vmem:[#allocation3 + $0x5] sm:$0x1] %vm581, %v630
          %v633 = vld [vmem:[#allocation2] sm:$0x1]
          %v635 = vlaneseq
          %v636 = vshrl.u32 %v635, 7
          %v637 = vsub.s32 0, %v636
          %v638 = vrot.slane %v633, %v637
          %639 = vrot.lane.b32.xlu0 %v638, 32
          %v640 = vpop.permute.xlu0 %639
          %642 = vst.msk [vmem:[#allocation3 + $0x6] sm:$0x1] %vm581, %v640
          %v643 = vld [vmem:[#allocation2] sm:$0x1]
          %v645 = vlaneseq
          %v646 = vshrl.u32 %v645, 7
          %v647 = vsub.s32 0, %v646
          %v648 = vrot.slane %v643, %v647
          %649 = vrot.lane.b32.xlu0 %v648, 16
          %v650 = vpop.permute.xlu0 %649
          %652 = vst.msk [vmem:[#allocation3 + $0x7] sm:$0x1] %vm581, %v650
          %v653 = vld [vmem:[#allocation2 + $0x1] sm:$0x1]
          %654 = vst.msk [vmem:[#allocation3 + $0x8] sm:$0x1] %vm581, %v653
          %v655 = vld [vmem:[#allocation2 + $0x1] sm:$0x1]
          %v657 = vlaneseq
          %v658 = vshrl.u32 %v657, 7
          %v659 = vsub.s32 0, %v658
          %v660 = vrot.slane %v655, %v659
          %661 = vrot.lane.b32.xlu0 %v660, 112
          %v662 = vpop.permute.xlu0 %661
          %664 = vst.msk [vmem:[#allocation3 + $0x9] sm:$0x1] %vm581, %v662
          %v665 = vld [vmem:[#allocation2 + $0x1] sm:$0x1]
          %v667 = vlaneseq
          %v668 = vshrl.u32 %v667, 7
          %v669 = vsub.s32 0, %v668
          %v670 = vrot.slane %v665, %v669
          %671 = vrot.lane.b32.xlu0 %v670, 96
          %v672 = vpop.permute.xlu0 %671
          %674 = vst.msk [vmem:[#allocation3 + $0xa] sm:$0x1] %vm581, %v672
          %v675 = vld [vmem:[#allocation2 + $0x1] sm:$0x1]
          %v677 = vlaneseq
          %v678 = vshrl.u32 %v677, 7
          %v679 = vsub.s32 0, %v678
          %v680 = vrot.slane %v675, %v679
          %681 = vrot.lane.b32.xlu0 %v680, 80
          %v682 = vpop.permute.xlu0 %681
          %684 = vst.msk [vmem:[#allocation3 + $0xb] sm:$0x1] %vm581, %v682
          %v685 = vld [vmem:[#allocation2 + $0x1] sm:$0x1]
          %v687 = vlaneseq
          %v688 = vshrl.u32 %v687, 7
          %v689 = vsub.s32 0, %v688
          %v690 = vrot.slane %v685, %v689
          %691 = vrot.lane.b32.xlu0 %v690, 64
          %v692 = vpop.permute.xlu0 %691
          %694 = vst.msk [vmem:[#allocation3 + $0xc] sm:$0x1] %vm581, %v692
          %v695 = vld [vmem:[#allocation2 + $0x1] sm:$0x1]
          %v697 = vlaneseq
          %v698 = vshrl.u32 %v697, 7
          %v699 = vsub.s32 0, %v698
          %v700 = vrot.slane %v695, %v699
          %701 = vrot.lane.b32.xlu0 %v700, 48
          %v702 = vpop.permute.xlu0 %701
          %704 = vst.msk [vmem:[#allocation3 + $0xd] sm:$0x1] %vm581, %v702
          %v705 = vld [vmem:[#allocation2 + $0x1] sm:$0x1]
          %v707 = vlaneseq
          %v708 = vshrl.u32 %v707, 7
          %v709 = vsub.s32 0, %v708
          %v710 = vrot.slane %v705, %v709
          %711 = vrot.lane.b32.xlu0 %v710, 32
          %v712 = vpop.permute.xlu0 %711
          %714 = vst.msk [vmem:[#allocation3 + $0xe] sm:$0x1] %vm581, %v712
          %v715 = vld [vmem:[#allocation2 + $0x1] sm:$0x1]
          %v717 = vlaneseq
          %v718 = vshrl.u32 %v717, 7
          %v719 = vsub.s32 0, %v718
          %v720 = vrot.slane %v715, %v719
          %721 = vrot.lane.b32.xlu0 %v720, 16
          %v722 = vpop.permute.xlu0 %721
          %724 = vst.msk [vmem:[#allocation3 + $0xf] sm:$0x1] %vm581, %v722
          %v725 = vld [vmem:[%s4] sm:$0xff]
          %v726 = vld [vmem:[%s4 + $0x8] sm:$0xff]
          %v727 = vmul.f32 %v432, %v725
          %v728 = vmul.f32 %v432, %v726
          %v729 = vld [vmem:[%s5] sm:$0xff]
          %v730 = vld [vmem:[%s5 + $0x8] sm:$0xff]
          %v731 = vmul.f32 %v436, %v729
          %v732 = vmul.f32 %v436, %v730
          %v733 = vadd.f32 %v727, %v731
          %v734 = vadd.f32 %v728, %v732
          %vm735 = vcmask 130048
          %736 = vst.msk [vmem:[%s10] sm:$0xff] %vm735, %v733
          %737 = vst.msk [vmem:[%s10 + $0x8] sm:$0xff] %vm735, %v734
          %v738 = vld [vmem:[#allocation3] sm:$0xff]
          %v739 = vld [vmem:[#allocation3 + $0x8] sm:$0xff]
          %v740 = vld [vmem:[%s6] sm:$0xff]
          %v741 = vld [vmem:[%s6 + $0x8] sm:$0xff]
          %v742 = vadd.f32 %v740, %v738
          %v743 = vadd.f32 %v741, %v739
          %v744 = vld [vmem:[%s7] sm:$0xff]
          %v745 = vld [vmem:[%s7 + $0x8] sm:$0xff]
          %v746 = vld [vmem:[%s8] sm:$0xff]
          %v747 = vld [vmem:[%s8 + $0x8] sm:$0xff]
          %v749 = vsel %vm735, %v742, 0
          %v752 = vsel %vm735, %v743, 0
          %754 = vmatprep.subr.mxu0 0.0
          %755 = vmatpush1.msra.mxu0 %v746
          %756 = vmatprep.subr.mxu0 0.0
          %757 = vmatpush1.msra.mxu0 %v747
          %758 = vmatprep.subr.mxu0 0.0
          %759 = vmatpush1.msra.mxu0 0.0
          %760 = vmatprep.subr.mxu0 0.0
          %761 = vmatpush1.msra.mxu0 0.0
          %762 = vmatprep.subr.mxu0 0.0
          %763 = vmatpush1.msra.mxu0 0.0
          %764 = vmatprep.subr.mxu0 0.0
          %765 = vmatpush1.msra.mxu0 0.0
          %766 = vmatprep.subr.mxu0 0.0
          %767 = vmatpush1.msra.mxu0 0.0
          %768 = vmatprep.subr.mxu0 0.0
          %769 = vmatpush1.msra.mxu0 0.0
          %770 = vmatprep.subr.mxu0 0.0
          %771 = vmatpush1.msra.mxu0 0.0
          %772 = vmatprep.subr.mxu0 0.0
          %773 = vmatpush1.msra.mxu0 0.0
          %774 = vmatprep.subr.mxu0 0.0
          %775 = vmatpush1.msra.mxu0 0.0
          %776 = vmatprep.subr.mxu0 0.0
          %777 = vmatpush1.msra.mxu0 0.0
          %778 = vmatprep.subr.mxu0 0.0
          %779 = vmatpush1.msra.mxu0 0.0
          %780 = vmatprep.subr.mxu0 0.0
          %781 = vmatpush1.msra.mxu0 0.0
          %782 = vmatprep.subr.mxu0 0.0
          %783 = vmatpush1.msra.mxu0 0.0
          %784 = vmatprep.subr.mxu0 0.0
          %785 = vmatpush1.msra.mxu0 0.0
          %786 = vmatprep.subr.mxu0 0.0
          %787 = vmatpush1.msra.mxu0 0.0
          %788 = vmatprep.subr.mxu0 0.0
          %789 = vmatpush1.msra.mxu0 0.0
          %790 = vmatprep.subr.mxu0 0.0
          %791 = vmatpush1.msra.mxu0 0.0
          %792 = vmatprep.subr.mxu0 0.0
          %793 = vmatpush1.msra.mxu0 0.0
          %794 = vmatprep.subr.mxu0 0.0
          %795 = vmatpush1.msra.mxu0 0.0
          %796 = vmatprep.subr.mxu0 0.0
          %797 = vmatpush1.msra.mxu0 0.0
          %798 = vmatprep.subr.mxu0 0.0
          %799 = vmatpush1.msra.mxu0 0.0
          %800 = vmatprep.subr.mxu0 0.0
          %801 = vmatpush1.msra.mxu0 0.0
          %802 = vmatprep.subr.mxu0 0.0
          %803 = vmatpush1.msra.mxu0 0.0
          %804 = vmatprep.subr.mxu0 0.0
          %805 = vmatpush1.msra.mxu0 0.0
          %806 = vmatprep.subr.mxu0 0.0
          %807 = vmatpush1.msra.mxu0 0.0
          %808 = vmatprep.subr.mxu0 0.0
          %809 = vmatpush1.msra.mxu0 0.0
          %810 = vmatprep.subr.mxu0 0.0
          %811 = vmatpush1.msra.mxu0 0.0
          %812 = vmatprep.subr.mxu0 0.0
          %813 = vmatpush1.msra.mxu0 0.0
          %814 = vmatprep.subr.mxu0 0.0
          %815 = vmatpush1.msra.mxu0 0.0
          %816 = vmatprep.subr.mxu0 0.0
          %817 = vmatpush1.msra.mxu0 0.0
          %818 = vmatprep.mubr.f32.mxu0 0.0
          %819 = vmatmul.mubr.f32.gmra.mrb[0].mxu0 %v749
          %v820 = vpop.f32.mrb[0].mxu0
          %v821 = vadd.f32 0.0, %v820
          %v822 = vpop.f32.mrb[0].mxu0
          %823 = vmatprep.mubr.f32.mxu0 0.0
          %824 = vmatmul.mubr.f32.gmra.mrb[0].mxu0 %v752
          %v825 = vpop.f32.mrb[0].mxu0
          %v826 = vadd.f32 0.0, %v825
          %v827 = vpop.f32.mrb[0].mxu0
          %828 = vdwg.mxu0
          %v830 = vsel %vm735, %v744, 0
          %v833 = vsel %vm735, %v745, 0
          %835 = vmatprep.subr.mxu0 0.0
          %836 = vmatpush1.msra.mxu0 %v821
          %837 = vmatprep.subr.mxu0 0.0
          %838 = vmatpush1.msra.mxu0 %v826
          %839 = vmatprep.subr.mxu0 0.0
          %840 = vmatpush1.msra.mxu0 0.0
          %841 = vmatprep.subr.mxu0 0.0
          %842 = vmatpush1.msra.mxu0 0.0
          %843 = vmatprep.subr.mxu0 0.0
          %844 = vmatpush1.msra.mxu0 0.0
          %845 = vmatprep.subr.mxu0 0.0
          %846 = vmatpush1.msra.mxu0 0.0
          %847 = vmatprep.subr.mxu0 0.0
          %848 = vmatpush1.msra.mxu0 0.0
          %849 = vmatprep.subr.mxu0 0.0
          %850 = vmatpush1.msra.mxu0 0.0
          %851 = vmatprep.subr.mxu0 0.0
          %852 = vmatpush1.msra.mxu0 0.0
          %853 = vmatprep.subr.mxu0 0.0
          %854 = vmatpush1.msra.mxu0 0.0
          %855 = vmatprep.subr.mxu0 0.0
          %856 = vmatpush1.msra.mxu0 0.0
          %857 = vmatprep.subr.mxu0 0.0
          %858 = vmatpush1.msra.mxu0 0.0
          %859 = vmatprep.subr.mxu0 0.0
          %860 = vmatpush1.msra.mxu0 0.0
          %861 = vmatprep.subr.mxu0 0.0
          %862 = vmatpush1.msra.mxu0 0.0
          %863 = vmatprep.subr.mxu0 0.0
          %864 = vmatpush1.msra.mxu0 0.0
          %865 = vmatprep.subr.mxu0 0.0
          %866 = vmatpush1.msra.mxu0 0.0
          %867 = vmatprep.subr.mxu0 0.0
          %868 = vmatpush1.msra.mxu0 0.0
          %869 = vmatprep.subr.mxu0 0.0
          %870 = vmatpush1.msra.mxu0 0.0
          %871 = vmatprep.subr.mxu0 0.0
          %872 = vmatpush1.msra.mxu0 0.0
          %873 = vmatprep.subr.mxu0 0.0
          %874 = vmatpush1.msra.mxu0 0.0
          %875 = vmatprep.subr.mxu0 0.0
          %876 = vmatpush1.msra.mxu0 0.0
          %877 = vmatprep.subr.mxu0 0.0
          %878 = vmatpush1.msra.mxu0 0.0
          %879 = vmatprep.subr.mxu0 0.0
          %880 = vmatpush1.msra.mxu0 0.0
          %881 = vmatprep.subr.mxu0 0.0
          %882 = vmatpush1.msra.mxu0 0.0
          %883 = vmatprep.subr.mxu0 0.0
          %884 = vmatpush1.msra.mxu0 0.0
          %885 = vmatprep.subr.mxu0 0.0
          %886 = vmatpush1.msra.mxu0 0.0
          %887 = vmatprep.subr.mxu0 0.0
          %888 = vmatpush1.msra.mxu0 0.0
          %889 = vmatprep.subr.mxu0 0.0
          %890 = vmatpush1.msra.mxu0 0.0
          %891 = vmatprep.subr.mxu0 0.0
          %892 = vmatpush1.msra.mxu0 0.0
          %893 = vmatprep.subr.mxu0 0.0
          %894 = vmatpush1.msra.mxu0 0.0
          %895 = vmatprep.subr.mxu0 0.0
          %896 = vmatpush1.msra.mxu0 0.0
          %897 = vmatprep.subr.mxu0 0.0
          %898 = vmatpush1.msra.mxu0 0.0
          %899 = vmatprep.mubr.f32.mxu0 0.0
          %900 = vmatmul.mubr.f32.gmra.mrb[0].mxu0 %v830
          %v901 = vpop.f32.mrb[0].mxu0
          %v902 = vadd.f32 0.0, %v901
          %v903 = vpop.f32.mrb[0].mxu0
          %904 = vmatprep.mubr.f32.mxu0 0.0
          %905 = vmatmul.mubr.f32.gmra.mrb[0].mxu0 %v833
          %v906 = vpop.f32.mrb[0].mxu0
          %v907 = vadd.f32 0.0, %v906
          %v908 = vpop.f32.mrb[0].mxu0
          %909 = vdwg.mxu0
          %910 = vst.msk [vmem:[%s11] sm:$0xff] %vm735, %v902
          %911 = vst.msk [vmem:[%s11 + $0x8] sm:$0xff] %vm735, %v907
          %v912 = vmul.f32 %v733, %v740
          %v913 = vmul.f32 %v734, %v741
          %v914 = vsel %vm735, %v912, 0.0
          %v915 = vsel %vm735, %v913, 0.0
          %v916 = vadd.f32 %v914, %v915
          %917 = vadd.xlane.f32.xlu0 %v916
          %v918 = vpop.xlane.xlu0 %917
          %v919 = vrot.slane %v918, 4
          %v920 = vadd.f32 %v918, %v919
          %v921 = vrot.slane %v920, 2
          %v922 = vadd.f32 %v920, %v921
          %v923 = vrot.slane %v922, 1
          %v924 = vadd.f32 %v922, %v923
          %s925 = vtos %v924
          %v926 = vmul.f32 %v733, %v738
          %v927 = vmul.f32 %v734, %v739
          %v928 = vsel %vm735, %v926, 0.0
          %v929 = vsel %vm735, %v927, 0.0
          %v930 = vadd.f32 %v928, %v929
          %931 = vadd.xlane.f32.xlu0 %v930
          %v932 = vpop.xlane.xlu0 %931
          %v933 = vrot.slane %v932, 4
          %v934 = vadd.f32 %v932, %v933
          %v935 = vrot.slane %v934, 2
          %v936 = vadd.f32 %v934, %v935
          %v937 = vrot.slane %v936, 1
          %v938 = vadd.f32 %v936, %v937
          %s939 = vtos %v938
          %s940 = smul.f32 %s939, 0.5
          %s941 = sadd.f32 %s925, %s940
          %s942 = sld [smem:[#allocation5]]
          %s943 = sadd.f32 %s941, %s942
          %s944 = scalar_lea.smem [#allocation6], 0
          %945 = sst [smem:[%s944]] %s943
        $region68: #{_scf_loop.20} parent=59 // pred_fallthru
          _
        // Predicated region
        $region69: #{_scf_loop.20} parent=59 // pred_check
          %p946 = pneg %p265
        $region70: #{_scf_loop.20} parent=59 // pred_check_branch
          %948 = sbr.rel (%p946) target = $region72
        $region71: #{_scf_loop.20} parent=59 // pred_region
          _
        $region72: #{_scf_loop.20} parent=59 // pred_fallthru
          _
        // Predicated region
        $region73: #{_scf_loop.20} parent=59 // pred_check
          %p949 = pneg %p286
        $region74: #{_scf_loop.20} parent=59 // pred_check_branch
          %951 = sbr.rel (%p949) target = $region76
        $region75: #{_scf_loop.20} parent=59 // pred_region
          _
        $region76: #{_scf_loop.20} parent=59 // pred_fallthru
          _
        // Predicated region
        $region77: #{_scf_loop.20} parent=59 // pred_check
          %p952 = pneg %p307
        $region78: #{_scf_loop.20} parent=59 // pred_check_branch
          %954 = sbr.rel (%p952) target = $region80
        $region79: #{_scf_loop.20} parent=59 // pred_region
          %s956 = ssub.s32 16, 16
          %957 = vsyncadd [#allocation7], %s956
          %960 = dma.smem_to_hbm [#allocation6], 16, %s12, [#allocation7]
        $region80: #{_scf_loop.20} parent=59 // pred_fallthru
          _
        // Predicated region
        $region81: #{_scf_loop.20} parent=59 // pred_check
          %p961 = pneg %p265
        $region82: #{_scf_loop.20} parent=59 // pred_check_branch
          %963 = sbr.rel (%p961) target = $region84
        $region83: #{_scf_loop.20} parent=59 // pred_region
          _
        $region84: #{_scf_loop.20} parent=59 // pred_fallthru
          _
        // Predicated region
        $region85: #{_scf_loop.20} parent=59 // pred_check
          %p964 = pneg %p286
        $region86: #{_scf_loop.20} parent=59 // pred_check_branch
          %966 = sbr.rel (%p964) target = $region88
        $region87: #{_scf_loop.20} parent=59 // pred_region
          _
        $region88: #{_scf_loop.20} parent=59 // pred_fallthru
          _
        // Predicated region
        $region89: #{_scf_loop.20} parent=59 // pred_check
          %p967 = pneg %p307
        $region90: #{_scf_loop.20} parent=59 // pred_check_branch
          %969 = sbr.rel (%p967) target = $region92
        $region91: #{_scf_loop.20} parent=59 // pred_region
          %970 = dma.done [#allocation7], 16
        $region92: #{_scf_loop.20} parent=59 // pred_fallthru
          _
        %971 = sfence
      $region60: #{_scf_loop.20} parent=5 // pred_fallthru
        _
      %p972 = scmp.le.s32.totalorder 2, %s22
      // Predicated region
      $region93: #{_scf_loop.20} parent=5 // pred_check
        %p973 = pneg %p972
      $region94: #{_scf_loop.20} parent=5 // pred_check_branch
        %975 = sbr.rel (%p973) target = $region96
      $region95: #{_scf_loop.20} parent=5 // pred_region
        %s976 = ssub.s32 %s22, 2
      $region96: #{_scf_loop.20} parent=5 // pred_fallthru
        _
    $region6: #{_scf_loop.20} parent=1 // loop_footer
      %s26 = sadd.s32 1, %s22
    $region7: #{_scf_loop.20} parent=1 // loop_footer_branch
      %21 = sbr.rel target = $region3
    $region8: #{_scf_loop.20} parent=1 // loop_exit
      _
    %977 = vsyncpa [#allocation7], 1
    %s978 = scalar_lea.sflag [#allocation7], 1
    %979 = vsyncpa %s978, 1

// kernel: _scf_loop.21
$region0: #{_scf_loop.21}
  #allocation0 [shape = 'u32[]', space=smem, size = 0x4, offset = 0x4, fixed_abs, tag = 'smem constant byte address 0x4 - core index']
  #allocation1 [shape = 'u32[144,128]{1,0:T(1,128)}', space=vmem, size = 0x12000, scoped, tag = 'internal scratch']
  %s0 = inlined_call_operand.vmem [shape: f32[16,16], index: 0, kind: input, shape index: {}]
  %s1 = inlined_call_operand.vmem [shape: f32[16,8], index: 1, kind: input, shape index: {}]
  %s2 = inlined_call_operand.vmem [shape: f32[1,8], index: 2, kind: input, shape index: {}]
  %s3 = inlined_call_operand.vmem [shape: f32[16,16], index: 3, kind: output, shape index: {}]
  %s4 = sld [smem:[#allocation0]]
  $region22: #{_scf_loop.21} parent=0
    _
  %s6 = ssub.s32 1, %s4
  %s7 = scalar_select 0, %s6, %s4
  // Predicated region
  $region2: #{_scf_loop.21} parent=0 // pred_check
    _
  $region3: #{_scf_loop.21} parent=0 // pred_check_branch
    %9 = sbr.rel (0) target = $region5
  $region4: #{_scf_loop.21} parent=0 // pred_region
    _
  $region5: #{_scf_loop.21} parent=0 // pred_fallthru
    _
  // Predicated region
  $region6: #{_scf_loop.21} parent=0 // pred_check
    _
  $region7: #{_scf_loop.21} parent=0 // pred_check_branch
    %11 = sbr.rel (0) target = $region9
  $region8: #{_scf_loop.21} parent=0 // pred_region
    _
  $region9: #{_scf_loop.21} parent=0 // pred_fallthru
    _
  // Predicated region
  $region10: #{_scf_loop.21} parent=0 // pred_check
    _
  $region11: #{_scf_loop.21} parent=0 // pred_check_branch
    %13 = sbr.rel (0) target = $region13
  $region12: #{_scf_loop.21} parent=0 // pred_region
    _
  $region13: #{_scf_loop.21} parent=0 // pred_fallthru
    _
  %v14 = vld [vmem:[%s0] sm:$0xff]
  %v15 = vld [vmem:[%s0 + $0x8] sm:$0xff]
  %v16 = vld [vmem:[%s1] sm:$0xff]
  %v17 = vld [vmem:[%s1 + $0x8] sm:$0xff]
  %vm18 = vcmask 130048
  %v20 = vsel %vm18, %v14, 0
  %v23 = vsel %vm18, %v15, 0
  %25 = vmatprep.subr.mxu0 0.0
  %26 = vmatpush1.msra.mxu0 %v16
  %27 = vmatprep.subr.mxu0 0.0
  %28 = vmatpush1.msra.mxu0 %v17
  %29 = vmatprep.subr.mxu0 0.0
  %30 = vmatpush1.msra.mxu0 0.0
  %31 = vmatprep.subr.mxu0 0.0
  %32 = vmatpush1.msra.mxu0 0.0
  %33 = vmatprep.subr.mxu0 0.0
  %34 = vmatpush1.msra.mxu0 0.0
  %35 = vmatprep.subr.mxu0 0.0
  %36 = vmatpush1.msra.mxu0 0.0
  %37 = vmatprep.subr.mxu0 0.0
  %38 = vmatpush1.msra.mxu0 0.0
  %39 = vmatprep.subr.mxu0 0.0
  %40 = vmatpush1.msra.mxu0 0.0
  %41 = vmatprep.subr.mxu0 0.0
  %42 = vmatpush1.msra.mxu0 0.0
  %43 = vmatprep.subr.mxu0 0.0
  %44 = vmatpush1.msra.mxu0 0.0
  %45 = vmatprep.subr.mxu0 0.0
  %46 = vmatpush1.msra.mxu0 0.0
  %47 = vmatprep.subr.mxu0 0.0
  %48 = vmatpush1.msra.mxu0 0.0
  %49 = vmatprep.subr.mxu0 0.0
  %50 = vmatpush1.msra.mxu0 0.0
  %51 = vmatprep.subr.mxu0 0.0
  %52 = vmatpush1.msra.mxu0 0.0
  %53 = vmatprep.subr.mxu0 0.0
  %54 = vmatpush1.msra.mxu0 0.0
  %55 = vmatprep.subr.mxu0 0.0
  %56 = vmatpush1.msra.mxu0 0.0
  %57 = vmatprep.subr.mxu0 0.0
  %58 = vmatpush1.msra.mxu0 0.0
  %59 = vmatprep.subr.mxu0 0.0
  %60 = vmatpush1.msra.mxu0 0.0
  %61 = vmatprep.subr.mxu0 0.0
  %62 = vmatpush1.msra.mxu0 0.0
  %63 = vmatprep.subr.mxu0 0.0
  %64 = vmatpush1.msra.mxu0 0.0
  %65 = vmatprep.subr.mxu0 0.0
  %66 = vmatpush1.msra.mxu0 0.0
  %67 = vmatprep.subr.mxu0 0.0
  %68 = vmatpush1.msra.mxu0 0.0
  %69 = vmatprep.subr.mxu0 0.0
  %70 = vmatpush1.msra.mxu0 0.0
  %71 = vmatprep.subr.mxu0 0.0
  %72 = vmatpush1.msra.mxu0 0.0
  %73 = vmatprep.subr.mxu0 0.0
  %74 = vmatpush1.msra.mxu0 0.0
  %75 = vmatprep.subr.mxu0 0.0
  %76 = vmatpush1.msra.mxu0 0.0
  %77 = vmatprep.subr.mxu0 0.0
  %78 = vmatpush1.msra.mxu0 0.0
  %79 = vmatprep.subr.mxu0 0.0
  %80 = vmatpush1.msra.mxu0 0.0
  %81 = vmatprep.subr.mxu0 0.0
  %82 = vmatpush1.msra.mxu0 0.0
  %83 = vmatprep.subr.mxu0 0.0
  %84 = vmatpush1.msra.mxu0 0.0
  %85 = vmatprep.subr.mxu0 0.0
  %86 = vmatpush1.msra.mxu0 0.0
  %87 = vmatprep.subr.mxu0 0.0
  %88 = vmatpush1.msra.mxu0 0.0
  %89 = vmatprep.mubr.f32.mxu0 0.0
  %90 = vmatmul.mubr.f32.gmra.mrb[0].mxu0 %v20
  %v91 = vpop.f32.mrb[0].mxu0
  %v92 = vadd.f32 0.0, %v91
  %v93 = vpop.f32.mrb[0].mxu0
  %94 = vmatprep.mubr.f32.mxu0 0.0
  %95 = vmatmul.mubr.f32.gmra.mrb[0].mxu0 %v23
  %v96 = vpop.f32.mrb[0].mxu0
  %v97 = vadd.f32 0.0, %v96
  %v98 = vpop.f32.mrb[0].mxu0
  %99 = vdwg.mxu0
  %v100 = vld [vmem:[%s2] sm:$0x1]
  %v102 = vlaneseq
  %v103 = vshrl.u32 %v102, 7
  %v104 = vsub.s32 0, %v103
  %v105 = vrot.slane %v100, %v104
  %v107 = vmul.f32 %v92, %v105
  %v108 = vmul.f32 %v97, %v105
  %vm109 = vcmask 64512
  %v111 = vsel %vm109, %v107, 0
  %v114 = vsel %vm109, %v108, 0
  %v117 = vsel %vm109, %v92, 0
  %v120 = vsel %vm109, %v97, 0
  %122 = vmatprep.subr.mxu0 0.0
  %123 = vmatpush1.xpose.msra.mxu0 %v117
  %124 = vmatprep.subr.mxu0 0.0
  %125 = vmatpush1.xpose.msra.mxu0 %v120
  %126 = vmatprep.subr.mxu0 0.0
  %127 = vmatpush1.xpose.msra.mxu0 0.0
  %128 = vmatprep.subr.mxu0 0.0
  %129 = vmatpush1.xpose.msra.mxu0 0.0
  %130 = vmatprep.subr.mxu0 0.0
  %131 = vmatpush1.xpose.msra.mxu0 0.0
  %132 = vmatprep.subr.mxu0 0.0
  %133 = vmatpush1.xpose.msra.mxu0 0.0
  %134 = vmatprep.subr.mxu0 0.0
  %135 = vmatpush1.xpose.msra.mxu0 0.0
  %136 = vmatprep.subr.mxu0 0.0
  %137 = vmatpush1.xpose.msra.mxu0 0.0
  %138 = vmatprep.subr.mxu0 0.0
  %139 = vmatpush1.xpose.msra.mxu0 0.0
  %140 = vmatprep.subr.mxu0 0.0
  %141 = vmatpush1.xpose.msra.mxu0 0.0
  %142 = vmatprep.subr.mxu0 0.0
  %143 = vmatpush1.xpose.msra.mxu0 0.0
  %144 = vmatprep.subr.mxu0 0.0
  %145 = vmatpush1.xpose.msra.mxu0 0.0
  %146 = vmatprep.subr.mxu0 0.0
  %147 = vmatpush1.xpose.msra.mxu0 0.0
  %148 = vmatprep.subr.mxu0 0.0
  %149 = vmatpush1.xpose.msra.mxu0 0.0
  %150 = vmatprep.subr.mxu0 0.0
  %151 = vmatpush1.xpose.msra.mxu0 0.0
  %152 = vmatprep.subr.mxu0 0.0
  %153 = vmatpush1.xpose.msra.mxu0 0.0
  %154 = vmatprep.subr.mxu0 0.0
  %155 = vmatpush1.xpose.msra.mxu0 0.0
  %156 = vmatprep.subr.mxu0 0.0
  %157 = vmatpush1.xpose.msra.mxu0 0.0
  %158 = vmatprep.subr.mxu0 0.0
  %159 = vmatpush1.xpose.msra.mxu0 0.0
  %160 = vmatprep.subr.mxu0 0.0
  %161 = vmatpush1.xpose.msra.mxu0 0.0
  %162 = vmatprep.subr.mxu0 0.0
  %163 = vmatpush1.xpose.msra.mxu0 0.0
  %164 = vmatprep.subr.mxu0 0.0
  %165 = vmatpush1.xpose.msra.mxu0 0.0
  %166 = vmatprep.subr.mxu0 0.0
  %167 = vmatpush1.xpose.msra.mxu0 0.0
  %168 = vmatprep.subr.mxu0 0.0
  %169 = vmatpush1.xpose.msra.mxu0 0.0
  %170 = vmatprep.subr.mxu0 0.0
  %171 = vmatpush1.xpose.msra.mxu0 0.0
  %172 = vmatprep.subr.mxu0 0.0
  %173 = vmatpush1.xpose.msra.mxu0 0.0
  %174 = vmatprep.subr.mxu0 0.0
  %175 = vmatpush1.xpose.msra.mxu0 0.0
  %176 = vmatprep.subr.mxu0 0.0
  %177 = vmatpush1.xpose.msra.mxu0 0.0
  %178 = vmatprep.subr.mxu0 0.0
  %179 = vmatpush1.xpose.msra.mxu0 0.0
  %180 = vmatprep.subr.mxu0 0.0
  %181 = vmatpush1.xpose.msra.mxu0 0.0
  %182 = vmatprep.subr.mxu0 0.0
  %183 = vmatpush1.xpose.msra.mxu0 0.0
  %184 = vmatprep.subr.mxu0 0.0
  %185 = vmatpush1.xpose.msra.mxu0 0.0
  %186 = vmatprep.mubr.f32.mxu0 0.0
  %187 = vmatmul.mubr.f32.gmra.mrb[0].mxu0 %v111
  %v188 = vpop.f32.mrb[0].mxu0
  %v189 = vadd.f32 0.0, %v188
  %v190 = vpop.f32.mrb[0].mxu0
  %191 = vmatprep.mubr.f32.mxu0 0.0
  %192 = vmatmul.mubr.f32.gmra.mrb[0].mxu0 %v114
  %v193 = vpop.f32.mrb[0].mxu0
  %v194 = vadd.f32 0.0, %v193
  %v195 = vpop.f32.mrb[0].mxu0
  %196 = vdwg.mxu0
  %197 = vst.msk [vmem:[%s3] sm:$0xff] %vm18, %v189
  %198 = vst.msk [vmem:[%s3 + $0x8] sm:$0xff] %vm18, %v194
  // Predicated region
  $region14: #{_scf_loop.21} parent=0 // pred_check
    _
  $region15: #{_scf_loop.21} parent=0 // pred_check_branch
    %200 = sbr.rel (0) target = $region17
  $region16: #{_scf_loop.21} parent=0 // pred_region
    _
  $region17: #{_scf_loop.21} parent=0 // pred_fallthru
    _
  // Predicated region
  $region18: #{_scf_loop.21} parent=0 // pred_check
    _
  $region19: #{_scf_loop.21} parent=0 // pred_check_branch
    %202 = sbr.rel (0) target = $region21
  $region20: #{_scf_loop.21} parent=0 // pred_region
    _
  $region21: #{_scf_loop.21} parent=0 // pred_fallthru
    _

// kernel: _scf_loop.38
$region0: #{_scf_loop.38}
  #allocation0 [shape = 'u32[]', space=smem, size = 0x4, offset = 0x4, fixed_abs, tag = 'smem constant byte address 0x4 - core index']
  #allocation1 [shape = 'u32[144,128]{1,0:T(1,128)}', space=vmem, size = 0x12000, scoped, tag = 'internal scratch']
  #allocation2 [shape = 'f32[1,256]{1,0:T(1,128)}', space=vmem, size = 0x400, scoped, tag = 'scratch operand']
  #allocation3 [shape = 'f32[16,16]{1,0:T(8,128)}', space=vmem, size = 0x2000, scoped, tag = 'scratch operand']
  #allocation4 [shape = 'f32[1,1]{1,0:T(1,128)S(6)}', space=smem, size = 0x200, scoped, tag = 'scoped memory for _scf_loop.38']
  #allocation5 [shape = 'f32[1,1]{1,0:T(1,128)S(6)}', space=smem, size = 0x200, scoped, tag = 'scoped memory for _scf_loop.38']
  %s0 = inlined_call_operand.<no memory space> [shape: f32[1,1], index: 0, kind: input, shape index: {}]
  %s1 = inlined_call_operand.<no memory space> [shape: f32[1,1], index: 1, kind: input, shape index: {}]
  %s2 = inlined_call_operand.vmem [shape: f32[1,256], index: 2, kind: input, shape index: {}]
  %s3 = inlined_call_operand.vmem [shape: f32[1,256], index: 3, kind: input, shape index: {}]
  %s4 = inlined_call_operand.vmem [shape: f32[16,16], index: 4, kind: input, shape index: {}]
  %s5 = inlined_call_operand.vmem [shape: f32[16,16], index: 5, kind: input, shape index: {}]
  %s6 = inlined_call_operand.vmem [shape: f32[16,16], index: 6, kind: input, shape index: {}]
  %s7 = inlined_call_operand.vmem [shape: f32[16,16], index: 7, kind: input, shape index: {}]
  %s8 = inlined_call_operand.vmem [shape: f32[16,16], index: 8, kind: input, shape index: {}]
  %s9 = inlined_call_operand.vmem [shape: f32[256,256], index: 9, kind: input, shape index: {}]
  %s10 = inlined_call_operand.hbm [shape: f32[16,16], index: 10, kind: output, shape index: {0}]
  %s11 = inlined_call_operand.vmem [shape: f32[16,16], index: 11, kind: output, shape index: {1}]
  %s12 = inlined_call_operand.hbm [shape: f32[1,1], index: 12, kind: output, shape index: {2}]
  %13 = xla_tuple %s10, %s11, %s12
  %s14 = sld [smem:[#allocation0]]
  $region97: #{_scf_loop.38} parent=0
    _
  %s16 = ssub.s32 1, %s14
  %s17 = scalar_select 0, %s16, %s14
  %18 = sst [smem:[#allocation4]] %s0
  %19 = sst [smem:[#allocation5]] %s1
  $region1: #{_scf_loop.38} parent=0
    #allocation6 [shape = 'u8[8192]{0}', space=vmem, size = 0x2000, scoped, tag = 'output window, operand 0, single buffered']
    #allocation7 [shape = 's32[2]{0}', space=sflag, size = 0x8, scoped, tag = 'scoped memory for _scf_loop.38']
    #allocation8 [shape = 's32[2]{0}', space=sflag, size = 0x8, scoped, tag = 'scoped memory for _scf_loop.38']
    #allocation9 [shape = 'u8[512]{0}', space=smem, size = 0x200, scoped, tag = 'output window, operand 2, single buffered']
    %20 = vsyncpa [#allocation7], 0
    %21 = vsyncpa [#allocation8], 0
    loop: start=0, step=1, limit=4
    $region2: #{_scf_loop.38} parent=1 // loop_pre_header
      _
    $region3: #{_scf_loop.38} parent=1 // loop_header
      %s23 = sphi 0, %s27
      %p24 = scmp.ge.s32.totalorder %s23, 4
      %s31 = sphi 0, %s31
      %s33 = sphi 0, %s31
      %s34 = sphi 0, %s33
      %s48 = sphi 0, %s34
      %s52 = sphi 0, %s52
      %s54 = sphi 0, %s52
      %s55 = sphi 0, %s54
      %s69 = sphi 0, %s55
      %s75 = sphi 0, %s77
      %s78 = sphi 0, %s75
      %s79 = sphi 0, %s78
      %s95 = sphi 0, %s79
      %s101 = sphi 0, %s103
      %s104 = sphi 0, %s101
      %s105 = sphi 0, %s104
      %s121 = sphi 0, %s105
      %s125 = sphi 0, %s125
      %s127 = sphi 0, %s125
      %s128 = sphi 0, %s127
      %s142 = sphi 0, %s128
      %s146 = sphi 0, %s146
      %s148 = sphi 0, %s146
      %s149 = sphi 0, %s148
      %s163 = sphi 0, %s149
      %s167 = sphi 0, %s167
      %s169 = sphi 0, %s167
      %s170 = sphi 0, %s169
      %s184 = sphi 0, %s170
      %s188 = sphi 0, %s188
      %s190 = sphi 0, %s188
      %s191 = sphi 0, %s190
      %s205 = sphi 0, %s191
      %s209 = sphi 0, %s209
      %s211 = sphi 0, %s209
      %s212 = sphi 0, %s211
      %s226 = sphi 0, %s212
      %s232 = sphi 0, %s234
      %s235 = sphi 0, %s232
      %s236 = sphi 0, %s235
      %s252 = sphi 0, %s236
      %s256 = sphi 0, %s256
      %s258 = sphi 0, %s256
      %s259 = sphi 0, %s258
      %s273 = sphi 0, %s259
      %s277 = sphi 0, %s277
      %s279 = sphi 0, %s277
      %s280 = sphi 0, %s279
      %s294 = sphi 0, %s280
      %s298 = sphi 0, %s298
      %s300 = sphi 0, %s298
      %s301 = sphi 0, %s300
      %s315 = sphi 0, %s301
    $region4: #{_scf_loop.38} parent=1 // loop_header_branch
      %26 = sbr.rel (%p24) target = $region8
    $region5: #{_scf_loop.38} parent=1 // loop_body
      %s28 = ssub.s32 %s23, 1
      %s29 = ssub.s32 %s23, 2
      %s30 = sadd.s32 %s23, 1
      %s32 = sadd.s32 %s31, 1
      %p35 = scmp.eq.s32.totalorder %s23, 1
      %p36 = scmp.ne.s32.totalorder %s31, %s33
      %p37 = scmp.eq.s32.totalorder %s23, 0
      %p38 = por %p36, %p37
      %p39 = scmp.ne.s32.totalorder %s31, %s33
      %p40 = scmp.eq.s32.totalorder %s28, 1
      %p41 = por %p39, %p40
      %p42 = scmp.ne.s32.totalorder %s33, %s34
      %p43 = scmp.eq.s32.totalorder %s28, 0
      %p44 = por %p42, %p43
      %p45 = scmp.ne.s32.totalorder %s33, %s34
      %p46 = scmp.eq.s32.totalorder %s29, 1
      %p47 = por %p45, %p46
      %p49 = scmp.ne.s32.totalorder %s34, %s48
      %p50 = scmp.eq.s32.totalorder %s29, 0
      %p51 = por %p49, %p50
      %s53 = sadd.s32 %s52, 1
      %p56 = scmp.eq.s32.totalorder %s23, 1
      %p57 = scmp.ne.s32.totalorder %s52, %s54
      %p58 = scmp.eq.s32.totalorder %s23, 0
      %p59 = por %p57, %p58
      %p60 = scmp.ne.s32.totalorder %s52, %s54
      %p61 = scmp.eq.s32.totalorder %s28, 1
      %p62 = por %p60, %p61
      %p63 = scmp.ne.s32.totalorder %s54, %s55
      %p64 = scmp.eq.s32.totalorder %s28, 0
      %p65 = por %p63, %p64
      %p66 = scmp.ne.s32.totalorder %s54, %s55
      %p67 = scmp.eq.s32.totalorder %s29, 1
      %p68 = por %p66, %p67
      %p70 = scmp.ne.s32.totalorder %s55, %s69
      %p71 = scmp.eq.s32.totalorder %s29, 0
      %p72 = por %p70, %p71
      %s73 = ssub.s32 %s23, %s30
      %p74 = scmp.eq.s32.totalorder %s73, 0
      %s76 = sadd.s32 %s75, 1
      %s77 = scalar_select %p74, %s75, %s76
      %p80 = pneg %p74
      %p81 = scmp.eq.s32.totalorder %s23, 1
      %p82 = por %p80, %p81
      %p83 = scmp.ne.s32.totalorder %s75, %s78
      %p84 = scmp.eq.s32.totalorder %s23, 0
      %p85 = por %p83, %p84
      %p86 = scmp.ne.s32.totalorder %s75, %s78
      %p87 = scmp.eq.s32.totalorder %s28, 1
      %p88 = por %p86, %p87
      %p89 = scmp.ne.s32.totalorder %s78, %s79
      %p90 = scmp.eq.s32.totalorder %s28, 0
      %p91 = por %p89, %p90
      %p92 = scmp.ne.s32.totalorder %s78, %s79
      %p93 = scmp.eq.s32.totalorder %s29, 1
      %p94 = por %p92, %p93
      %p96 = scmp.ne.s32.totalorder %s79, %s95
      %p97 = scmp.eq.s32.totalorder %s29, 0
      %p98 = por %p96, %p97
      %s99 = ssub.s32 %s23, %s30
      %p100 = scmp.eq.s32.totalorder %s99, 0
      %s102 = sadd.s32 %s101, 1
      %s103 = scalar_select %p100, %s101, %s102
      %p106 = pneg %p100
      %p107 = scmp.eq.s32.totalorder %s23, 1
      %p108 = por %p106, %p107
      %p109 = scmp.ne.s32.totalorder %s101, %s104
      %p110 = scmp.eq.s32.totalorder %s23, 0
      %p111 = por %p109, %p110
      %p112 = scmp.ne.s32.totalorder %s101, %s104
      %p113 = scmp.eq.s32.totalorder %s28, 1
      %p114 = por %p112, %p113
      %p115 = scmp.ne.s32.totalorder %s104, %s105
      %p116 = scmp.eq.s32.totalorder %s28, 0
      %p117 = por %p115, %p116
      %p118 = scmp.ne.s32.totalorder %s104, %s105
      %p119 = scmp.eq.s32.totalorder %s29, 1
      %p120 = por %p118, %p119
      %p122 = scmp.ne.s32.totalorder %s105, %s121
      %p123 = scmp.eq.s32.totalorder %s29, 0
      %p124 = por %p122, %p123
      %s126 = sadd.s32 %s125, 1
      %p129 = scmp.eq.s32.totalorder %s23, 1
      %p130 = scmp.ne.s32.totalorder %s125, %s127
      %p131 = scmp.eq.s32.totalorder %s23, 0
      %p132 = por %p130, %p131
      %p133 = scmp.ne.s32.totalorder %s125, %s127
      %p134 = scmp.eq.s32.totalorder %s28, 1
      %p135 = por %p133, %p134
      %p136 = scmp.ne.s32.totalorder %s127, %s128
      %p137 = scmp.eq.s32.totalorder %s28, 0
      %p138 = por %p136, %p137
      %p139 = scmp.ne.s32.totalorder %s127, %s128
      %p140 = scmp.eq.s32.totalorder %s29, 1
      %p141 = por %p139, %p140
      %p143 = scmp.ne.s32.totalorder %s128, %s142
      %p144 = scmp.eq.s32.totalorder %s29, 0
      %p145 = por %p143, %p144
      %s147 = sadd.s32 %s146, 1
      %p150 = scmp.eq.s32.totalorder %s23, 1
      %p151 = scmp.ne.s32.totalorder %s146, %s148
      %p152 = scmp.eq.s32.totalorder %s23, 0
      %p153 = por %p151, %p152
      %p154 = scmp.ne.s32.totalorder %s146, %s148
      %p155 = scmp.eq.s32.totalorder %s28, 1
      %p156 = por %p154, %p155
      %p157 = scmp.ne.s32.totalorder %s148, %s149
      %p158 = scmp.eq.s32.totalorder %s28, 0
      %p159 = por %p157, %p158
      %p160 = scmp.ne.s32.totalorder %s148, %s149
      %p161 = scmp.eq.s32.totalorder %s29, 1
      %p162 = por %p160, %p161
      %p164 = scmp.ne.s32.totalorder %s149, %s163
      %p165 = scmp.eq.s32.totalorder %s29, 0
      %p166 = por %p164, %p165
      %s168 = sadd.s32 %s167, 1
      %p171 = scmp.eq.s32.totalorder %s23, 1
      %p172 = scmp.ne.s32.totalorder %s167, %s169
      %p173 = scmp.eq.s32.totalorder %s23, 0
      %p174 = por %p172, %p173
      %p175 = scmp.ne.s32.totalorder %s167, %s169
      %p176 = scmp.eq.s32.totalorder %s28, 1
      %p177 = por %p175, %p176
      %p178 = scmp.ne.s32.totalorder %s169, %s170
      %p179 = scmp.eq.s32.totalorder %s28, 0
      %p180 = por %p178, %p179
      %p181 = scmp.ne.s32.totalorder %s169, %s170
      %p182 = scmp.eq.s32.totalorder %s29, 1
      %p183 = por %p181, %p182
      %p185 = scmp.ne.s32.totalorder %s170, %s184
      %p186 = scmp.eq.s32.totalorder %s29, 0
      %p187 = por %p185, %p186
      %s189 = sadd.s32 %s188, 1
      %p192 = scmp.eq.s32.totalorder %s23, 1
      %p193 = scmp.ne.s32.totalorder %s188, %s190
      %p194 = scmp.eq.s32.totalorder %s23, 0
      %p195 = por %p193, %p194
      %p196 = scmp.ne.s32.totalorder %s188, %s190
      %p197 = scmp.eq.s32.totalorder %s28, 1
      %p198 = por %p196, %p197
      %p199 = scmp.ne.s32.totalorder %s190, %s191
      %p200 = scmp.eq.s32.totalorder %s28, 0
      %p201 = por %p199, %p200
      %p202 = scmp.ne.s32.totalorder %s190, %s191
      %p203 = scmp.eq.s32.totalorder %s29, 1
      %p204 = por %p202, %p203
      %p206 = scmp.ne.s32.totalorder %s191, %s205
      %p207 = scmp.eq.s32.totalorder %s29, 0
      %p208 = por %p206, %p207
      %s210 = sadd.s32 %s209, 1
      %p213 = scmp.eq.s32.totalorder %s23, 1
      %p214 = scmp.ne.s32.totalorder %s209, %s211
      %p215 = scmp.eq.s32.totalorder %s23, 0
      %p216 = por %p214, %p215
      %p217 = scmp.ne.s32.totalorder %s209, %s211
      %p218 = scmp.eq.s32.totalorder %s28, 1
      %p219 = por %p217, %p218
      %p220 = scmp.ne.s32.totalorder %s211, %s212
      %p221 = scmp.eq.s32.totalorder %s28, 0
      %p222 = por %p220, %p221
      %p223 = scmp.ne.s32.totalorder %s211, %s212
      %p224 = scmp.eq.s32.totalorder %s29, 1
      %p225 = por %p223, %p224
      %p227 = scmp.ne.s32.totalorder %s212, %s226
      %p228 = scmp.eq.s32.totalorder %s29, 0
      %p229 = por %p227, %p228
      %s230 = ssub.s32 %s23, %s30
      %p231 = scmp.eq.s32.totalorder %s230, 0
      %s233 = sadd.s32 %s232, 1
      %s234 = scalar_select %p231, %s232, %s233
      %p237 = pneg %p231
      %p238 = scmp.eq.s32.totalorder %s23, 1
      %p239 = por %p237, %p238
      %p240 = scmp.ne.s32.totalorder %s232, %s235
      %p241 = scmp.eq.s32.totalorder %s23, 0
      %p242 = por %p240, %p241
      %p243 = scmp.ne.s32.totalorder %s232, %s235
      %p244 = scmp.eq.s32.totalorder %s28, 1
      %p245 = por %p243, %p244
      %p246 = scmp.ne.s32.totalorder %s235, %s236
      %p247 = scmp.eq.s32.totalorder %s28, 0
      %p248 = por %p246, %p247
      %p249 = scmp.ne.s32.totalorder %s235, %s236
      %p250 = scmp.eq.s32.totalorder %s29, 1
      %p251 = por %p249, %p250
      %p253 = scmp.ne.s32.totalorder %s236, %s252
      %p254 = scmp.eq.s32.totalorder %s29, 0
      %p255 = por %p253, %p254
      %s257 = sadd.s32 %s256, 1
      %p260 = scmp.eq.s32.totalorder %s23, 1
      %p261 = scmp.ne.s32.totalorder %s256, %s258
      %p262 = scmp.eq.s32.totalorder %s23, 0
      %p263 = por %p261, %p262
      %p264 = scmp.ne.s32.totalorder %s256, %s258
      %p265 = scmp.eq.s32.totalorder %s28, 1
      %p266 = por %p264, %p265
      %p267 = scmp.ne.s32.totalorder %s258, %s259
      %p268 = scmp.eq.s32.totalorder %s28, 0
      %p269 = por %p267, %p268
      %p270 = scmp.ne.s32.totalorder %s258, %s259
      %p271 = scmp.eq.s32.totalorder %s29, 1
      %p272 = por %p270, %p271
      %p274 = scmp.ne.s32.totalorder %s259, %s273
      %p275 = scmp.eq.s32.totalorder %s29, 0
      %p276 = por %p274, %p275
      %s278 = sadd.s32 %s277, 1
      %p281 = scmp.eq.s32.totalorder %s23, 1
      %p282 = scmp.ne.s32.totalorder %s277, %s279
      %p283 = scmp.eq.s32.totalorder %s23, 0
      %p284 = por %p282, %p283
      %p285 = scmp.ne.s32.totalorder %s277, %s279
      %p286 = scmp.eq.s32.totalorder %s28, 1
      %p287 = por %p285, %p286
      %p288 = scmp.ne.s32.totalorder %s279, %s280
      %p289 = scmp.eq.s32.totalorder %s28, 0
      %p290 = por %p288, %p289
      %p291 = scmp.ne.s32.totalorder %s279, %s280
      %p292 = scmp.eq.s32.totalorder %s29, 1
      %p293 = por %p291, %p292
      %p295 = scmp.ne.s32.totalorder %s280, %s294
      %p296 = scmp.eq.s32.totalorder %s29, 0
      %p297 = por %p295, %p296
      %s299 = sadd.s32 %s298, 1
      %p302 = scmp.eq.s32.totalorder %s23, 1
      %p303 = scmp.ne.s32.totalorder %s298, %s300
      %p304 = scmp.eq.s32.totalorder %s23, 0
      %p305 = por %p303, %p304
      %p306 = scmp.ne.s32.totalorder %s298, %s300
      %p307 = scmp.eq.s32.totalorder %s28, 1
      %p308 = por %p306, %p307
      %p309 = scmp.ne.s32.totalorder %s300, %s301
      %p310 = scmp.eq.s32.totalorder %s28, 0
      %p311 = por %p309, %p310
      %p312 = scmp.ne.s32.totalorder %s300, %s301
      %p313 = scmp.eq.s32.totalorder %s29, 1
      %p314 = por %p312, %p313
      %p316 = scmp.ne.s32.totalorder %s301, %s315
      %p317 = scmp.eq.s32.totalorder %s29, 0
      %p318 = por %p316, %p317
      %p319 = scmp.le.s32.totalorder 1, %s23
      %p320 = scmp.lt.s32.totalorder %s23, 3
      %p321 = pnand %p319, %p320
      %p322 = pneg %p321
      // Predicated region
      $region9: #{_scf_loop.38} parent=5 // pred_check
        _
      $region10: #{_scf_loop.38} parent=5 // pred_check_branch
        %324 = sbr.rel (%p321) target = $region12
      $region11: #{_scf_loop.38} parent=5 // pred_region
        %s325 = ssub.s32 %s23, 1
        // Predicated region
        $region13: #{_scf_loop.38} parent=11 // pred_check
          %p326 = pneg %p44
        $region14: #{_scf_loop.38} parent=11 // pred_check_branch
          %328 = sbr.rel (%p326) target = $region16
        $region15: #{_scf_loop.38} parent=11 // pred_region
          _
        $region16: #{_scf_loop.38} parent=11 // pred_fallthru
          _
        // Predicated region
        $region17: #{_scf_loop.38} parent=11 // pred_check
          %p329 = pneg %p65
        $region18: #{_scf_loop.38} parent=11 // pred_check_branch
          %331 = sbr.rel (%p329) target = $region20
        $region19: #{_scf_loop.38} parent=11 // pred_region
          _
        $region20: #{_scf_loop.38} parent=11 // pred_fallthru
          _
        // Predicated region
        $region21: #{_scf_loop.38} parent=11 // pred_check
          %p332 = pneg %p138
        $region22: #{_scf_loop.38} parent=11 // pred_check_branch
          %334 = sbr.rel (%p332) target = $region24
        $region23: #{_scf_loop.38} parent=11 // pred_region
          _
        $region24: #{_scf_loop.38} parent=11 // pred_fallthru
          _
        // Predicated region
        $region25: #{_scf_loop.38} parent=11 // pred_check
          %p335 = pneg %p159
        $region26: #{_scf_loop.38} parent=11 // pred_check_branch
          %337 = sbr.rel (%p335) target = $region28
        $region27: #{_scf_loop.38} parent=11 // pred_region
          _
        $region28: #{_scf_loop.38} parent=11 // pred_fallthru
          _
        // Predicated region
        $region29: #{_scf_loop.38} parent=11 // pred_check
          %p338 = pneg %p180
        $region30: #{_scf_loop.38} parent=11 // pred_check_branch
          %340 = sbr.rel (%p338) target = $region32
        $region31: #{_scf_loop.38} parent=11 // pred_region
          _
        $region32: #{_scf_loop.38} parent=11 // pred_fallthru
          _
        // Predicated region
        $region33: #{_scf_loop.38} parent=11 // pred_check
          %p341 = pneg %p201
        $region34: #{_scf_loop.38} parent=11 // pred_check_branch
          %343 = sbr.rel (%p341) target = $region36
        $region35: #{_scf_loop.38} parent=11 // pred_region
          _
        $region36: #{_scf_loop.38} parent=11 // pred_fallthru
          _
        // Predicated region
        $region37: #{_scf_loop.38} parent=11 // pred_check
          %p344 = pneg %p222
        $region38: #{_scf_loop.38} parent=11 // pred_check_branch
          %346 = sbr.rel (%p344) target = $region40
        $region39: #{_scf_loop.38} parent=11 // pred_region
          _
        $region40: #{_scf_loop.38} parent=11 // pred_fallthru
          _
      $region12: #{_scf_loop.38} parent=5 // pred_fallthru
        _
      %p347 = scmp.lt.s32.totalorder %s23, 2
      // Predicated region
      $region41: #{_scf_loop.38} parent=5 // pred_check
        %p348 = pneg %p347
      $region42: #{_scf_loop.38} parent=5 // pred_check_branch
        %350 = sbr.rel (%p348) target = $region44
      $region43: #{_scf_loop.38} parent=5 // pred_region
        // Predicated region
        $region45: #{_scf_loop.38} parent=43 // pred_check
          %p351 = pneg %p85
        $region46: #{_scf_loop.38} parent=43 // pred_check_branch
          %353 = sbr.rel (%p351) target = $region48
        $region47: #{_scf_loop.38} parent=43 // pred_region
          %p354 = scmp.lt.s32.totalorder %s23, 1
          %s355 = scalar_select %p354, %s23, 1
          %s356 = scalar_lea.vmem %s2, %s355
        $region48: #{_scf_loop.38} parent=43 // pred_fallthru
          _
        // Predicated region
        $region49: #{_scf_loop.38} parent=43 // pred_check
          %p357 = pneg %p111
        $region50: #{_scf_loop.38} parent=43 // pred_check_branch
          %359 = sbr.rel (%p357) target = $region52
        $region51: #{_scf_loop.38} parent=43 // pred_region
          %p360 = scmp.lt.s32.totalorder %s23, 1
          %s361 = scalar_select %p360, %s23, 1
          %s362 = scalar_lea.vmem %s3, %s361
        $region52: #{_scf_loop.38} parent=43 // pred_fallthru
          _
        // Predicated region
        $region53: #{_scf_loop.38} parent=43 // pred_check
          %p363 = pneg %p242
        $region54: #{_scf_loop.38} parent=43 // pred_check_branch
          %365 = sbr.rel (%p363) target = $region56
        $region55: #{_scf_loop.38} parent=43 // pred_region
          %s366 = smul.u32 16, %s23
          %p367 = scmp.lt.s32.totalorder %s366, 31
          %s368 = scalar_select %p367, %s366, 31
          %s369 = smul.addr %s368, 2
          %s370 = smul.addr %s369, 8
          %s371 = scalar_lea.vmem %s9, %s370
          %s372 = smul.u32 16, %s23
        $region56: #{_scf_loop.38} parent=43 // pred_fallthru
          _
      $region44: #{_scf_loop.38} parent=5 // pred_fallthru
        _
      %p373 = scmp.le.s32.totalorder 1, %s23
      %p374 = scmp.lt.s32.totalorder %s23, 3
      %p375 = pnand %p373, %p374
      %p376 = pneg %p375
      // Predicated region
      $region57: #{_scf_loop.38} parent=5 // pred_check
        _
      $region58: #{_scf_loop.38} parent=5 // pred_check_branch
        %378 = sbr.rel (%p375) target = $region60
      $region59: #{_scf_loop.38} parent=5 // pred_region
        %s379 = ssub.s32 %s23, 1
        %p380 = pneg %p44
        %p381 = pneg %p41
        %p382 = pneg %p65
        %p383 = pneg %p62
        %p384 = scmp.lt.s32.totalorder %s28, 1
        %s385 = scalar_select %p384, %s28, 1
        %s386 = scalar_lea.vmem %s2, %s385
        %p387 = pneg %p91
        %p388 = pneg %p88
        %p389 = scmp.lt.s32.totalorder %s28, 1
        %s390 = scalar_select %p389, %s28, 1
        %s391 = scalar_lea.vmem %s3, %s390
        %p392 = pneg %p117
        %p393 = pneg %p114
        %p394 = pneg %p138
        %p395 = pneg %p135
        %p396 = pneg %p159
        %p397 = pneg %p156
        %p398 = pneg %p180
        %p399 = pneg %p177
        %p400 = pneg %p201
        %p401 = pneg %p198
        %p402 = pneg %p222
        %p403 = pneg %p219
        %s404 = smul.u32 16, %s28
        %p405 = scmp.lt.s32.totalorder %s404, 31
        %s406 = scalar_select %p405, %s404, 31
        %s407 = smul.addr %s406, 2
        %s408 = smul.addr %s407, 8
        %s409 = scalar_lea.vmem %s9, %s408
        %p410 = pneg %p248
        %p411 = pneg %p245
        %p412 = pneg %p269
        %p413 = pneg %p266
        %p414 = pneg %p290
        %p415 = pneg %p287
        %p416 = pneg %p311
        %p417 = pneg %p308
        %p418 = scmp.lt.s32.totalorder %s28, 1
        %s419 = scalar_select %p418, %s28, 1
        %s420 = scalar_lea.vmem %s2, %s419
        %p421 = scmp.lt.s32.totalorder %s28, 1
        %s422 = scalar_select %p421, %s28, 1
        %s423 = scalar_lea.vmem %s3, %s422
        %s424 = smul.u32 16, %s28
        %p425 = scmp.lt.s32.totalorder %s424, 31
        %s426 = scalar_select %p425, %s424, 31
        %s427 = smul.addr %s426, 2
        %s428 = smul.addr %s427, 8
        %s429 = scalar_lea.vmem %s9, %s428
        %s430 = smul.u32 16, %s28
        %s431 = sld [smem:[#allocation4]]
        %v432 = vld [vmem:[%s420] sm:$0x1]
        %v433 = vstv %s431
        %v434 = vmul.f32 %v433, %v432
        %s435 = ssub.f32 1.0, %s431
        %v436 = vld [vmem:[%s423] sm:$0x1]
        %v437 = vstv %s435
        %v438 = vmul.f32 %v437, %v436
        %v439 = vadd.f32 %v434, %v438
        %v440 = vld [vmem:[%s429] sm:$0xff]
        %v441 = vld [vmem:[%s429 + $0x8] sm:$0xff]
        %v442 = vld [vmem:[%s429 + $0x10] sm:$0xff]
        %v443 = vld [vmem:[%s429 + $0x18] sm:$0xff]
        %v444 = vld [vmem:[%s429 + $0x20] sm:$0xff]
        %v445 = vld [vmem:[%s429 + $0x28] sm:$0xff]
        %v446 = vld [vmem:[%s429 + $0x30] sm:$0xff]
        %v447 = vld [vmem:[%s429 + $0x38] sm:$0xff]
        %v448 = vld [vmem:[%s429 + $0x40] sm:$0xff]
        %v449 = vld [vmem:[%s429 + $0x48] sm:$0xff]
        %v450 = vld [vmem:[%s429 + $0x50] sm:$0xff]
        %v451 = vld [vmem:[%s429 + $0x58] sm:$0xff]
        %v452 = vld [vmem:[%s429 + $0x60] sm:$0xff]
        %v453 = vld [vmem:[%s429 + $0x68] sm:$0xff]
        %v454 = vld [vmem:[%s429 + $0x70] sm:$0xff]
        %v455 = vld [vmem:[%s429 + $0x78] sm:$0xff]
        %v456 = vld [vmem:[%s429 + $0x80] sm:$0xff]
        %v457 = vld [vmem:[%s429 + $0x88] sm:$0xff]
        %v458 = vld [vmem:[%s429 + $0x90] sm:$0xff]
        %v459 = vld [vmem:[%s429 + $0x98] sm:$0xff]
        %v460 = vld [vmem:[%s429 + $0xa0] sm:$0xff]
        %v461 = vld [vmem:[%s429 + $0xa8] sm:$0xff]
        %v462 = vld [vmem:[%s429 + $0xb0] sm:$0xff]
        %v463 = vld [vmem:[%s429 + $0xb8] sm:$0xff]
        %v464 = vld [vmem:[%s429 + $0xc0] sm:$0xff]
        %v465 = vld [vmem:[%s429 + $0xc8] sm:$0xff]
        %v466 = vld [vmem:[%s429 + $0xd0] sm:$0xff]
        %v467 = vld [vmem:[%s429 + $0xd8] sm:$0xff]
        %v468 = vld [vmem:[%s429 + $0xe0] sm:$0xff]
        %v469 = vld [vmem:[%s429 + $0xe8] sm:$0xff]
        %v470 = vld [vmem:[%s429 + $0xf0] sm:$0xff]
        %v471 = vld [vmem:[%s429 + $0xf8] sm:$0xff]
        %472 = vmatprep.subr.mxu0 %v441
        %473 = vmatpush1.msra.mxu0 %v440
        %474 = vmatprep.subr.mxu0 %v443
        %475 = vmatpush1.msra.mxu0 %v442
        %476 = vmatprep.subr.mxu0 %v445
        %477 = vmatpush1.msra.mxu0 %v444
        %478 = vmatprep.subr.mxu0 %v447
        %479 = vmatpush1.msra.mxu0 %v446
        %480 = vmatprep.subr.mxu0 %v449
        %481 = vmatpush1.msra.mxu0 %v448
        %482 = vmatprep.subr.mxu0 %v451
        %483 = vmatpush1.msra.mxu0 %v450
        %484 = vmatprep.subr.mxu0 %v453
        %485 = vmatpush1.msra.mxu0 %v452
        %486 = vmatprep.subr.mxu0 %v455
        %487 = vmatpush1.msra.mxu0 %v454
        %488 = vmatprep.subr.mxu0 %v457
        %489 = vmatpush1.msra.mxu0 %v456
        %490 = vmatprep.subr.mxu0 %v459
        %491 = vmatpush1.msra.mxu0 %v458
        %492 = vmatprep.subr.mxu0 %v461
        %493 = vmatpush1.msra.mxu0 %v460
        %494 = vmatprep.subr.mxu0 %v463
        %495 = vmatpush1.msra.mxu0 %v462
        %496 = vmatprep.subr.mxu0 %v465
        %497 = vmatpush1.msra.mxu0 %v464
        %498 = vmatprep.subr.mxu0 %v467
        %499 = vmatpush1.msra.mxu0 %v466
        %500 = vmatprep.subr.mxu0 %v469
        %501 = vmatpush1.msra.mxu0 %v468
        %502 = vmatprep.subr.mxu0 %v471
        %503 = vmatpush1.msra.mxu0 %v470
        %504 = vmatprep.subr.mxu0 0.0
        %505 = vmatpush1.msra.mxu0 0.0
        %506 = vmatprep.subr.mxu0 0.0
        %507 = vmatpush1.msra.mxu0 0.0
        %508 = vmatprep.subr.mxu0 0.0
        %509 = vmatpush1.msra.mxu0 0.0
        %510 = vmatprep.subr.mxu0 0.0
        %511 = vmatpush1.msra.mxu0 0.0
        %512 = vmatprep.subr.mxu0 0.0
        %513 = vmatpush1.msra.mxu0 0.0
        %514 = vmatprep.subr.mxu0 0.0
        %515 = vmatpush1.msra.mxu0 0.0
        %516 = vmatprep.subr.mxu0 0.0
        %517 = vmatpush1.msra.mxu0 0.0
        %518 = vmatprep.subr.mxu0 0.0
        %519 = vmatpush1.msra.mxu0 0.0
        %520 = vmatprep.subr.mxu0 0.0
        %521 = vmatpush1.msra.mxu0 0.0
        %522 = vmatprep.subr.mxu0 0.0
        %523 = vmatpush1.msra.mxu0 0.0
        %524 = vmatprep.subr.mxu0 0.0
        %525 = vmatpush1.msra.mxu0 0.0
        %526 = vmatprep.subr.mxu0 0.0
        %527 = vmatpush1.msra.mxu0 0.0
        %528 = vmatprep.subr.mxu0 0.0
        %529 = vmatpush1.msra.mxu0 0.0
        %530 = vmatprep.subr.mxu0 0.0
        %531 = vmatpush1.msra.mxu0 0.0
        %532 = vmatprep.subr.mxu0 0.0
        %533 = vmatpush1.msra.mxu0 0.0
        %534 = vmatprep.subr.mxu0 0.0
        %535 = vmatpush1.msra.mxu0 0.0
        %536 = vmatprep.mubr.f32.mxu0 0.0
        %537 = vmatmul.mubr.f32.gmra.mrb[0].mxu0 %v439
        %v538 = vpop.f32.mrb[0].mxu0
        %v539 = vadd.f32 0.0, %v538
        %v540 = vpop.f32.mrb[0].mxu0
        %v541 = vadd.f32 0.0, %v540
        %542 = vdwg.mxu0
        %p543 = scmp.eq.s32.totalorder %s28, 0
        // Predicated region
        $region61: #{_scf_loop.38} parent=59 // pred_check
          %p544 = pneg %p543
        $region62: #{_scf_loop.38} parent=59 // pred_check_branch
          %546 = sbr.rel (%p544) target = $region64
        $region63: #{_scf_loop.38} parent=59 // pred_region
          %v547 = vlaneseq
          %vm548 = vcmp.ge.s32.totalorder %v547, 0
          %vm549 = vcmp.lt.s32.totalorder %v547, 256
          %vm550 = vmand %vm548, %vm549
          %551 = vst.msk [vmem:[#allocation2] sm:$0x3] %vm550, 0.0
        $region64: #{_scf_loop.38} parent=59 // pred_fallthru
          _
        %v552 = vld [vmem:[#allocation2] sm:$0x3]
        %v555 = vcombine.low %v539, %v541
        %v557 = vunpack.c.l.s4 1966171168
        %v558 = vunpack.c.0.s8 %v557
        %v559 = vlaneseq
        %v560 = vshrl.u32 %v559, 7
        %v561 = vsub.s32 %v558, %v560
        %v562 = vrot.slane %v555, %v561
        %v564 = vunpack.c.l.s4 1966171168
        %v565 = vunpack.c.0.s8 %v564
        %v566 = vlaneseq
        %v567 = vshrl.u32 %v566, 7
        %v568 = vsub.s32 %v565, %v567
        %v569 = vrot.slane %v562, %v568
        %v571 = vadd.f32 %v552, %v569
        %v572 = vlaneseq
        %vm573 = vcmp.ge.s32.totalorder %v572, 0
        %vm574 = vcmp.lt.s32.totalorder %v572, 256
        %vm575 = vmand %vm573, %vm574
        %576 = vst.msk [vmem:[#allocation2] sm:$0x3] %vm575, %v571
        %p577 = scmp.eq.s32.totalorder %s28, 1
        // Predicated region
        $region65: #{_scf_loop.38} parent=59 // pred_check
          %p578 = pneg %p577
        $region66: #{_scf_loop.38} parent=59 // pred_check_branch
          %580 = sbr.rel (%p578) target = $region68
        $region67: #{_scf_loop.38} parent=59 // pred_region
          %v581 = vld [vmem:[#allocation2] sm:$0x1]
          %vm582 = vcmask 122880
          %583 = vst.msk [vmem:[#allocation3] sm:$0x1] %vm582, %v581
          %v584 = vld [vmem:[#allocation2] sm:$0x1]
          %v586 = vlaneseq
          %v587 = vshrl.u32 %v586, 7
          %v588 = vsub.s32 0, %v587
          %v589 = vrot.slane %v584, %v588
          %590 = vrot.lane.b32.xlu0 %v589, 112
          %v591 = vpop.permute.xlu0 %590
          %593 = vst.msk [vmem:[#allocation3 + $0x1] sm:$0x1] %vm582, %v591
          %v594 = vld [vmem:[#allocation2] sm:$0x1]
          %v596 = vlaneseq
          %v597 = vshrl.u32 %v596, 7
          %v598 = vsub.s32 0, %v597
          %v599 = vrot.slane %v594, %v598
          %600 = vrot.lane.b32.xlu0 %v599, 96
          %v601 = vpop.permute.xlu0 %600
          %603 = vst.msk [vmem:[#allocation3 + $0x2] sm:$0x1] %vm582, %v601
          %v604 = vld [vmem:[#allocation2] sm:$0x1]
          %v606 = vlaneseq
          %v607 = vshrl.u32 %v606, 7
          %v608 = vsub.s32 0, %v607
          %v609 = vrot.slane %v604, %v608
          %610 = vrot.lane.b32.xlu0 %v609, 80
          %v611 = vpop.permute.xlu0 %610
          %613 = vst.msk [vmem:[#allocation3 + $0x3] sm:$0x1] %vm582, %v611
          %v614 = vld [vmem:[#allocation2] sm:$0x1]
          %v616 = vlaneseq
          %v617 = vshrl.u32 %v616, 7
          %v618 = vsub.s32 0, %v617
          %v619 = vrot.slane %v614, %v618
          %620 = vrot.lane.b32.xlu0 %v619, 64
          %v621 = vpop.permute.xlu0 %620
          %623 = vst.msk [vmem:[#allocation3 + $0x4] sm:$0x1] %vm582, %v621
          %v624 = vld [vmem:[#allocation2] sm:$0x1]
          %v626 = vlaneseq
          %v627 = vshrl.u32 %v626, 7
          %v628 = vsub.s32 0, %v627
          %v629 = vrot.slane %v624, %v628
          %630 = vrot.lane.b32.xlu0 %v629, 48
          %v631 = vpop.permute.xlu0 %630
          %633 = vst.msk [vmem:[#allocation3 + $0x5] sm:$0x1] %vm582, %v631
          %v634 = vld [vmem:[#allocation2] sm:$0x1]
          %v636 = vlaneseq
          %v637 = vshrl.u32 %v636, 7
          %v638 = vsub.s32 0, %v637
          %v639 = vrot.slane %v634, %v638
          %640 = vrot.lane.b32.xlu0 %v639, 32
          %v641 = vpop.permute.xlu0 %640
          %643 = vst.msk [vmem:[#allocation3 + $0x6] sm:$0x1] %vm582, %v641
          %v644 = vld [vmem:[#allocation2] sm:$0x1]
          %v646 = vlaneseq
          %v647 = vshrl.u32 %v646, 7
          %v648 = vsub.s32 0, %v647
          %v649 = vrot.slane %v644, %v648
          %650 = vrot.lane.b32.xlu0 %v649, 16
          %v651 = vpop.permute.xlu0 %650
          %653 = vst.msk [vmem:[#allocation3 + $0x7] sm:$0x1] %vm582, %v651
          %v654 = vld [vmem:[#allocation2 + $0x1] sm:$0x1]
          %655 = vst.msk [vmem:[#allocation3 + $0x8] sm:$0x1] %vm582, %v654
          %v656 = vld [vmem:[#allocation2 + $0x1] sm:$0x1]
          %v658 = vlaneseq
          %v659 = vshrl.u32 %v658, 7
          %v660 = vsub.s32 0, %v659
          %v661 = vrot.slane %v656, %v660
          %662 = vrot.lane.b32.xlu0 %v661, 112
          %v663 = vpop.permute.xlu0 %662
          %665 = vst.msk [vmem:[#allocation3 + $0x9] sm:$0x1] %vm582, %v663
          %v666 = vld [vmem:[#allocation2 + $0x1] sm:$0x1]
          %v668 = vlaneseq
          %v669 = vshrl.u32 %v668, 7
          %v670 = vsub.s32 0, %v669
          %v671 = vrot.slane %v666, %v670
          %672 = vrot.lane.b32.xlu0 %v671, 96
          %v673 = vpop.permute.xlu0 %672
          %675 = vst.msk [vmem:[#allocation3 + $0xa] sm:$0x1] %vm582, %v673
          %v676 = vld [vmem:[#allocation2 + $0x1] sm:$0x1]
          %v678 = vlaneseq
          %v679 = vshrl.u32 %v678, 7
          %v680 = vsub.s32 0, %v679
          %v681 = vrot.slane %v676, %v680
          %682 = vrot.lane.b32.xlu0 %v681, 80
          %v683 = vpop.permute.xlu0 %682
          %685 = vst.msk [vmem:[#allocation3 + $0xb] sm:$0x1] %vm582, %v683
          %v686 = vld [vmem:[#allocation2 + $0x1] sm:$0x1]
          %v688 = vlaneseq
          %v689 = vshrl.u32 %v688, 7
          %v690 = vsub.s32 0, %v689
          %v691 = vrot.slane %v686, %v690
          %692 = vrot.lane.b32.xlu0 %v691, 64
          %v693 = vpop.permute.xlu0 %692
          %695 = vst.msk [vmem:[#allocation3 + $0xc] sm:$0x1] %vm582, %v693
          %v696 = vld [vmem:[#allocation2 + $0x1] sm:$0x1]
          %v698 = vlaneseq
          %v699 = vshrl.u32 %v698, 7
          %v700 = vsub.s32 0, %v699
          %v701 = vrot.slane %v696, %v700
          %702 = vrot.lane.b32.xlu0 %v701, 48
          %v703 = vpop.permute.xlu0 %702
          %705 = vst.msk [vmem:[#allocation3 + $0xd] sm:$0x1] %vm582, %v703
          %v706 = vld [vmem:[#allocation2 + $0x1] sm:$0x1]
          %v708 = vlaneseq
          %v709 = vshrl.u32 %v708, 7
          %v710 = vsub.s32 0, %v709
          %v711 = vrot.slane %v706, %v710
          %712 = vrot.lane.b32.xlu0 %v711, 32
          %v713 = vpop.permute.xlu0 %712
          %715 = vst.msk [vmem:[#allocation3 + $0xe] sm:$0x1] %vm582, %v713
          %v716 = vld [vmem:[#allocation2 + $0x1] sm:$0x1]
          %v718 = vlaneseq
          %v719 = vshrl.u32 %v718, 7
          %v720 = vsub.s32 0, %v719
          %v721 = vrot.slane %v716, %v720
          %722 = vrot.lane.b32.xlu0 %v721, 16
          %v723 = vpop.permute.xlu0 %722
          %725 = vst.msk [vmem:[#allocation3 + $0xf] sm:$0x1] %vm582, %v723
          %v726 = vld [vmem:[%s4] sm:$0xff]
          %v727 = vld [vmem:[%s4 + $0x8] sm:$0xff]
          %v728 = vmul.f32 %v433, %v726
          %v729 = vmul.f32 %v433, %v727
          %v730 = vld [vmem:[%s5] sm:$0xff]
          %v731 = vld [vmem:[%s5 + $0x8] sm:$0xff]
          %v732 = vmul.f32 %v437, %v730
          %v733 = vmul.f32 %v437, %v731
          %v734 = vadd.f32 %v728, %v732
          %v735 = vadd.f32 %v729, %v733
          %vm736 = vcmask 130048
          %737 = vst.msk [vmem:[#allocation6] sm:$0xff] %vm736, %v734
          %738 = vst.msk [vmem:[#allocation6 + $0x8] sm:$0xff] %vm736, %v735
          %v739 = vld [vmem:[#allocation3] sm:$0xff]
          %v740 = vld [vmem:[#allocation3 + $0x8] sm:$0xff]
          %v741 = vld [vmem:[%s6] sm:$0xff]
          %v742 = vld [vmem:[%s6 + $0x8] sm:$0xff]
          %v743 = vadd.f32 %v741, %v739
          %v744 = vadd.f32 %v742, %v740
          %v745 = vld [vmem:[%s7] sm:$0xff]
          %v746 = vld [vmem:[%s7 + $0x8] sm:$0xff]
          %v747 = vld [vmem:[%s8] sm:$0xff]
          %v748 = vld [vmem:[%s8 + $0x8] sm:$0xff]
          %v750 = vsel %vm736, %v743, 0
          %v753 = vsel %vm736, %v744, 0
          %755 = vmatprep.subr.mxu0 0.0
          %756 = vmatpush1.msra.mxu0 %v747
          %757 = vmatprep.subr.mxu0 0.0
          %758 = vmatpush1.msra.mxu0 %v748
          %759 = vmatprep.subr.mxu0 0.0
          %760 = vmatpush1.msra.mxu0 0.0
          %761 = vmatprep.subr.mxu0 0.0
          %762 = vmatpush1.msra.mxu0 0.0
          %763 = vmatprep.subr.mxu0 0.0
          %764 = vmatpush1.msra.mxu0 0.0
          %765 = vmatprep.subr.mxu0 0.0
          %766 = vmatpush1.msra.mxu0 0.0
          %767 = vmatprep.subr.mxu0 0.0
          %768 = vmatpush1.msra.mxu0 0.0
          %769 = vmatprep.subr.mxu0 0.0
          %770 = vmatpush1.msra.mxu0 0.0
          %771 = vmatprep.subr.mxu0 0.0
          %772 = vmatpush1.msra.mxu0 0.0
          %773 = vmatprep.subr.mxu0 0.0
          %774 = vmatpush1.msra.mxu0 0.0
          %775 = vmatprep.subr.mxu0 0.0
          %776 = vmatpush1.msra.mxu0 0.0
          %777 = vmatprep.subr.mxu0 0.0
          %778 = vmatpush1.msra.mxu0 0.0
          %779 = vmatprep.subr.mxu0 0.0
          %780 = vmatpush1.msra.mxu0 0.0
          %781 = vmatprep.subr.mxu0 0.0
          %782 = vmatpush1.msra.mxu0 0.0
          %783 = vmatprep.subr.mxu0 0.0
          %784 = vmatpush1.msra.mxu0 0.0
          %785 = vmatprep.subr.mxu0 0.0
          %786 = vmatpush1.msra.mxu0 0.0
          %787 = vmatprep.subr.mxu0 0.0
          %788 = vmatpush1.msra.mxu0 0.0
          %789 = vmatprep.subr.mxu0 0.0
          %790 = vmatpush1.msra.mxu0 0.0
          %791 = vmatprep.subr.mxu0 0.0
          %792 = vmatpush1.msra.mxu0 0.0
          %793 = vmatprep.subr.mxu0 0.0
          %794 = vmatpush1.msra.mxu0 0.0
          %795 = vmatprep.subr.mxu0 0.0
          %796 = vmatpush1.msra.mxu0 0.0
          %797 = vmatprep.subr.mxu0 0.0
          %798 = vmatpush1.msra.mxu0 0.0
          %799 = vmatprep.subr.mxu0 0.0
          %800 = vmatpush1.msra.mxu0 0.0
          %801 = vmatprep.subr.mxu0 0.0
          %802 = vmatpush1.msra.mxu0 0.0
          %803 = vmatprep.subr.mxu0 0.0
          %804 = vmatpush1.msra.mxu0 0.0
          %805 = vmatprep.subr.mxu0 0.0
          %806 = vmatpush1.msra.mxu0 0.0
          %807 = vmatprep.subr.mxu0 0.0
          %808 = vmatpush1.msra.mxu0 0.0
          %809 = vmatprep.subr.mxu0 0.0
          %810 = vmatpush1.msra.mxu0 0.0
          %811 = vmatprep.subr.mxu0 0.0
          %812 = vmatpush1.msra.mxu0 0.0
          %813 = vmatprep.subr.mxu0 0.0
          %814 = vmatpush1.msra.mxu0 0.0
          %815 = vmatprep.subr.mxu0 0.0
          %816 = vmatpush1.msra.mxu0 0.0
          %817 = vmatprep.subr.mxu0 0.0
          %818 = vmatpush1.msra.mxu0 0.0
          %819 = vmatprep.mubr.f32.mxu0 0.0
          %820 = vmatmul.mubr.f32.gmra.mrb[0].mxu0 %v750
          %v821 = vpop.f32.mrb[0].mxu0
          %v822 = vadd.f32 0.0, %v821
          %v823 = vpop.f32.mrb[0].mxu0
          %824 = vmatprep.mubr.f32.mxu0 0.0
          %825 = vmatmul.mubr.f32.gmra.mrb[0].mxu0 %v753
          %v826 = vpop.f32.mrb[0].mxu0
          %v827 = vadd.f32 0.0, %v826
          %v828 = vpop.f32.mrb[0].mxu0
          %829 = vdwg.mxu0
          %v831 = vsel %vm736, %v745, 0
          %v834 = vsel %vm736, %v746, 0
          %836 = vmatprep.subr.mxu0 0.0
          %837 = vmatpush1.msra.mxu0 %v822
          %838 = vmatprep.subr.mxu0 0.0
          %839 = vmatpush1.msra.mxu0 %v827
          %840 = vmatprep.subr.mxu0 0.0
          %841 = vmatpush1.msra.mxu0 0.0
          %842 = vmatprep.subr.mxu0 0.0
          %843 = vmatpush1.msra.mxu0 0.0
          %844 = vmatprep.subr.mxu0 0.0
          %845 = vmatpush1.msra.mxu0 0.0
          %846 = vmatprep.subr.mxu0 0.0
          %847 = vmatpush1.msra.mxu0 0.0
          %848 = vmatprep.subr.mxu0 0.0
          %849 = vmatpush1.msra.mxu0 0.0
          %850 = vmatprep.subr.mxu0 0.0
          %851 = vmatpush1.msra.mxu0 0.0
          %852 = vmatprep.subr.mxu0 0.0
          %853 = vmatpush1.msra.mxu0 0.0
          %854 = vmatprep.subr.mxu0 0.0
          %855 = vmatpush1.msra.mxu0 0.0
          %856 = vmatprep.subr.mxu0 0.0
          %857 = vmatpush1.msra.mxu0 0.0
          %858 = vmatprep.subr.mxu0 0.0
          %859 = vmatpush1.msra.mxu0 0.0
          %860 = vmatprep.subr.mxu0 0.0
          %861 = vmatpush1.msra.mxu0 0.0
          %862 = vmatprep.subr.mxu0 0.0
          %863 = vmatpush1.msra.mxu0 0.0
          %864 = vmatprep.subr.mxu0 0.0
          %865 = vmatpush1.msra.mxu0 0.0
          %866 = vmatprep.subr.mxu0 0.0
          %867 = vmatpush1.msra.mxu0 0.0
          %868 = vmatprep.subr.mxu0 0.0
          %869 = vmatpush1.msra.mxu0 0.0
          %870 = vmatprep.subr.mxu0 0.0
          %871 = vmatpush1.msra.mxu0 0.0
          %872 = vmatprep.subr.mxu0 0.0
          %873 = vmatpush1.msra.mxu0 0.0
          %874 = vmatprep.subr.mxu0 0.0
          %875 = vmatpush1.msra.mxu0 0.0
          %876 = vmatprep.subr.mxu0 0.0
          %877 = vmatpush1.msra.mxu0 0.0
          %878 = vmatprep.subr.mxu0 0.0
          %879 = vmatpush1.msra.mxu0 0.0
          %880 = vmatprep.subr.mxu0 0.0
          %881 = vmatpush1.msra.mxu0 0.0
          %882 = vmatprep.subr.mxu0 0.0
          %883 = vmatpush1.msra.mxu0 0.0
          %884 = vmatprep.subr.mxu0 0.0
          %885 = vmatpush1.msra.mxu0 0.0
          %886 = vmatprep.subr.mxu0 0.0
          %887 = vmatpush1.msra.mxu0 0.0
          %888 = vmatprep.subr.mxu0 0.0
          %889 = vmatpush1.msra.mxu0 0.0
          %890 = vmatprep.subr.mxu0 0.0
          %891 = vmatpush1.msra.mxu0 0.0
          %892 = vmatprep.subr.mxu0 0.0
          %893 = vmatpush1.msra.mxu0 0.0
          %894 = vmatprep.subr.mxu0 0.0
          %895 = vmatpush1.msra.mxu0 0.0
          %896 = vmatprep.subr.mxu0 0.0
          %897 = vmatpush1.msra.mxu0 0.0
          %898 = vmatprep.subr.mxu0 0.0
          %899 = vmatpush1.msra.mxu0 0.0
          %900 = vmatprep.mubr.f32.mxu0 0.0
          %901 = vmatmul.mubr.f32.gmra.mrb[0].mxu0 %v831
          %v902 = vpop.f32.mrb[0].mxu0
          %v903 = vadd.f32 0.0, %v902
          %v904 = vpop.f32.mrb[0].mxu0
          %905 = vmatprep.mubr.f32.mxu0 0.0
          %906 = vmatmul.mubr.f32.gmra.mrb[0].mxu0 %v834
          %v907 = vpop.f32.mrb[0].mxu0
          %v908 = vadd.f32 0.0, %v907
          %v909 = vpop.f32.mrb[0].mxu0
          %910 = vdwg.mxu0
          %911 = vst.msk [vmem:[%s11] sm:$0xff] %vm736, %v903
          %912 = vst.msk [vmem:[%s11 + $0x8] sm:$0xff] %vm736, %v908
          %v913 = vmul.f32 %v734, %v741
          %v914 = vmul.f32 %v735, %v742
          %v915 = vsel %vm736, %v913, 0.0
          %v916 = vsel %vm736, %v914, 0.0
          %v917 = vadd.f32 %v915, %v916
          %918 = vadd.xlane.f32.xlu0 %v917
          %v919 = vpop.xlane.xlu0 %918
          %v920 = vrot.slane %v919, 4
          %v921 = vadd.f32 %v919, %v920
          %v922 = vrot.slane %v921, 2
          %v923 = vadd.f32 %v921, %v922
          %v924 = vrot.slane %v923, 1
          %v925 = vadd.f32 %v923, %v924
          %s926 = vtos %v925
          %v927 = vmul.f32 %v734, %v739
          %v928 = vmul.f32 %v735, %v740
          %v929 = vsel %vm736, %v927, 0.0
          %v930 = vsel %vm736, %v928, 0.0
          %v931 = vadd.f32 %v929, %v930
          %932 = vadd.xlane.f32.xlu0 %v931
          %v933 = vpop.xlane.xlu0 %932
          %v934 = vrot.slane %v933, 4
          %v935 = vadd.f32 %v933, %v934
          %v936 = vrot.slane %v935, 2
          %v937 = vadd.f32 %v935, %v936
          %v938 = vrot.slane %v937, 1
          %v939 = vadd.f32 %v937, %v938
          %s940 = vtos %v939
          %s941 = smul.f32 %s940, 0.5
          %s942 = sadd.f32 %s926, %s941
          %s943 = sld [smem:[#allocation5]]
          %s944 = sadd.f32 %s942, %s943
          %s945 = scalar_lea.smem [#allocation9], 0
          %946 = sst [smem:[%s945]] %s944
        $region68: #{_scf_loop.38} parent=59 // pred_fallthru
          _
        // Predicated region
        $region69: #{_scf_loop.38} parent=59 // pred_check
          %p947 = pneg %p266
        $region70: #{_scf_loop.38} parent=59 // pred_check_branch
          %949 = sbr.rel (%p947) target = $region72
        $region71: #{_scf_loop.38} parent=59 // pred_region
          %s951 = ssub.s32 256, 256
          %952 = vsyncadd [#allocation7], %s951
          %s953 = sshll.u32 [#allocation6], 4
          %s954 = int_to_ptr.vmem [resolvable:$true] %s953
          %959 = dma.vmem_to_hbm [thread:$0]  %s954, 256, %s10, [#allocation7], 128, 128, 8
        $region72: #{_scf_loop.38} parent=59 // pred_fallthru
          _
        // Predicated region
        $region73: #{_scf_loop.38} parent=59 // pred_check
          %p960 = pneg %p287
        $region74: #{_scf_loop.38} parent=59 // pred_check_branch
          %962 = sbr.rel (%p960) target = $region76
        $region75: #{_scf_loop.38} parent=59 // pred_region
          _
        $region76: #{_scf_loop.38} parent=59 // pred_fallthru
          _
        // Predicated region
        $region77: #{_scf_loop.38} parent=59 // pred_check
          %p963 = pneg %p308
        $region78: #{_scf_loop.38} parent=59 // pred_check_branch
          %965 = sbr.rel (%p963) target = $region80
        $region79: #{_scf_loop.38} parent=59 // pred_region
          %s967 = ssub.s32 16, 16
          %968 = vsyncadd [#allocation8], %s967
          %971 = dma.smem_to_hbm [#allocation9], 16, %s12, [#allocation8]
        $region80: #{_scf_loop.38} parent=59 // pred_fallthru
          _
        // Predicated region
        $region81: #{_scf_loop.38} parent=59 // pred_check
          %p972 = pneg %p266
        $region82: #{_scf_loop.38} parent=59 // pred_check_branch
          %974 = sbr.rel (%p972) target = $region84
        $region83: #{_scf_loop.38} parent=59 // pred_region
          %975 = dma.done [#allocation7], 256
        $region84: #{_scf_loop.38} parent=59 // pred_fallthru
          _
        // Predicated region
        $region85: #{_scf_loop.38} parent=59 // pred_check
          %p976 = pneg %p287
        $region86: #{_scf_loop.38} parent=59 // pred_check_branch
          %978 = sbr.rel (%p976) target = $region88
        $region87: #{_scf_loop.38} parent=59 // pred_region
          _
        $region88: #{_scf_loop.38} parent=59 // pred_fallthru
          _
        // Predicated region
        $region89: #{_scf_loop.38} parent=59 // pred_check
          %p979 = pneg %p308
        $region90: #{_scf_loop.38} parent=59 // pred_check_branch
          %981 = sbr.rel (%p979) target = $region92
        $region91: #{_scf_loop.38} parent=59 // pred_region
          %982 = dma.done [#allocation8], 16
        $region92: #{_scf_loop.38} parent=59 // pred_fallthru
          _
        %983 = sfence
      $region60: #{_scf_loop.38} parent=5 // pred_fallthru
        _
      %p984 = scmp.le.s32.totalorder 2, %s23
      // Predicated region
      $region93: #{_scf_loop.38} parent=5 // pred_check
        %p985 = pneg %p984
      $region94: #{_scf_loop.38} parent=5 // pred_check_branch
        %987 = sbr.rel (%p985) target = $region96
      $region95: #{_scf_loop.38} parent=5 // pred_region
        %s988 = ssub.s32 %s23, 2
      $region96: #{_scf_loop.38} parent=5 // pred_fallthru
        _
    $region6: #{_scf_loop.38} parent=1 // loop_footer
      %s27 = sadd.s32 1, %s23
    $region7: #{_scf_loop.38} parent=1 // loop_footer_branch
      %22 = sbr.rel target = $region3
    $region8: #{_scf_loop.38} parent=1 // loop_exit
      _
    %989 = vsyncpa [#allocation7], 1
    %s990 = scalar_lea.sflag [#allocation7], 1
    %991 = vsyncpa %s990, 1
    %992 = vsyncpa [#allocation8], 1
    %s993 = scalar_lea.sflag [#allocation8], 1
    %994 = vsyncpa %s993, 1

// kernel: _scf_loop.39
$region0: #{_scf_loop.39}
  #allocation0 [shape = 'u32[]', space=smem, size = 0x4, offset = 0x4, fixed_abs, tag = 'smem constant byte address 0x4 - core index']
  #allocation1 [shape = 'u32[144,128]{1,0:T(1,128)}', space=vmem, size = 0x12000, scoped, tag = 'internal scratch']
  %s0 = inlined_call_operand.vmem [shape: f32[16,16], index: 0, kind: input, shape index: {}]
  %s1 = inlined_call_operand.vmem [shape: f32[16,8], index: 1, kind: input, shape index: {}]
  %s2 = inlined_call_operand.vmem [shape: f32[1,8], index: 2, kind: input, shape index: {}]
  %s3 = inlined_call_operand.hbm [shape: f32[16,16], index: 3, kind: output, shape index: {}]
  %s4 = sld [smem:[#allocation0]]
  $region22: #{_scf_loop.39} parent=0
    _
  %s6 = ssub.s32 1, %s4
  %s7 = scalar_select 0, %s6, %s4
  $region1: #{_scf_loop.39} parent=0
    #allocation2 [shape = 'u8[8192]{0}', space=vmem, size = 0x2000, scoped, tag = 'output window, operand 0, single buffered']
    #allocation3 [shape = 's32[1]{0}', space=sflag, size = 0x4, scoped, tag = 'scoped memory for _scf_loop.39']
    %8 = vsyncpa [#allocation3], 0
    // Predicated region
    $region2: #{_scf_loop.39} parent=1 // pred_check
      _
    $region3: #{_scf_loop.39} parent=1 // pred_check_branch
      %10 = sbr.rel (0) target = $region5
    $region4: #{_scf_loop.39} parent=1 // pred_region
      _
    $region5: #{_scf_loop.39} parent=1 // pred_fallthru
      _
    // Predicated region
    $region6: #{_scf_loop.39} parent=1 // pred_check
      _
    $region7: #{_scf_loop.39} parent=1 // pred_check_branch
      %12 = sbr.rel (0) target = $region9
    $region8: #{_scf_loop.39} parent=1 // pred_region
      _
    $region9: #{_scf_loop.39} parent=1 // pred_fallthru
      _
    // Predicated region
    $region10: #{_scf_loop.39} parent=1 // pred_check
      _
    $region11: #{_scf_loop.39} parent=1 // pred_check_branch
      %14 = sbr.rel (0) target = $region13
    $region12: #{_scf_loop.39} parent=1 // pred_region
      _
    $region13: #{_scf_loop.39} parent=1 // pred_fallthru
      _
    %v15 = vld [vmem:[%s0] sm:$0xff]
    %v16 = vld [vmem:[%s0 + $0x8] sm:$0xff]
    %v17 = vld [vmem:[%s1] sm:$0xff]
    %v18 = vld [vmem:[%s1 + $0x8] sm:$0xff]
    %vm19 = vcmask 130048
    %v21 = vsel %vm19, %v15, 0
    %v24 = vsel %vm19, %v16, 0
    %26 = vmatprep.subr.mxu0 0.0
    %27 = vmatpush1.msra.mxu0 %v17
    %28 = vmatprep.subr.mxu0 0.0
    %29 = vmatpush1.msra.mxu0 %v18
    %30 = vmatprep.subr.mxu0 0.0
    %31 = vmatpush1.msra.mxu0 0.0
    %32 = vmatprep.subr.mxu0 0.0
    %33 = vmatpush1.msra.mxu0 0.0
    %34 = vmatprep.subr.mxu0 0.0
    %35 = vmatpush1.msra.mxu0 0.0
    %36 = vmatprep.subr.mxu0 0.0
    %37 = vmatpush1.msra.mxu0 0.0
    %38 = vmatprep.subr.mxu0 0.0
    %39 = vmatpush1.msra.mxu0 0.0
    %40 = vmatprep.subr.mxu0 0.0
    %41 = vmatpush1.msra.mxu0 0.0
    %42 = vmatprep.subr.mxu0 0.0
    %43 = vmatpush1.msra.mxu0 0.0
    %44 = vmatprep.subr.mxu0 0.0
    %45 = vmatpush1.msra.mxu0 0.0
    %46 = vmatprep.subr.mxu0 0.0
    %47 = vmatpush1.msra.mxu0 0.0
    %48 = vmatprep.subr.mxu0 0.0
    %49 = vmatpush1.msra.mxu0 0.0
    %50 = vmatprep.subr.mxu0 0.0
    %51 = vmatpush1.msra.mxu0 0.0
    %52 = vmatprep.subr.mxu0 0.0
    %53 = vmatpush1.msra.mxu0 0.0
    %54 = vmatprep.subr.mxu0 0.0
    %55 = vmatpush1.msra.mxu0 0.0
    %56 = vmatprep.subr.mxu0 0.0
    %57 = vmatpush1.msra.mxu0 0.0
    %58 = vmatprep.subr.mxu0 0.0
    %59 = vmatpush1.msra.mxu0 0.0
    %60 = vmatprep.subr.mxu0 0.0
    %61 = vmatpush1.msra.mxu0 0.0
    %62 = vmatprep.subr.mxu0 0.0
    %63 = vmatpush1.msra.mxu0 0.0
    %64 = vmatprep.subr.mxu0 0.0
    %65 = vmatpush1.msra.mxu0 0.0
    %66 = vmatprep.subr.mxu0 0.0
    %67 = vmatpush1.msra.mxu0 0.0
    %68 = vmatprep.subr.mxu0 0.0
    %69 = vmatpush1.msra.mxu0 0.0
    %70 = vmatprep.subr.mxu0 0.0
    %71 = vmatpush1.msra.mxu0 0.0
    %72 = vmatprep.subr.mxu0 0.0
    %73 = vmatpush1.msra.mxu0 0.0
    %74 = vmatprep.subr.mxu0 0.0
    %75 = vmatpush1.msra.mxu0 0.0
    %76 = vmatprep.subr.mxu0 0.0
    %77 = vmatpush1.msra.mxu0 0.0
    %78 = vmatprep.subr.mxu0 0.0
    %79 = vmatpush1.msra.mxu0 0.0
    %80 = vmatprep.subr.mxu0 0.0
    %81 = vmatpush1.msra.mxu0 0.0
    %82 = vmatprep.subr.mxu0 0.0
    %83 = vmatpush1.msra.mxu0 0.0
    %84 = vmatprep.subr.mxu0 0.0
    %85 = vmatpush1.msra.mxu0 0.0
    %86 = vmatprep.subr.mxu0 0.0
    %87 = vmatpush1.msra.mxu0 0.0
    %88 = vmatprep.subr.mxu0 0.0
    %89 = vmatpush1.msra.mxu0 0.0
    %90 = vmatprep.mubr.f32.mxu0 0.0
    %91 = vmatmul.mubr.f32.gmra.mrb[0].mxu0 %v21
    %v92 = vpop.f32.mrb[0].mxu0
    %v93 = vadd.f32 0.0, %v92
    %v94 = vpop.f32.mrb[0].mxu0
    %95 = vmatprep.mubr.f32.mxu0 0.0
    %96 = vmatmul.mubr.f32.gmra.mrb[0].mxu0 %v24
    %v97 = vpop.f32.mrb[0].mxu0
    %v98 = vadd.f32 0.0, %v97
    %v99 = vpop.f32.mrb[0].mxu0
    %100 = vdwg.mxu0
    %v101 = vld [vmem:[%s2] sm:$0x1]
    %v103 = vlaneseq
    %v104 = vshrl.u32 %v103, 7
    %v105 = vsub.s32 0, %v104
    %v106 = vrot.slane %v101, %v105
    %v108 = vmul.f32 %v93, %v106
    %v109 = vmul.f32 %v98, %v106
    %vm110 = vcmask 64512
    %v112 = vsel %vm110, %v108, 0
    %v115 = vsel %vm110, %v109, 0
    %v118 = vsel %vm110, %v93, 0
    %v121 = vsel %vm110, %v98, 0
    %123 = vmatprep.subr.mxu0 0.0
    %124 = vmatpush1.xpose.msra.mxu0 %v118
    %125 = vmatprep.subr.mxu0 0.0
    %126 = vmatpush1.xpose.msra.mxu0 %v121
    %127 = vmatprep.subr.mxu0 0.0
    %128 = vmatpush1.xpose.msra.mxu0 0.0
    %129 = vmatprep.subr.mxu0 0.0
    %130 = vmatpush1.xpose.msra.mxu0 0.0
    %131 = vmatprep.subr.mxu0 0.0
    %132 = vmatpush1.xpose.msra.mxu0 0.0
    %133 = vmatprep.subr.mxu0 0.0
    %134 = vmatpush1.xpose.msra.mxu0 0.0
    %135 = vmatprep.subr.mxu0 0.0
    %136 = vmatpush1.xpose.msra.mxu0 0.0
    %137 = vmatprep.subr.mxu0 0.0
    %138 = vmatpush1.xpose.msra.mxu0 0.0
    %139 = vmatprep.subr.mxu0 0.0
    %140 = vmatpush1.xpose.msra.mxu0 0.0
    %141 = vmatprep.subr.mxu0 0.0
    %142 = vmatpush1.xpose.msra.mxu0 0.0
    %143 = vmatprep.subr.mxu0 0.0
    %144 = vmatpush1.xpose.msra.mxu0 0.0
    %145 = vmatprep.subr.mxu0 0.0
    %146 = vmatpush1.xpose.msra.mxu0 0.0
    %147 = vmatprep.subr.mxu0 0.0
    %148 = vmatpush1.xpose.msra.mxu0 0.0
    %149 = vmatprep.subr.mxu0 0.0
    %150 = vmatpush1.xpose.msra.mxu0 0.0
    %151 = vmatprep.subr.mxu0 0.0
    %152 = vmatpush1.xpose.msra.mxu0 0.0
    %153 = vmatprep.subr.mxu0 0.0
    %154 = vmatpush1.xpose.msra.mxu0 0.0
    %155 = vmatprep.subr.mxu0 0.0
    %156 = vmatpush1.xpose.msra.mxu0 0.0
    %157 = vmatprep.subr.mxu0 0.0
    %158 = vmatpush1.xpose.msra.mxu0 0.0
    %159 = vmatprep.subr.mxu0 0.0
    %160 = vmatpush1.xpose.msra.mxu0 0.0
    %161 = vmatprep.subr.mxu0 0.0
    %162 = vmatpush1.xpose.msra.mxu0 0.0
    %163 = vmatprep.subr.mxu0 0.0
    %164 = vmatpush1.xpose.msra.mxu0 0.0
    %165 = vmatprep.subr.mxu0 0.0
    %166 = vmatpush1.xpose.msra.mxu0 0.0
    %167 = vmatprep.subr.mxu0 0.0
    %168 = vmatpush1.xpose.msra.mxu0 0.0
    %169 = vmatprep.subr.mxu0 0.0
    %170 = vmatpush1.xpose.msra.mxu0 0.0
    %171 = vmatprep.subr.mxu0 0.0
    %172 = vmatpush1.xpose.msra.mxu0 0.0
    %173 = vmatprep.subr.mxu0 0.0
    %174 = vmatpush1.xpose.msra.mxu0 0.0
    %175 = vmatprep.subr.mxu0 0.0
    %176 = vmatpush1.xpose.msra.mxu0 0.0
    %177 = vmatprep.subr.mxu0 0.0
    %178 = vmatpush1.xpose.msra.mxu0 0.0
    %179 = vmatprep.subr.mxu0 0.0
    %180 = vmatpush1.xpose.msra.mxu0 0.0
    %181 = vmatprep.subr.mxu0 0.0
    %182 = vmatpush1.xpose.msra.mxu0 0.0
    %183 = vmatprep.subr.mxu0 0.0
    %184 = vmatpush1.xpose.msra.mxu0 0.0
    %185 = vmatprep.subr.mxu0 0.0
    %186 = vmatpush1.xpose.msra.mxu0 0.0
    %187 = vmatprep.mubr.f32.mxu0 0.0
    %188 = vmatmul.mubr.f32.gmra.mrb[0].mxu0 %v112
    %v189 = vpop.f32.mrb[0].mxu0
    %v190 = vadd.f32 0.0, %v189
    %v191 = vpop.f32.mrb[0].mxu0
    %192 = vmatprep.mubr.f32.mxu0 0.0
    %193 = vmatmul.mubr.f32.gmra.mrb[0].mxu0 %v115
    %v194 = vpop.f32.mrb[0].mxu0
    %v195 = vadd.f32 0.0, %v194
    %v196 = vpop.f32.mrb[0].mxu0
    %197 = vdwg.mxu0
    %198 = vst.msk [vmem:[#allocation2] sm:$0xff] %vm19, %v190
    %199 = vst.msk [vmem:[#allocation2 + $0x8] sm:$0xff] %vm19, %v195
    // Predicated region
    $region14: #{_scf_loop.39} parent=1 // pred_check
      _
    $region15: #{_scf_loop.39} parent=1 // pred_check_branch
      %201 = sbr.rel (0) target = $region17
    $region16: #{_scf_loop.39} parent=1 // pred_region
      %s203 = ssub.s32 256, 256
      %204 = vsyncadd [#allocation3], %s203
      %s205 = sshll.u32 [#allocation2], 4
      %s206 = int_to_ptr.vmem [resolvable:$true] %s205
      %211 = dma.vmem_to_hbm [thread:$0]  %s206, 256, %s3, [#allocation3], 128, 128, 8
    $region17: #{_scf_loop.39} parent=1 // pred_fallthru
      _
    // Predicated region
    $region18: #{_scf_loop.39} parent=1 // pred_check
      _
    $region19: #{_scf_loop.39} parent=1 // pred_check_branch
      %213 = sbr.rel (0) target = $region21
    $region20: #{_scf_loop.39} parent=1 // pred_region
      %214 = dma.done [#allocation3], 256
    $region21: #{_scf_loop.39} parent=1 // pred_fallthru
      _
    %215 = vsyncpa [#allocation3], 1

</llo_original>
